<compile_context>
chip_gen: v5e
topology: v5e:2x2
jax: 0.10.0
libtpu: 0.0.40
codegen_flags: <defaults>
</compile_context>

<pallas_src>
import functools
import math

import jax
import jax.numpy as jnp
import numpy as np
from jax import lax
from jax.experimental import pallas as pl
from jax.experimental.pallas import tpu as pltpu


C = 24            # width of every narrow conv
S5 = 5            # spectral length after conv1 == 5x5 spatial side
G = S5 * C        # 120 real fused lanes (spectral|h, channel)
F = 128           # padded lane width


# ----------------------------------------------------------------------------
# The single fused Pallas kernel
# ----------------------------------------------------------------------------

def _ssrn_kernel(x_ref, wp1_ref, wspec_ref, wp2_ref, wq3_ref, wspat_ref,
                 wpfc_ref, vecs_ref, pmask_ref, out_ref,
                 xk_ref, pa_ref, pb_ref):
    f32 = jnp.float32
    bf16 = jnp.bfloat16
    n = out_ref.shape[0]                        # batch size N
    m1 = x_ref.shape[0]                         # N * 49 first-half rows

    def mdot(a, b):                             # bf16 MXU, f32 accumulate
        return jnp.dot(a.astype(bf16), b.astype(bf16),
                       preferred_element_type=f32)

    def relu(t):
        return jnp.maximum(t, 0.0)

    def v(i):                                   # (1, 128) packed vector row
        return vecs_ref[pl.ds(i, 1), :]

    pmask = pmask_ref[...]                      # (128, 128) 0/1 channel-pool, bf16

    def pool_groups(s):
        # Exact pooling of a (1,128) f32 sum over the 5 lane groups of 24:
        # hi/lo split -> two bf16 matmuls against a 0/1 mask (each exact).
        hi = s.astype(bf16)
        lo = (s - hi.astype(f32)).astype(bf16)
        return (jnp.dot(hi, pmask, preferred_element_type=f32) +
                jnp.dot(lo, pmask, preferred_element_type=f32))

    def bn24(y, count, gamma, beta, eps):
        # Train-mode BN over 24 channels replicated across the 5 lane groups.
        inv = 1.0 / count
        mean = pool_groups(jnp.sum(y, axis=0, keepdims=True)) * inv
        msq = pool_groups(jnp.sum(y * y, axis=0, keepdims=True)) * inv
        scale = gamma * lax.rsqrt(msq - mean * mean + eps)
        return (y - mean) * scale + beta

    def bn128(y, count, gamma, beta, eps):      # per-lane BN (128 channels)
        inv = 1.0 / count
        mean = jnp.sum(y, axis=0, keepdims=True) * inv
        msq = jnp.sum(y * y, axis=0, keepdims=True) * inv
        scale = gamma * lax.rsqrt(msq - mean * mean + eps)
        return (y - mean) * scale + beta

    # ------------------ first half: spectral pipeline -----------------------
    cnt1 = float(m1 * S5)                       # N*7*7*5 elements / channel

    # conv1 (1,1,7) stride (1,1,2) + BN(eps 1e-3) + ReLU
    h = mdot(x_ref[...], wp1_ref[...]) + v(0)
    h = relu(bn24(h, cnt1, v(1), v(2), 1e-3))

    def spectral_residual(hin, widx, vr):
        t = relu(mdot(hin, wspec_ref[widx]) + v(vr))                 # Conv+ReLU
        t = relu(bn24(t, cnt1, v(vr + 1), v(vr + 2), 1e-5))
        u = mdot(t, wspec_ref[widx + 1]) + v(vr + 3)                 # Conv
        u = bn24(u, cnt1, v(vr + 4), v(vr + 5), 1e-5)
        return relu(u + hin)

    h = spectral_residual(h, 0, 3)              # res_net1
    h = spectral_residual(h, 2, 9)              # res_net2

    # conv2 (-> 128 channels, spectral collapses) + BN(eps 1e-3) + ReLU
    h2 = mdot(h, wp2_ref[...]) + v(15)
    xk_ref[...] = relu(bn128(h2, float(m1), v(16), v(17), 1e-3))

    # ------------- permute + conv3 (3,3,128) + BN + ReLU ---------------------
    # rows of xk are (w, h, n); for each D-tap di the 7 w-blocks are lane-
    # concatenated into one (5N, 896) operand -> 3 MXU-filling matmuls.
    cnt2 = float(25 * n)
    acc3 = v(18)                                # conv3 bias
    for di in range(3):
        xin = jnp.concatenate(
            [xk_ref[pl.ds((w * 7 + di) * n, 5 * n), :] for w in range(7)],
            axis=1)                             # (5N, 896)
        acc3 = acc3 + mdot(xin, wq3_ref[di])
    y3 = relu(bn24(acc3, cnt2, v(19), v(20), 1e-3))

    # padded 5x5 grids: rows (d_pad, n), interior rows [N, 6N)
    pa_ref[...] = jnp.zeros(pa_ref.shape, f32)
    pb_ref[...] = jnp.zeros(pb_ref.shape, f32)
    pa_ref[pl.ds(n, 5 * n), :] = y3

    # ---------------- spatial residual blocks (3,3,1) ------------------------
    def conv_sp(src_ref, widx):
        # 3 D-taps concatenated along K -> one (5N, 384) x (384, 128) matmul
        xin = jnp.concatenate([src_ref[pl.ds(0, 5 * n), :],
                               src_ref[pl.ds(n, 5 * n), :],
                               src_ref[pl.ds(2 * n, 5 * n), :]], axis=1)
        return mdot(xin, wspat_ref[widx])

    def spatial_residual(widx, vr):
        res = pa_ref[pl.ds(n, 5 * n), :]
        t = relu(conv_sp(pa_ref, widx) + v(vr))                      # Conv+ReLU
        t = relu(bn24(t, cnt2, v(vr + 1), v(vr + 2), 1e-5))
        pb_ref[pl.ds(n, 5 * n), :] = t
        u = conv_sp(pb_ref, widx + 1) + v(vr + 3)                    # Conv
        u = bn24(u, cnt2, v(vr + 4), v(vr + 5), 1e-5)
        pa_ref[pl.ds(n, 5 * n), :] = relu(u + res)

    spatial_residual(0, 21)                     # res_net3
    spatial_residual(2, 27)                     # res_net4

    # ---------------- AvgPool3d((5,5,1)) + Linear ----------------------------
    rs = (pa_ref[pl.ds(1 * n, n), :] + pa_ref[pl.ds(2 * n, n), :] +
          pa_ref[pl.ds(3 * n, n), :] + pa_ref[pl.ds(4 * n, n), :] +
          pa_ref[pl.ds(5 * n, n), :])           # (N, 128): sum over the 5 d rows
    out_ref[...] = mdot(rs, wpfc_ref[...]) + v(33)   # wpfc folds 1/25 + h-pool


# ----------------------------------------------------------------------------
# Forward wrapper (one pallas_call)
# ----------------------------------------------------------------------------

def ssrn_forward(packed, x, classes=None):
    """x: (N, 1, band, H, W) float32 (PyTorch NCDHW convention)."""
    N = x.shape[0]
    band = x.shape[2]
    assert x.shape[1] == 1 and x.shape[3] == 7 and x.shape[4] == 7
    assert (band - 7) // 2 + 1 == S5            # spectral length must be 5

    # rows ordered (w_orig, h_orig, n), columns = spectral
    x2d = jnp.transpose(x[:, 0], (3, 2, 0, 1)).reshape(49 * N, band)
    x2d = x2d.astype(jnp.float32)

    args = (x2d, packed['wp1'], packed['wspec'], packed['wp2'],
            packed['wq3'], packed['wspat'], packed['wpfc'],
            packed['vecs'], packed['pmask'])

    def full_spec(a):
        zeros = (0,) * a.ndim
        return pl.BlockSpec(a.shape, lambda: zeros)

    flops = 2 * N * (49 * band * F + 5 * 49 * F * F +
                     3 * 5 * 7 * F * F + 4 * 5 * 3 * F * F + F * F)
    bytes_accessed = N * F * 4 + x2d.size * 4
    for a in args[1:]:
        bytes_accessed += int(np.prod(a.shape)) * a.dtype.itemsize

    out = pl.pallas_call(
        _ssrn_kernel,
        out_shape=jax.ShapeDtypeStruct((N, F), jnp.float32),
        in_specs=[full_spec(a) for a in args],
        out_specs=pl.BlockSpec((N, F), lambda: (0, 0)),
        scratch_shapes=[
            pltpu.VMEM((49 * N, F), jnp.float32),   # conv2 output (w, h, n)
            pltpu.VMEM((7 * N, F), jnp.float32),    # padded 5x5 grid (ping)
            pltpu.VMEM((7 * N, F), jnp.float32),    # padded 5x5 grid (pong)
        ],
        compiler_params=pltpu.CompilerParams(
            vmem_limit_bytes=64 * 1024 * 1024),
        cost_estimate=pl.CostEstimate(flops=int(flops), transcendentals=2048,
                                      bytes_accessed=int(bytes_accessed)),
    )(*args)
    if classes is None:
        return out
    return out[:, :classes]


# ----------------------------------------------------------------------------
# One-time host-side weight packing (banded / fused-feature matrices, bf16,
# all lane-padded to 128)
# ----------------------------------------------------------------------------

def pack_params(p, band, classes):
    def npa(v):
        return np.asarray(v, dtype=np.float32)

    # conv1 (24,1,1,1,7) stride 2 -> (band, 128)
    w1 = npa(p['conv1_w']).reshape(C, 7)
    wp1 = np.zeros((band, F), np.float32)
    for o in range(S5):
        for i in range(7):
            wp1[2 * o + i, o * C:(o + 1) * C] = w1[:, i]

    def band_spectral(w):                     # (24,24,1,1,7), pad 3 -> (128,128)
        w = npa(w).reshape(C, C, 7)           # (cout, cin, i)
        m = np.zeros((F, F), np.float32)
        for o in range(S5):
            for j in range(S5):
                i = j - o + 3
                if 0 <= i <= 6:
                    m[j * C:(j + 1) * C, o * C:(o + 1) * C] = w[:, :, i].T
        return m

    wspec = np.stack([band_spectral(p['res1']['w1']),
                      band_spectral(p['res1']['w2']),
                      band_spectral(p['res2']['w1']),
                      band_spectral(p['res2']['w2'])], axis=0)

    # conv2 (128,24,1,1,5) -> (128, 128)
    w2 = npa(p['conv2_w']).reshape(128, C, S5)
    wp2 = np.zeros((F, 128), np.float32)
    for i in range(S5):
        wp2[i * C:(i + 1) * C, :] = w2[:, :, i].T

    # conv3 (24,1,3,3,128) -> 3 packed (7*128, 128) matrices, one per D-tap
    w3 = npa(p['conv3_w']).reshape(C, 3, 3, 128)   # (cout, di, hi, s)
    wq3 = np.zeros((3, 7 * 128, F), np.float32)
    for di in range(3):
        for w in range(7):
            for ho in range(S5):
                hi = w - ho
                if 0 <= hi <= 2:
                    wq3[di, w * 128:(w + 1) * 128,
                        ho * C:(ho + 1) * C] = w3[:, di, hi, :].T
    # conv3 weight layout check: rows (w*128 + s), cols (ho*24 + cout)

    def band_spatial(w):                      # (24,24,3,3,1) -> (3*128, 128)
        w = npa(w).reshape(C, C, 3, 3)        # (cout, cin, di, hi)
        m = np.zeros((3 * F, F), np.float32)
        for di in range(3):
            for hin in range(S5):
                for ho in range(S5):
                    hi = hin - ho + 1
                    if 0 <= hi <= 2:
                        m[di * F + hin * C: di * F + (hin + 1) * C,
                          ho * C:(ho + 1) * C] = w[:, :, di, hi].T
        return m

    wspat = np.stack([band_spatial(p['res3']['w1']),
                      band_spatial(p['res3']['w2']),
                      band_spatial(p['res4']['w1']),
                      band_spatial(p['res4']['w2'])], axis=0)   # (4, 384, 128)

    # FC folded with the (5,5) average pool: (128, 128), cols >= classes zero
    wfc = npa(p['fc_w'])                      # (classes, 24)
    wpfc = np.zeros((F, F), np.float32)
    for h in range(S5):
        wpfc[h * C:(h + 1) * C, :classes] = wfc.T / 25.0

    # packed bias / gamma / beta vectors, each one 128-lane row
    def tile5(vv):
        out = np.zeros((F,), np.float32)
        out[:G] = np.tile(npa(vv).reshape(1, C), (1, S5))[0]
        return out

    def full128(vv):
        out = np.zeros((F,), np.float32)
        a = npa(vv).reshape(-1)
        out[:a.shape[0]] = a
        return out

    vecs = np.zeros((34, F), np.float32)
    vecs[0] = tile5(p['conv1_b'])
    vecs[1] = tile5(p['bn1'][0]); vecs[2] = tile5(p['bn1'][1])

    def set_res24(row, rp):
        vecs[row + 0] = tile5(rp['b1'])
        vecs[row + 1] = tile5(rp['bn1'][0]); vecs[row + 2] = tile5(rp['bn1'][1])
        vecs[row + 3] = tile5(rp['b2'])
        vecs[row + 4] = tile5(rp['bn2'][0]); vecs[row + 5] = tile5(rp['bn2'][1])

    set_res24(3, p['res1'])
    set_res24(9, p['res2'])
    vecs[15] = full128(p['conv2_b'])
    vecs[16] = full128(p['bn2'][0]); vecs[17] = full128(p['bn2'][1])
    vecs[18] = tile5(p['conv3_b'])
    vecs[19] = tile5(p['bn3'][0]); vecs[20] = tile5(p['bn3'][1])
    set_res24(21, p['res3'])
    set_res24(27, p['res4'])
    vecs[33] = full128(p['fc_b'])

    idx = np.arange(F)
    pmask = ((idx[:, None] % C == idx[None, :] % C) &
             (idx[:, None] < G) & (idx[None, :] < G)).astype(np.float32)

    bf = jnp.bfloat16
    return dict(
        wp1=jnp.asarray(wp1, bf),
        wspec=jnp.asarray(wspec, bf),
        wp2=jnp.asarray(wp2, bf),
        wq3=jnp.asarray(wq3, bf),
        wspat=jnp.asarray(wspat, bf),
        wpfc=jnp.asarray(wpfc, bf),
        vecs=jnp.asarray(vecs, jnp.float32),
        pmask=jnp.asarray(pmask, bf),
    )


# ----------------------------------------------------------------------------
# Deterministic parameter initialization (PyTorch-shaped synthetic weights)
# ----------------------------------------------------------------------------

def init_params(key, band, classes):
    kernel_3d = math.ceil((band - 6) / 2)
    it = iter(jax.random.split(key, 96))

    def conv(cout, cin, k):
        w = 0.1 * jax.random.normal(next(it), (cout, cin) + k, jnp.float32)
        b = 0.05 * jax.random.normal(next(it), (cout,), jnp.float32)
        return w, b

    def bn(c):
        gamma = 1.0 + 0.1 * jax.random.normal(next(it), (c,), jnp.float32)
        beta = 0.1 * jax.random.normal(next(it), (c,), jnp.float32)
        return gamma, beta

    def residual(cin, cout, k):
        w1, b1 = conv(cout, cin, k)
        w2, b2 = conv(cout, cout, k)
        return dict(w1=w1, b1=b1, w2=w2, b2=b2, bn1=bn(cout), bn2=bn(cout))

    p = {}
    p['conv1_w'], p['conv1_b'] = conv(24, 1, (1, 1, 7))
    p['bn1'] = bn(24)
    p['res1'] = residual(24, 24, (1, 1, 7))
    p['res2'] = residual(24, 24, (1, 1, 7))
    p['conv2_w'], p['conv2_b'] = conv(128, 24, (1, 1, kernel_3d))
    p['bn2'] = bn(128)
    p['conv3_w'], p['conv3_b'] = conv(24, 1, (3, 3, 128))
    p['bn3'] = bn(24)
    p['res3'] = residual(24, 24, (3, 3, 1))
    p['res4'] = residual(24, 24, (3, 3, 1))
    p['fc_w'] = 0.1 * jax.random.normal(next(it), (classes, 24), jnp.float32)
    p['fc_b'] = 0.05 * jax.random.normal(next(it), (classes,), jnp.float32)
    return p


# ----------------------------------------------------------------------------

if __name__ == "__main__":
    band, classes = 16, 9          # small spectral dim; 7x7 spatial patch
    N, H, W = 2, 7, 7
    key = jax.random.PRNGKey(0)
    pkey, xkey = jax.random.split(key)
    params = init_params(pkey, band, classes)
    packed = pack_params(params, band, classes)   # one-time weight packing
    x = jax.random.normal(xkey, (N, 1, band, H, W), jnp.float32)

    fwd = jax.jit(functools.partial(ssrn_forward, classes=classes))
    out = jax.block_until_ready(fwd(packed, x))
    assert out.shape == (N, classes)
    assert bool(jnp.all(jnp.isfinite(out)))
    print("KERNEL_OK")
</pallas_src>

<mosaic_0001>
module attributes {stable_mosaic.version = 11 : i64} {
  func.func @_ssrn_kernel(%arg0: memref<98x16xf32, #tpu.memory_space<vmem>>, %arg1: memref<16x128xbf16, #tpu.memory_space<vmem>>, %arg2: memref<4x128x128xbf16, #tpu.memory_space<vmem>>, %arg3: memref<128x128xbf16, #tpu.memory_space<vmem>>, %arg4: memref<3x896x128xbf16, #tpu.memory_space<vmem>>, %arg5: memref<4x384x128xbf16, #tpu.memory_space<vmem>>, %arg6: memref<128x128xbf16, #tpu.memory_space<vmem>>, %arg7: memref<34x128xf32, #tpu.memory_space<vmem>>, %arg8: memref<128x128xbf16, #tpu.memory_space<vmem>>, %arg9: memref<2x128xf32, #tpu.memory_space<vmem>>, %arg10: memref<98x128xf32, #tpu.memory_space<vmem>>, %arg11: memref<14x128xf32, #tpu.memory_space<vmem>>, %arg12: memref<14x128xf32, #tpu.memory_space<vmem>>) attributes {dimension_semantics = [], scalar_prefetch = 0 : i64, scratch_operands = 3 : i64, tpu.core_type = #tpu.core_type<tc>} {
    %c0 = arith.constant 0 : index
    %c0_0 = arith.constant 0 : index
    %0 = vector.load %arg8[%c0, %c0_0] : memref<128x128xbf16, #tpu.memory_space<vmem>>, vector<128x128xbf16>
    %c0_1 = arith.constant 0 : index
    %c0_2 = arith.constant 0 : index
    %1 = vector.load %arg0[%c0_1, %c0_2] : memref<98x16xf32, #tpu.memory_space<vmem>>, vector<98x16xf32>
    %c0_3 = arith.constant 0 : index
    %c0_4 = arith.constant 0 : index
    %2 = vector.load %arg1[%c0_3, %c0_4] : memref<16x128xbf16, #tpu.memory_space<vmem>>, vector<16x128xbf16>
    %3 = arith.truncf %1 : vector<98x16xf32> to vector<98x16xbf16>
    %cst = arith.constant dense<0.000000e+00> : vector<98x128xf32>
    %4 = tpu.matmul %3, %2, %cst {dimension_numbers = #tpu.dot_dimension_numbers<[1], [0], [0], [1], [0, 0, 1, 1], [], []>} : vector<98x16xbf16>, vector<16x128xbf16>, vector<98x128xf32> -> vector<98x128xf32>
    %c0_5 = arith.constant 0 : index
    %c0_6 = arith.constant 0 : index
    %5 = vector.load %arg7[%c0_5, %c0_6] : memref<34x128xf32, #tpu.memory_space<vmem>>, vector<1x128xf32>
    %6 = vector.broadcast %5 : vector<1x128xf32> to vector<98x128xf32>
    %7 = arith.addf %4, %6 : vector<98x128xf32>
    %c1 = arith.constant 1 : index
    %c0_7 = arith.constant 0 : index
    %8 = vector.load %arg7[%c1, %c0_7] : memref<34x128xf32, #tpu.memory_space<vmem>>, vector<1x128xf32>
    %c2 = arith.constant 2 : index
    %c0_8 = arith.constant 0 : index
    %9 = vector.load %arg7[%c2, %c0_8] : memref<34x128xf32, #tpu.memory_space<vmem>>, vector<1x128xf32>
    %cst_9 = arith.constant dense<0.000000e+00> : vector<128xf32>
    %10 = vector.multi_reduction <add>, %7, %cst_9 [0] : vector<98x128xf32> to vector<128xf32>
    %11 = vector.shape_cast %10 : vector<128xf32> to vector<1x128xf32>
    %12 = arith.truncf %11 : vector<1x128xf32> to vector<1x128xbf16>
    %13 = arith.extf %12 : vector<1x128xbf16> to vector<1x128xf32>
    %14 = arith.subf %11, %13 : vector<1x128xf32>
    %15 = arith.truncf %14 : vector<1x128xf32> to vector<1x128xbf16>
    %cst_10 = arith.constant dense<0.000000e+00> : vector<1x128xf32>
    %16 = tpu.matmul %12, %0, %cst_10 {dimension_numbers = #tpu.dot_dimension_numbers<[1], [0], [0], [1], [0, 0, 1, 1], [], []>} : vector<1x128xbf16>, vector<128x128xbf16>, vector<1x128xf32> -> vector<1x128xf32>
    %cst_11 = arith.constant dense<0.000000e+00> : vector<1x128xf32>
    %17 = tpu.matmul %15, %0, %cst_11 {dimension_numbers = #tpu.dot_dimension_numbers<[1], [0], [0], [1], [0, 0, 1, 1], [], []>} : vector<1x128xbf16>, vector<128x128xbf16>, vector<1x128xf32> -> vector<1x128xf32>
    %18 = arith.addf %16, %17 : vector<1x128xf32>
    %cst_12 = arith.constant 0.00204081624 : f32
    %19 = vector.broadcast %cst_12 : f32 to vector<1x128xf32>
    %20 = arith.mulf %18, %19 : vector<1x128xf32>
    %21 = arith.mulf %7, %7 : vector<98x128xf32>
    %cst_13 = arith.constant dense<0.000000e+00> : vector<128xf32>
    %22 = vector.multi_reduction <add>, %21, %cst_13 [0] : vector<98x128xf32> to vector<128xf32>
    %23 = vector.shape_cast %22 : vector<128xf32> to vector<1x128xf32>
    %24 = arith.truncf %23 : vector<1x128xf32> to vector<1x128xbf16>
    %25 = arith.extf %24 : vector<1x128xbf16> to vector<1x128xf32>
    %26 = arith.subf %23, %25 : vector<1x128xf32>
    %27 = arith.truncf %26 : vector<1x128xf32> to vector<1x128xbf16>
    %cst_14 = arith.constant dense<0.000000e+00> : vector<1x128xf32>
    %28 = tpu.matmul %24, %0, %cst_14 {dimension_numbers = #tpu.dot_dimension_numbers<[1], [0], [0], [1], [0, 0, 1, 1], [], []>} : vector<1x128xbf16>, vector<128x128xbf16>, vector<1x128xf32> -> vector<1x128xf32>
    %cst_15 = arith.constant dense<0.000000e+00> : vector<1x128xf32>
    %29 = tpu.matmul %27, %0, %cst_15 {dimension_numbers = #tpu.dot_dimension_numbers<[1], [0], [0], [1], [0, 0, 1, 1], [], []>} : vector<1x128xbf16>, vector<128x128xbf16>, vector<1x128xf32> -> vector<1x128xf32>
    %30 = arith.addf %28, %29 : vector<1x128xf32>
    %cst_16 = arith.constant 0.00204081624 : f32
    %31 = vector.broadcast %cst_16 : f32 to vector<1x128xf32>
    %32 = arith.mulf %30, %31 : vector<1x128xf32>
    %33 = arith.mulf %20, %20 : vector<1x128xf32>
    %34 = arith.subf %32, %33 : vector<1x128xf32>
    %cst_17 = arith.constant 1.000000e-03 : f32
    %35 = vector.broadcast %cst_17 : f32 to vector<1x128xf32>
    %36 = arith.addf %34, %35 : vector<1x128xf32>
    %37 = math.rsqrt %36 : vector<1x128xf32>
    %38 = arith.mulf %8, %37 : vector<1x128xf32>
    %39 = vector.broadcast %20 : vector<1x128xf32> to vector<98x128xf32>
    %40 = arith.subf %7, %39 : vector<98x128xf32>
    %41 = vector.broadcast %38 : vector<1x128xf32> to vector<98x128xf32>
    %42 = arith.mulf %40, %41 : vector<98x128xf32>
    %43 = vector.broadcast %9 : vector<1x128xf32> to vector<98x128xf32>
    %44 = arith.addf %42, %43 : vector<98x128xf32>
    %cst_18 = arith.constant 0.000000e+00 : f32
    %45 = vector.broadcast %cst_18 : f32 to vector<98x128xf32>
    %46 = arith.maximumf %44, %45 : vector<98x128xf32>
    %c0_19 = arith.constant 0 : index
    %c0_20 = arith.constant 0 : index
    %c0_21 = arith.constant 0 : index
    %47 = vector.load %arg2[%c0_19, %c0_20, %c0_21] : memref<4x128x128xbf16, #tpu.memory_space<vmem>>, vector<1x128x128xbf16>
    %48 = vector.shape_cast %47 : vector<1x128x128xbf16> to vector<128x128xbf16>
    %49 = arith.truncf %46 : vector<98x128xf32> to vector<98x128xbf16>
    %cst_22 = arith.constant dense<0.000000e+00> : vector<98x128xf32>
    %50 = tpu.matmul %49, %48, %cst_22 {dimension_numbers = #tpu.dot_dimension_numbers<[1], [0], [0], [1], [0, 0, 1, 1], [], []>} : vector<98x128xbf16>, vector<128x128xbf16>, vector<98x128xf32> -> vector<98x128xf32>
    %c3 = arith.constant 3 : index
    %c0_23 = arith.constant 0 : index
    %51 = vector.load %arg7[%c3, %c0_23] : memref<34x128xf32, #tpu.memory_space<vmem>>, vector<1x128xf32>
    %52 = vector.broadcast %51 : vector<1x128xf32> to vector<98x128xf32>
    %53 = arith.addf %50, %52 : vector<98x128xf32>
    %cst_24 = arith.constant 0.000000e+00 : f32
    %54 = vector.broadcast %cst_24 : f32 to vector<98x128xf32>
    %55 = arith.maximumf %53, %54 : vector<98x128xf32>
    %c4 = arith.constant 4 : index
    %c0_25 = arith.constant 0 : index
    %56 = vector.load %arg7[%c4, %c0_25] : memref<34x128xf32, #tpu.memory_space<vmem>>, vector<1x128xf32>
    %c5 = arith.constant 5 : index
    %c0_26 = arith.constant 0 : index
    %57 = vector.load %arg7[%c5, %c0_26] : memref<34x128xf32, #tpu.memory_space<vmem>>, vector<1x128xf32>
    %cst_27 = arith.constant dense<0.000000e+00> : vector<128xf32>
    %58 = vector.multi_reduction <add>, %55, %cst_27 [0] : vector<98x128xf32> to vector<128xf32>
    %59 = vector.shape_cast %58 : vector<128xf32> to vector<1x128xf32>
    %60 = arith.truncf %59 : vector<1x128xf32> to vector<1x128xbf16>
    %61 = arith.extf %60 : vector<1x128xbf16> to vector<1x128xf32>
    %62 = arith.subf %59, %61 : vector<1x128xf32>
    %63 = arith.truncf %62 : vector<1x128xf32> to vector<1x128xbf16>
    %cst_28 = arith.constant dense<0.000000e+00> : vector<1x128xf32>
    %64 = tpu.matmul %60, %0, %cst_28 {dimension_numbers = #tpu.dot_dimension_numbers<[1], [0], [0], [1], [0, 0, 1, 1], [], []>} : vector<1x128xbf16>, vector<128x128xbf16>, vector<1x128xf32> -> vector<1x128xf32>
    %cst_29 = arith.constant dense<0.000000e+00> : vector<1x128xf32>
    %65 = tpu.matmul %63, %0, %cst_29 {dimension_numbers = #tpu.dot_dimension_numbers<[1], [0], [0], [1], [0, 0, 1, 1], [], []>} : vector<1x128xbf16>, vector<128x128xbf16>, vector<1x128xf32> -> vector<1x128xf32>
    %66 = arith.addf %64, %65 : vector<1x128xf32>
    %cst_30 = arith.constant 0.00204081624 : f32
    %67 = vector.broadcast %cst_30 : f32 to vector<1x128xf32>
    %68 = arith.mulf %66, %67 : vector<1x128xf32>
    %69 = arith.mulf %55, %55 : vector<98x128xf32>
    %cst_31 = arith.constant dense<0.000000e+00> : vector<128xf32>
    %70 = vector.multi_reduction <add>, %69, %cst_31 [0] : vector<98x128xf32> to vector<128xf32>
    %71 = vector.shape_cast %70 : vector<128xf32> to vector<1x128xf32>
    %72 = arith.truncf %71 : vector<1x128xf32> to vector<1x128xbf16>
    %73 = arith.extf %72 : vector<1x128xbf16> to vector<1x128xf32>
    %74 = arith.subf %71, %73 : vector<1x128xf32>
    %75 = arith.truncf %74 : vector<1x128xf32> to vector<1x128xbf16>
    %cst_32 = arith.constant dense<0.000000e+00> : vector<1x128xf32>
    %76 = tpu.matmul %72, %0, %cst_32 {dimension_numbers = #tpu.dot_dimension_numbers<[1], [0], [0], [1], [0, 0, 1, 1], [], []>} : vector<1x128xbf16>, vector<128x128xbf16>, vector<1x128xf32> -> vector<1x128xf32>
    %cst_33 = arith.constant dense<0.000000e+00> : vector<1x128xf32>
    %77 = tpu.matmul %75, %0, %cst_33 {dimension_numbers = #tpu.dot_dimension_numbers<[1], [0], [0], [1], [0, 0, 1, 1], [], []>} : vector<1x128xbf16>, vector<128x128xbf16>, vector<1x128xf32> -> vector<1x128xf32>
    %78 = arith.addf %76, %77 : vector<1x128xf32>
    %cst_34 = arith.constant 0.00204081624 : f32
    %79 = vector.broadcast %cst_34 : f32 to vector<1x128xf32>
    %80 = arith.mulf %78, %79 : vector<1x128xf32>
    %81 = arith.mulf %68, %68 : vector<1x128xf32>
    %82 = arith.subf %80, %81 : vector<1x128xf32>
    %cst_35 = arith.constant 9.99999974E-6 : f32
    %83 = vector.broadcast %cst_35 : f32 to vector<1x128xf32>
    %84 = arith.addf %82, %83 : vector<1x128xf32>
    %85 = math.rsqrt %84 : vector<1x128xf32>
    %86 = arith.mulf %56, %85 : vector<1x128xf32>
    %87 = vector.broadcast %68 : vector<1x128xf32> to vector<98x128xf32>
    %88 = arith.subf %55, %87 : vector<98x128xf32>
    %89 = vector.broadcast %86 : vector<1x128xf32> to vector<98x128xf32>
    %90 = arith.mulf %88, %89 : vector<98x128xf32>
    %91 = vector.broadcast %57 : vector<1x128xf32> to vector<98x128xf32>
    %92 = arith.addf %90, %91 : vector<98x128xf32>
    %cst_36 = arith.constant 0.000000e+00 : f32
    %93 = vector.broadcast %cst_36 : f32 to vector<98x128xf32>
    %94 = arith.maximumf %92, %93 : vector<98x128xf32>
    %c1_37 = arith.constant 1 : index
    %c0_38 = arith.constant 0 : index
    %c0_39 = arith.constant 0 : index
    %95 = vector.load %arg2[%c1_37, %c0_38, %c0_39] : memref<4x128x128xbf16, #tpu.memory_space<vmem>>, vector<1x128x128xbf16>
    %96 = vector.shape_cast %95 : vector<1x128x128xbf16> to vector<128x128xbf16>
    %97 = arith.truncf %94 : vector<98x128xf32> to vector<98x128xbf16>
    %cst_40 = arith.constant dense<0.000000e+00> : vector<98x128xf32>
    %98 = tpu.matmul %97, %96, %cst_40 {dimension_numbers = #tpu.dot_dimension_numbers<[1], [0], [0], [1], [0, 0, 1, 1], [], []>} : vector<98x128xbf16>, vector<128x128xbf16>, vector<98x128xf32> -> vector<98x128xf32>
    %c6 = arith.constant 6 : index
    %c0_41 = arith.constant 0 : index
    %99 = vector.load %arg7[%c6, %c0_41] : memref<34x128xf32, #tpu.memory_space<vmem>>, vector<1x128xf32>
    %100 = vector.broadcast %99 : vector<1x128xf32> to vector<98x128xf32>
    %101 = arith.addf %98, %100 : vector<98x128xf32>
    %c7 = arith.constant 7 : index
    %c0_42 = arith.constant 0 : index
    %102 = vector.load %arg7[%c7, %c0_42] : memref<34x128xf32, #tpu.memory_space<vmem>>, vector<1x128xf32>
    %c8 = arith.constant 8 : index
    %c0_43 = arith.constant 0 : index
    %103 = vector.load %arg7[%c8, %c0_43] : memref<34x128xf32, #tpu.memory_space<vmem>>, vector<1x128xf32>
    %cst_44 = arith.constant dense<0.000000e+00> : vector<128xf32>
    %104 = vector.multi_reduction <add>, %101, %cst_44 [0] : vector<98x128xf32> to vector<128xf32>
    %105 = vector.shape_cast %104 : vector<128xf32> to vector<1x128xf32>
    %106 = arith.truncf %105 : vector<1x128xf32> to vector<1x128xbf16>
    %107 = arith.extf %106 : vector<1x128xbf16> to vector<1x128xf32>
    %108 = arith.subf %105, %107 : vector<1x128xf32>
    %109 = arith.truncf %108 : vector<1x128xf32> to vector<1x128xbf16>
    %cst_45 = arith.constant dense<0.000000e+00> : vector<1x128xf32>
    %110 = tpu.matmul %106, %0, %cst_45 {dimension_numbers = #tpu.dot_dimension_numbers<[1], [0], [0], [1], [0, 0, 1, 1], [], []>} : vector<1x128xbf16>, vector<128x128xbf16>, vector<1x128xf32> -> vector<1x128xf32>
    %cst_46 = arith.constant dense<0.000000e+00> : vector<1x128xf32>
    %111 = tpu.matmul %109, %0, %cst_46 {dimension_numbers = #tpu.dot_dimension_numbers<[1], [0], [0], [1], [0, 0, 1, 1], [], []>} : vector<1x128xbf16>, vector<128x128xbf16>, vector<1x128xf32> -> vector<1x128xf32>
    %112 = arith.addf %110, %111 : vector<1x128xf32>
    %cst_47 = arith.constant 0.00204081624 : f32
    %113 = vector.broadcast %cst_47 : f32 to vector<1x128xf32>
    %114 = arith.mulf %112, %113 : vector<1x128xf32>
    %115 = arith.mulf %101, %101 : vector<98x128xf32>
    %cst_48 = arith.constant dense<0.000000e+00> : vector<128xf32>
    %116 = vector.multi_reduction <add>, %115, %cst_48 [0] : vector<98x128xf32> to vector<128xf32>
    %117 = vector.shape_cast %116 : vector<128xf32> to vector<1x128xf32>
    %118 = arith.truncf %117 : vector<1x128xf32> to vector<1x128xbf16>
    %119 = arith.extf %118 : vector<1x128xbf16> to vector<1x128xf32>
    %120 = arith.subf %117, %119 : vector<1x128xf32>
    %121 = arith.truncf %120 : vector<1x128xf32> to vector<1x128xbf16>
    %cst_49 = arith.constant dense<0.000000e+00> : vector<1x128xf32>
    %122 = tpu.matmul %118, %0, %cst_49 {dimension_numbers = #tpu.dot_dimension_numbers<[1], [0], [0], [1], [0, 0, 1, 1], [], []>} : vector<1x128xbf16>, vector<128x128xbf16>, vector<1x128xf32> -> vector<1x128xf32>
    %cst_50 = arith.constant dense<0.000000e+00> : vector<1x128xf32>
    %123 = tpu.matmul %121, %0, %cst_50 {dimension_numbers = #tpu.dot_dimension_numbers<[1], [0], [0], [1], [0, 0, 1, 1], [], []>} : vector<1x128xbf16>, vector<128x128xbf16>, vector<1x128xf32> -> vector<1x128xf32>
    %124 = arith.addf %122, %123 : vector<1x128xf32>
    %cst_51 = arith.constant 0.00204081624 : f32
    %125 = vector.broadcast %cst_51 : f32 to vector<1x128xf32>
    %126 = arith.mulf %124, %125 : vector<1x128xf32>
    %127 = arith.mulf %114, %114 : vector<1x128xf32>
    %128 = arith.subf %126, %127 : vector<1x128xf32>
    %cst_52 = arith.constant 9.99999974E-6 : f32
    %129 = vector.broadcast %cst_52 : f32 to vector<1x128xf32>
    %130 = arith.addf %128, %129 : vector<1x128xf32>
    %131 = math.rsqrt %130 : vector<1x128xf32>
    %132 = arith.mulf %102, %131 : vector<1x128xf32>
    %133 = vector.broadcast %114 : vector<1x128xf32> to vector<98x128xf32>
    %134 = arith.subf %101, %133 : vector<98x128xf32>
    %135 = vector.broadcast %132 : vector<1x128xf32> to vector<98x128xf32>
    %136 = arith.mulf %134, %135 : vector<98x128xf32>
    %137 = vector.broadcast %103 : vector<1x128xf32> to vector<98x128xf32>
    %138 = arith.addf %136, %137 : vector<98x128xf32>
    %139 = arith.addf %138, %46 : vector<98x128xf32>
    %cst_53 = arith.constant 0.000000e+00 : f32
    %140 = vector.broadcast %cst_53 : f32 to vector<98x128xf32>
    %141 = arith.maximumf %139, %140 : vector<98x128xf32>
    %c2_54 = arith.constant 2 : index
    %c0_55 = arith.constant 0 : index
    %c0_56 = arith.constant 0 : index
    %142 = vector.load %arg2[%c2_54, %c0_55, %c0_56] : memref<4x128x128xbf16, #tpu.memory_space<vmem>>, vector<1x128x128xbf16>
    %143 = vector.shape_cast %142 : vector<1x128x128xbf16> to vector<128x128xbf16>
    %144 = arith.truncf %141 : vector<98x128xf32> to vector<98x128xbf16>
    %cst_57 = arith.constant dense<0.000000e+00> : vector<98x128xf32>
    %145 = tpu.matmul %144, %143, %cst_57 {dimension_numbers = #tpu.dot_dimension_numbers<[1], [0], [0], [1], [0, 0, 1, 1], [], []>} : vector<98x128xbf16>, vector<128x128xbf16>, vector<98x128xf32> -> vector<98x128xf32>
    %c9 = arith.constant 9 : index
    %c0_58 = arith.constant 0 : index
    %146 = vector.load %arg7[%c9, %c0_58] : memref<34x128xf32, #tpu.memory_space<vmem>>, vector<1x128xf32>
    %147 = vector.broadcast %146 : vector<1x128xf32> to vector<98x128xf32>
    %148 = arith.addf %145, %147 : vector<98x128xf32>
    %cst_59 = arith.constant 0.000000e+00 : f32
    %149 = vector.broadcast %cst_59 : f32 to vector<98x128xf32>
    %150 = arith.maximumf %148, %149 : vector<98x128xf32>
    %c10 = arith.constant 10 : index
    %c0_60 = arith.constant 0 : index
    %151 = vector.load %arg7[%c10, %c0_60] : memref<34x128xf32, #tpu.memory_space<vmem>>, vector<1x128xf32>
    %c11 = arith.constant 11 : index
    %c0_61 = arith.constant 0 : index
    %152 = vector.load %arg7[%c11, %c0_61] : memref<34x128xf32, #tpu.memory_space<vmem>>, vector<1x128xf32>
    %cst_62 = arith.constant dense<0.000000e+00> : vector<128xf32>
    %153 = vector.multi_reduction <add>, %150, %cst_62 [0] : vector<98x128xf32> to vector<128xf32>
    %154 = vector.shape_cast %153 : vector<128xf32> to vector<1x128xf32>
    %155 = arith.truncf %154 : vector<1x128xf32> to vector<1x128xbf16>
    %156 = arith.extf %155 : vector<1x128xbf16> to vector<1x128xf32>
    %157 = arith.subf %154, %156 : vector<1x128xf32>
    %158 = arith.truncf %157 : vector<1x128xf32> to vector<1x128xbf16>
    %cst_63 = arith.constant dense<0.000000e+00> : vector<1x128xf32>
    %159 = tpu.matmul %155, %0, %cst_63 {dimension_numbers = #tpu.dot_dimension_numbers<[1], [0], [0], [1], [0, 0, 1, 1], [], []>} : vector<1x128xbf16>, vector<128x128xbf16>, vector<1x128xf32> -> vector<1x128xf32>
    %cst_64 = arith.constant dense<0.000000e+00> : vector<1x128xf32>
    %160 = tpu.matmul %158, %0, %cst_64 {dimension_numbers = #tpu.dot_dimension_numbers<[1], [0], [0], [1], [0, 0, 1, 1], [], []>} : vector<1x128xbf16>, vector<128x128xbf16>, vector<1x128xf32> -> vector<1x128xf32>
    %161 = arith.addf %159, %160 : vector<1x128xf32>
    %cst_65 = arith.constant 0.00204081624 : f32
    %162 = vector.broadcast %cst_65 : f32 to vector<1x128xf32>
    %163 = arith.mulf %161, %162 : vector<1x128xf32>
    %164 = arith.mulf %150, %150 : vector<98x128xf32>
    %cst_66 = arith.constant dense<0.000000e+00> : vector<128xf32>
    %165 = vector.multi_reduction <add>, %164, %cst_66 [0] : vector<98x128xf32> to vector<128xf32>
    %166 = vector.shape_cast %165 : vector<128xf32> to vector<1x128xf32>
    %167 = arith.truncf %166 : vector<1x128xf32> to vector<1x128xbf16>
    %168 = arith.extf %167 : vector<1x128xbf16> to vector<1x128xf32>
    %169 = arith.subf %166, %168 : vector<1x128xf32>
    %170 = arith.truncf %169 : vector<1x128xf32> to vector<1x128xbf16>
    %cst_67 = arith.constant dense<0.000000e+00> : vector<1x128xf32>
    %171 = tpu.matmul %167, %0, %cst_67 {dimension_numbers = #tpu.dot_dimension_numbers<[1], [0], [0], [1], [0, 0, 1, 1], [], []>} : vector<1x128xbf16>, vector<128x128xbf16>, vector<1x128xf32> -> vector<1x128xf32>
    %cst_68 = arith.constant dense<0.000000e+00> : vector<1x128xf32>
    %172 = tpu.matmul %170, %0, %cst_68 {dimension_numbers = #tpu.dot_dimension_numbers<[1], [0], [0], [1], [0, 0, 1, 1], [], []>} : vector<1x128xbf16>, vector<128x128xbf16>, vector<1x128xf32> -> vector<1x128xf32>
    %173 = arith.addf %171, %172 : vector<1x128xf32>
    %cst_69 = arith.constant 0.00204081624 : f32
    %174 = vector.broadcast %cst_69 : f32 to vector<1x128xf32>
    %175 = arith.mulf %173, %174 : vector<1x128xf32>
    %176 = arith.mulf %163, %163 : vector<1x128xf32>
    %177 = arith.subf %175, %176 : vector<1x128xf32>
    %cst_70 = arith.constant 9.99999974E-6 : f32
    %178 = vector.broadcast %cst_70 : f32 to vector<1x128xf32>
    %179 = arith.addf %177, %178 : vector<1x128xf32>
    %180 = math.rsqrt %179 : vector<1x128xf32>
    %181 = arith.mulf %151, %180 : vector<1x128xf32>
    %182 = vector.broadcast %163 : vector<1x128xf32> to vector<98x128xf32>
    %183 = arith.subf %150, %182 : vector<98x128xf32>
    %184 = vector.broadcast %181 : vector<1x128xf32> to vector<98x128xf32>
    %185 = arith.mulf %183, %184 : vector<98x128xf32>
    %186 = vector.broadcast %152 : vector<1x128xf32> to vector<98x128xf32>
    %187 = arith.addf %185, %186 : vector<98x128xf32>
    %cst_71 = arith.constant 0.000000e+00 : f32
    %188 = vector.broadcast %cst_71 : f32 to vector<98x128xf32>
    %189 = arith.maximumf %187, %188 : vector<98x128xf32>
    %c3_72 = arith.constant 3 : index
    %c0_73 = arith.constant 0 : index
    %c0_74 = arith.constant 0 : index
    %190 = vector.load %arg2[%c3_72, %c0_73, %c0_74] : memref<4x128x128xbf16, #tpu.memory_space<vmem>>, vector<1x128x128xbf16>
    %191 = vector.shape_cast %190 : vector<1x128x128xbf16> to vector<128x128xbf16>
    %192 = arith.truncf %189 : vector<98x128xf32> to vector<98x128xbf16>
    %cst_75 = arith.constant dense<0.000000e+00> : vector<98x128xf32>
    %193 = tpu.matmul %192, %191, %cst_75 {dimension_numbers = #tpu.dot_dimension_numbers<[1], [0], [0], [1], [0, 0, 1, 1], [], []>} : vector<98x128xbf16>, vector<128x128xbf16>, vector<98x128xf32> -> vector<98x128xf32>
    %c12 = arith.constant 12 : index
    %c0_76 = arith.constant 0 : index
    %194 = vector.load %arg7[%c12, %c0_76] : memref<34x128xf32, #tpu.memory_space<vmem>>, vector<1x128xf32>
    %195 = vector.broadcast %194 : vector<1x128xf32> to vector<98x128xf32>
    %196 = arith.addf %193, %195 : vector<98x128xf32>
    %c13 = arith.constant 13 : index
    %c0_77 = arith.constant 0 : index
    %197 = vector.load %arg7[%c13, %c0_77] : memref<34x128xf32, #tpu.memory_space<vmem>>, vector<1x128xf32>
    %c14 = arith.constant 14 : index
    %c0_78 = arith.constant 0 : index
    %198 = vector.load %arg7[%c14, %c0_78] : memref<34x128xf32, #tpu.memory_space<vmem>>, vector<1x128xf32>
    %cst_79 = arith.constant dense<0.000000e+00> : vector<128xf32>
    %199 = vector.multi_reduction <add>, %196, %cst_79 [0] : vector<98x128xf32> to vector<128xf32>
    %200 = vector.shape_cast %199 : vector<128xf32> to vector<1x128xf32>
    %201 = arith.truncf %200 : vector<1x128xf32> to vector<1x128xbf16>
    %202 = arith.extf %201 : vector<1x128xbf16> to vector<1x128xf32>
    %203 = arith.subf %200, %202 : vector<1x128xf32>
    %204 = arith.truncf %203 : vector<1x128xf32> to vector<1x128xbf16>
    %cst_80 = arith.constant dense<0.000000e+00> : vector<1x128xf32>
    %205 = tpu.matmul %201, %0, %cst_80 {dimension_numbers = #tpu.dot_dimension_numbers<[1], [0], [0], [1], [0, 0, 1, 1], [], []>} : vector<1x128xbf16>, vector<128x128xbf16>, vector<1x128xf32> -> vector<1x128xf32>
    %cst_81 = arith.constant dense<0.000000e+00> : vector<1x128xf32>
    %206 = tpu.matmul %204, %0, %cst_81 {dimension_numbers = #tpu.dot_dimension_numbers<[1], [0], [0], [1], [0, 0, 1, 1], [], []>} : vector<1x128xbf16>, vector<128x128xbf16>, vector<1x128xf32> -> vector<1x128xf32>
    %207 = arith.addf %205, %206 : vector<1x128xf32>
    %cst_82 = arith.constant 0.00204081624 : f32
    %208 = vector.broadcast %cst_82 : f32 to vector<1x128xf32>
    %209 = arith.mulf %207, %208 : vector<1x128xf32>
    %210 = arith.mulf %196, %196 : vector<98x128xf32>
    %cst_83 = arith.constant dense<0.000000e+00> : vector<128xf32>
    %211 = vector.multi_reduction <add>, %210, %cst_83 [0] : vector<98x128xf32> to vector<128xf32>
    %212 = vector.shape_cast %211 : vector<128xf32> to vector<1x128xf32>
    %213 = arith.truncf %212 : vector<1x128xf32> to vector<1x128xbf16>
    %214 = arith.extf %213 : vector<1x128xbf16> to vector<1x128xf32>
    %215 = arith.subf %212, %214 : vector<1x128xf32>
    %216 = arith.truncf %215 : vector<1x128xf32> to vector<1x128xbf16>
    %cst_84 = arith.constant dense<0.000000e+00> : vector<1x128xf32>
    %217 = tpu.matmul %213, %0, %cst_84 {dimension_numbers = #tpu.dot_dimension_numbers<[1], [0], [0], [1], [0, 0, 1, 1], [], []>} : vector<1x128xbf16>, vector<128x128xbf16>, vector<1x128xf32> -> vector<1x128xf32>
    %cst_85 = arith.constant dense<0.000000e+00> : vector<1x128xf32>
    %218 = tpu.matmul %216, %0, %cst_85 {dimension_numbers = #tpu.dot_dimension_numbers<[1], [0], [0], [1], [0, 0, 1, 1], [], []>} : vector<1x128xbf16>, vector<128x128xbf16>, vector<1x128xf32> -> vector<1x128xf32>
    %219 = arith.addf %217, %218 : vector<1x128xf32>
    %cst_86 = arith.constant 0.00204081624 : f32
    %220 = vector.broadcast %cst_86 : f32 to vector<1x128xf32>
    %221 = arith.mulf %219, %220 : vector<1x128xf32>
    %222 = arith.mulf %209, %209 : vector<1x128xf32>
    %223 = arith.subf %221, %222 : vector<1x128xf32>
    %cst_87 = arith.constant 9.99999974E-6 : f32
    %224 = vector.broadcast %cst_87 : f32 to vector<1x128xf32>
    %225 = arith.addf %223, %224 : vector<1x128xf32>
    %226 = math.rsqrt %225 : vector<1x128xf32>
    %227 = arith.mulf %197, %226 : vector<1x128xf32>
    %228 = vector.broadcast %209 : vector<1x128xf32> to vector<98x128xf32>
    %229 = arith.subf %196, %228 : vector<98x128xf32>
    %230 = vector.broadcast %227 : vector<1x128xf32> to vector<98x128xf32>
    %231 = arith.mulf %229, %230 : vector<98x128xf32>
    %232 = vector.broadcast %198 : vector<1x128xf32> to vector<98x128xf32>
    %233 = arith.addf %231, %232 : vector<98x128xf32>
    %234 = arith.addf %233, %141 : vector<98x128xf32>
    %cst_88 = arith.constant 0.000000e+00 : f32
    %235 = vector.broadcast %cst_88 : f32 to vector<98x128xf32>
    %236 = arith.maximumf %234, %235 : vector<98x128xf32>
    %c0_89 = arith.constant 0 : index
    %c0_90 = arith.constant 0 : index
    %237 = vector.load %arg3[%c0_89, %c0_90] : memref<128x128xbf16, #tpu.memory_space<vmem>>, vector<128x128xbf16>
    %238 = arith.truncf %236 : vector<98x128xf32> to vector<98x128xbf16>
    %cst_91 = arith.constant dense<0.000000e+00> : vector<98x128xf32>
    %239 = tpu.matmul %238, %237, %cst_91 {dimension_numbers = #tpu.dot_dimension_numbers<[1], [0], [0], [1], [0, 0, 1, 1], [], []>} : vector<98x128xbf16>, vector<128x128xbf16>, vector<98x128xf32> -> vector<98x128xf32>
    %c15 = arith.constant 15 : index
    %c0_92 = arith.constant 0 : index
    %240 = vector.load %arg7[%c15, %c0_92] : memref<34x128xf32, #tpu.memory_space<vmem>>, vector<1x128xf32>
    %241 = vector.broadcast %240 : vector<1x128xf32> to vector<98x128xf32>
    %242 = arith.addf %239, %241 : vector<98x128xf32>
    %c16 = arith.constant 16 : index
    %c0_93 = arith.constant 0 : index
    %243 = vector.load %arg7[%c16, %c0_93] : memref<34x128xf32, #tpu.memory_space<vmem>>, vector<1x128xf32>
    %c17 = arith.constant 17 : index
    %c0_94 = arith.constant 0 : index
    %244 = vector.load %arg7[%c17, %c0_94] : memref<34x128xf32, #tpu.memory_space<vmem>>, vector<1x128xf32>
    %cst_95 = arith.constant dense<0.000000e+00> : vector<128xf32>
    %245 = vector.multi_reduction <add>, %242, %cst_95 [0] : vector<98x128xf32> to vector<128xf32>
    %246 = vector.shape_cast %245 : vector<128xf32> to vector<1x128xf32>
    %cst_96 = arith.constant 0.0102040814 : f32
    %247 = vector.broadcast %cst_96 : f32 to vector<1x128xf32>
    %248 = arith.mulf %246, %247 : vector<1x128xf32>
    %249 = arith.mulf %242, %242 : vector<98x128xf32>
    %cst_97 = arith.constant dense<0.000000e+00> : vector<128xf32>
    %250 = vector.multi_reduction <add>, %249, %cst_97 [0] : vector<98x128xf32> to vector<128xf32>
    %251 = vector.shape_cast %250 : vector<128xf32> to vector<1x128xf32>
    %cst_98 = arith.constant 0.0102040814 : f32
    %252 = vector.broadcast %cst_98 : f32 to vector<1x128xf32>
    %253 = arith.mulf %251, %252 : vector<1x128xf32>
    %254 = arith.mulf %248, %248 : vector<1x128xf32>
    %255 = arith.subf %253, %254 : vector<1x128xf32>
    %cst_99 = arith.constant 1.000000e-03 : f32
    %256 = vector.broadcast %cst_99 : f32 to vector<1x128xf32>
    %257 = arith.addf %255, %256 : vector<1x128xf32>
    %258 = math.rsqrt %257 : vector<1x128xf32>
    %259 = arith.mulf %243, %258 : vector<1x128xf32>
    %260 = vector.broadcast %248 : vector<1x128xf32> to vector<98x128xf32>
    %261 = arith.subf %242, %260 : vector<98x128xf32>
    %262 = vector.broadcast %259 : vector<1x128xf32> to vector<98x128xf32>
    %263 = arith.mulf %261, %262 : vector<98x128xf32>
    %264 = vector.broadcast %244 : vector<1x128xf32> to vector<98x128xf32>
    %265 = arith.addf %263, %264 : vector<98x128xf32>
    %cst_100 = arith.constant 0.000000e+00 : f32
    %266 = vector.broadcast %cst_100 : f32 to vector<98x128xf32>
    %267 = arith.maximumf %265, %266 : vector<98x128xf32>
    %c0_101 = arith.constant 0 : index
    %c0_102 = arith.constant 0 : index
    %268 = vector.load %arg10[%c0_101, %c0_102] : memref<98x128xf32, #tpu.memory_space<vmem>>, vector<98x128xf32>
    tpu.vector_store %arg10[%c0_101, %c0_102], %267 {strides = array<i32>} : memref<98x128xf32, #tpu.memory_space<vmem>>, vector<98x128xf32>,
    %c18 = arith.constant 18 : index
    %c0_103 = arith.constant 0 : index
    %269 = vector.load %arg7[%c18, %c0_103] : memref<34x128xf32, #tpu.memory_space<vmem>>, vector<1x128xf32>
    %c0_104 = arith.constant 0 : index
    %c0_105 = arith.constant 0 : index
    %270 = vector.load %arg10[%c0_104, %c0_105] : memref<98x128xf32, #tpu.memory_space<vmem>>, vector<10x128xf32>
    %c14_106 = arith.constant 14 : index
    %c0_107 = arith.constant 0 : index
    %271 = vector.load %arg10[%c14_106, %c0_107] : memref<98x128xf32, #tpu.memory_space<vmem>>, vector<10x128xf32>
    %c28 = arith.constant 28 : index
    %c0_108 = arith.constant 0 : index
    %272 = vector.load %arg10[%c28, %c0_108] : memref<98x128xf32, #tpu.memory_space<vmem>>, vector<10x128xf32>
    %c42 = arith.constant 42 : index
    %c0_109 = arith.constant 0 : index
    %273 = vector.load %arg10[%c42, %c0_109] : memref<98x128xf32, #tpu.memory_space<vmem>>, vector<10x128xf32>
    %c56 = arith.constant 56 : index
    %c0_110 = arith.constant 0 : index
    %274 = vector.load %arg10[%c56, %c0_110] : memref<98x128xf32, #tpu.memory_space<vmem>>, vector<10x128xf32>
    %c70 = arith.constant 70 : index
    %c0_111 = arith.constant 0 : index
    %275 = vector.load %arg10[%c70, %c0_111] : memref<98x128xf32, #tpu.memory_space<vmem>>, vector<10x128xf32>
    %c84 = arith.constant 84 : index
    %c0_112 = arith.constant 0 : index
    %276 = vector.load %arg10[%c84, %c0_112] : memref<98x128xf32, #tpu.memory_space<vmem>>, vector<10x128xf32>
    %277 = tpu.concatenate %270, %271, %272, %273, %274, %275, %276 in 1 : vector<10x128xf32>, vector<10x128xf32>, vector<10x128xf32>, vector<10x128xf32>, vector<10x128xf32>, vector<10x128xf32>, vector<10x128xf32> -> vector<10x896xf32>
    %c0_113 = arith.constant 0 : index
    %c0_114 = arith.constant 0 : index
    %c0_115 = arith.constant 0 : index
    %278 = vector.load %arg4[%c0_113, %c0_114, %c0_115] : memref<3x896x128xbf16, #tpu.memory_space<vmem>>, vector<1x896x128xbf16>
    %279 = vector.shape_cast %278 : vector<1x896x128xbf16> to vector<896x128xbf16>
    %280 = arith.truncf %277 : vector<10x896xf32> to vector<10x896xbf16>
    %cst_116 = arith.constant dense<0.000000e+00> : vector<10x128xf32>
    %281 = tpu.matmul %280, %279, %cst_116 {dimension_numbers = #tpu.dot_dimension_numbers<[1], [0], [0], [1], [0, 0, 1, 1], [], []>} : vector<10x896xbf16>, vector<896x128xbf16>, vector<10x128xf32> -> vector<10x128xf32>
    %282 = vector.broadcast %269 : vector<1x128xf32> to vector<10x128xf32>
    %283 = arith.addf %282, %281 : vector<10x128xf32>
    %c2_117 = arith.constant 2 : index
    %c0_118 = arith.constant 0 : index
    %284 = vector.load %arg10[%c2_117, %c0_118] : memref<98x128xf32, #tpu.memory_space<vmem>>, vector<10x128xf32>
    %c16_119 = arith.constant 16 : index
    %c0_120 = arith.constant 0 : index
    %285 = vector.load %arg10[%c16_119, %c0_120] : memref<98x128xf32, #tpu.memory_space<vmem>>, vector<10x128xf32>
    %c30 = arith.constant 30 : index
    %c0_121 = arith.constant 0 : index
    %286 = vector.load %arg10[%c30, %c0_121] : memref<98x128xf32, #tpu.memory_space<vmem>>, vector<10x128xf32>
    %c44 = arith.constant 44 : index
    %c0_122 = arith.constant 0 : index
    %287 = vector.load %arg10[%c44, %c0_122] : memref<98x128xf32, #tpu.memory_space<vmem>>, vector<10x128xf32>
    %c58 = arith.constant 58 : index
    %c0_123 = arith.constant 0 : index
    %288 = vector.load %arg10[%c58, %c0_123] : memref<98x128xf32, #tpu.memory_space<vmem>>, vector<10x128xf32>
    %c72 = arith.constant 72 : index
    %c0_124 = arith.constant 0 : index
    %289 = vector.load %arg10[%c72, %c0_124] : memref<98x128xf32, #tpu.memory_space<vmem>>, vector<10x128xf32>
    %c86 = arith.constant 86 : index
    %c0_125 = arith.constant 0 : index
    %290 = vector.load %arg10[%c86, %c0_125] : memref<98x128xf32, #tpu.memory_space<vmem>>, vector<10x128xf32>
    %291 = tpu.concatenate %284, %285, %286, %287, %288, %289, %290 in 1 : vector<10x128xf32>, vector<10x128xf32>, vector<10x128xf32>, vector<10x128xf32>, vector<10x128xf32>, vector<10x128xf32>, vector<10x128xf32> -> vector<10x896xf32>
    %c1_126 = arith.constant 1 : index
    %c0_127 = arith.constant 0 : index
    %c0_128 = arith.constant 0 : index
    %292 = vector.load %arg4[%c1_126, %c0_127, %c0_128] : memref<3x896x128xbf16, #tpu.memory_space<vmem>>, vector<1x896x128xbf16>
    %293 = vector.shape_cast %292 : vector<1x896x128xbf16> to vector<896x128xbf16>
    %294 = arith.truncf %291 : vector<10x896xf32> to vector<10x896xbf16>
    %cst_129 = arith.constant dense<0.000000e+00> : vector<10x128xf32>
    %295 = tpu.matmul %294, %293, %cst_129 {dimension_numbers = #tpu.dot_dimension_numbers<[1], [0], [0], [1], [0, 0, 1, 1], [], []>} : vector<10x896xbf16>, vector<896x128xbf16>, vector<10x128xf32> -> vector<10x128xf32>
    %296 = arith.addf %283, %295 : vector<10x128xf32>
    %c4_130 = arith.constant 4 : index
    %c0_131 = arith.constant 0 : index
    %297 = vector.load %arg10[%c4_130, %c0_131] : memref<98x128xf32, #tpu.memory_space<vmem>>, vector<10x128xf32>
    %c18_132 = arith.constant 18 : index
    %c0_133 = arith.constant 0 : index
    %298 = vector.load %arg10[%c18_132, %c0_133] : memref<98x128xf32, #tpu.memory_space<vmem>>, vector<10x128xf32>
    %c32 = arith.constant 32 : index
    %c0_134 = arith.constant 0 : index
    %299 = vector.load %arg10[%c32, %c0_134] : memref<98x128xf32, #tpu.memory_space<vmem>>, vector<10x128xf32>
    %c46 = arith.constant 46 : index
    %c0_135 = arith.constant 0 : index
    %300 = vector.load %arg10[%c46, %c0_135] : memref<98x128xf32, #tpu.memory_space<vmem>>, vector<10x128xf32>
    %c60 = arith.constant 60 : index
    %c0_136 = arith.constant 0 : index
    %301 = vector.load %arg10[%c60, %c0_136] : memref<98x128xf32, #tpu.memory_space<vmem>>, vector<10x128xf32>
    %c74 = arith.constant 74 : index
    %c0_137 = arith.constant 0 : index
    %302 = vector.load %arg10[%c74, %c0_137] : memref<98x128xf32, #tpu.memory_space<vmem>>, vector<10x128xf32>
    %c88 = arith.constant 88 : index
    %c0_138 = arith.constant 0 : index
    %303 = vector.load %arg10[%c88, %c0_138] : memref<98x128xf32, #tpu.memory_space<vmem>>, vector<10x128xf32>
    %304 = tpu.concatenate %297, %298, %299, %300, %301, %302, %303 in 1 : vector<10x128xf32>, vector<10x128xf32>, vector<10x128xf32>, vector<10x128xf32>, vector<10x128xf32>, vector<10x128xf32>, vector<10x128xf32> -> vector<10x896xf32>
    %c2_139 = arith.constant 2 : index
    %c0_140 = arith.constant 0 : index
    %c0_141 = arith.constant 0 : index
    %305 = vector.load %arg4[%c2_139, %c0_140, %c0_141] : memref<3x896x128xbf16, #tpu.memory_space<vmem>>, vector<1x896x128xbf16>
    %306 = vector.shape_cast %305 : vector<1x896x128xbf16> to vector<896x128xbf16>
    %307 = arith.truncf %304 : vector<10x896xf32> to vector<10x896xbf16>
    %cst_142 = arith.constant dense<0.000000e+00> : vector<10x128xf32>
    %308 = tpu.matmul %307, %306, %cst_142 {dimension_numbers = #tpu.dot_dimension_numbers<[1], [0], [0], [1], [0, 0, 1, 1], [], []>} : vector<10x896xbf16>, vector<896x128xbf16>, vector<10x128xf32> -> vector<10x128xf32>
    %309 = arith.addf %296, %308 : vector<10x128xf32>
    %c19 = arith.constant 19 : index
    %c0_143 = arith.constant 0 : index
    %310 = vector.load %arg7[%c19, %c0_143] : memref<34x128xf32, #tpu.memory_space<vmem>>, vector<1x128xf32>
    %c20 = arith.constant 20 : index
    %c0_144 = arith.constant 0 : index
    %311 = vector.load %arg7[%c20, %c0_144] : memref<34x128xf32, #tpu.memory_space<vmem>>, vector<1x128xf32>
    %cst_145 = arith.constant dense<0.000000e+00> : vector<128xf32>
    %312 = vector.multi_reduction <add>, %309, %cst_145 [0] : vector<10x128xf32> to vector<128xf32>
    %313 = vector.shape_cast %312 : vector<128xf32> to vector<1x128xf32>
    %314 = arith.truncf %313 : vector<1x128xf32> to vector<1x128xbf16>
    %315 = arith.extf %314 : vector<1x128xbf16> to vector<1x128xf32>
    %316 = arith.subf %313, %315 : vector<1x128xf32>
    %317 = arith.truncf %316 : vector<1x128xf32> to vector<1x128xbf16>
    %cst_146 = arith.constant dense<0.000000e+00> : vector<1x128xf32>
    %318 = tpu.matmul %314, %0, %cst_146 {dimension_numbers = #tpu.dot_dimension_numbers<[1], [0], [0], [1], [0, 0, 1, 1], [], []>} : vector<1x128xbf16>, vector<128x128xbf16>, vector<1x128xf32> -> vector<1x128xf32>
    %cst_147 = arith.constant dense<0.000000e+00> : vector<1x128xf32>
    %319 = tpu.matmul %317, %0, %cst_147 {dimension_numbers = #tpu.dot_dimension_numbers<[1], [0], [0], [1], [0, 0, 1, 1], [], []>} : vector<1x128xbf16>, vector<128x128xbf16>, vector<1x128xf32> -> vector<1x128xf32>
    %320 = arith.addf %318, %319 : vector<1x128xf32>
    %cst_148 = arith.constant 2.000000e-02 : f32
    %321 = vector.broadcast %cst_148 : f32 to vector<1x128xf32>
    %322 = arith.mulf %320, %321 : vector<1x128xf32>
    %323 = arith.mulf %309, %309 : vector<10x128xf32>
    %cst_149 = arith.constant dense<0.000000e+00> : vector<128xf32>
    %324 = vector.multi_reduction <add>, %323, %cst_149 [0] : vector<10x128xf32> to vector<128xf32>
    %325 = vector.shape_cast %324 : vector<128xf32> to vector<1x128xf32>
    %326 = arith.truncf %325 : vector<1x128xf32> to vector<1x128xbf16>
    %327 = arith.extf %326 : vector<1x128xbf16> to vector<1x128xf32>
    %328 = arith.subf %325, %327 : vector<1x128xf32>
    %329 = arith.truncf %328 : vector<1x128xf32> to vector<1x128xbf16>
    %cst_150 = arith.constant dense<0.000000e+00> : vector<1x128xf32>
    %330 = tpu.matmul %326, %0, %cst_150 {dimension_numbers = #tpu.dot_dimension_numbers<[1], [0], [0], [1], [0, 0, 1, 1], [], []>} : vector<1x128xbf16>, vector<128x128xbf16>, vector<1x128xf32> -> vector<1x128xf32>
    %cst_151 = arith.constant dense<0.000000e+00> : vector<1x128xf32>
    %331 = tpu.matmul %329, %0, %cst_151 {dimension_numbers = #tpu.dot_dimension_numbers<[1], [0], [0], [1], [0, 0, 1, 1], [], []>} : vector<1x128xbf16>, vector<128x128xbf16>, vector<1x128xf32> -> vector<1x128xf32>
    %332 = arith.addf %330, %331 : vector<1x128xf32>
    %cst_152 = arith.constant 2.000000e-02 : f32
    %333 = vector.broadcast %cst_152 : f32 to vector<1x128xf32>
    %334 = arith.mulf %332, %333 : vector<1x128xf32>
    %335 = arith.mulf %322, %322 : vector<1x128xf32>
    %336 = arith.subf %334, %335 : vector<1x128xf32>
    %cst_153 = arith.constant 1.000000e-03 : f32
    %337 = vector.broadcast %cst_153 : f32 to vector<1x128xf32>
    %338 = arith.addf %336, %337 : vector<1x128xf32>
    %339 = math.rsqrt %338 : vector<1x128xf32>
    %340 = arith.mulf %310, %339 : vector<1x128xf32>
    %341 = vector.broadcast %322 : vector<1x128xf32> to vector<10x128xf32>
    %342 = arith.subf %309, %341 : vector<10x128xf32>
    %343 = vector.broadcast %340 : vector<1x128xf32> to vector<10x128xf32>
    %344 = arith.mulf %342, %343 : vector<10x128xf32>
    %345 = vector.broadcast %311 : vector<1x128xf32> to vector<10x128xf32>
    %346 = arith.addf %344, %345 : vector<10x128xf32>
    %cst_154 = arith.constant 0.000000e+00 : f32
    %347 = vector.broadcast %cst_154 : f32 to vector<10x128xf32>
    %348 = arith.maximumf %346, %347 : vector<10x128xf32>
    %cst_155 = arith.constant 0.000000e+00 : f32
    %349 = vector.broadcast %cst_155 : f32 to vector<14x128xf32>
    %c0_156 = arith.constant 0 : index
    %c0_157 = arith.constant 0 : index
    %350 = vector.load %arg11[%c0_156, %c0_157] : memref<14x128xf32, #tpu.memory_space<vmem>>, vector<14x128xf32>
    tpu.vector_store %arg11[%c0_156, %c0_157], %349 {strides = array<i32>} : memref<14x128xf32, #tpu.memory_space<vmem>>, vector<14x128xf32>,
    %cst_158 = arith.constant 0.000000e+00 : f32
    %351 = vector.broadcast %cst_158 : f32 to vector<14x128xf32>
    %c0_159 = arith.constant 0 : index
    %c0_160 = arith.constant 0 : index
    %352 = vector.load %arg12[%c0_159, %c0_160] : memref<14x128xf32, #tpu.memory_space<vmem>>, vector<14x128xf32>
    tpu.vector_store %arg12[%c0_159, %c0_160], %351 {strides = array<i32>} : memref<14x128xf32, #tpu.memory_space<vmem>>, vector<14x128xf32>,
    %c2_161 = arith.constant 2 : index
    %c0_162 = arith.constant 0 : index
    %353 = vector.load %arg11[%c2_161, %c0_162] : memref<14x128xf32, #tpu.memory_space<vmem>>, vector<10x128xf32>
    tpu.vector_store %arg11[%c2_161, %c0_162], %348 {strides = array<i32>} : memref<14x128xf32, #tpu.memory_space<vmem>>, vector<10x128xf32>,
    %c2_163 = arith.constant 2 : index
    %c0_164 = arith.constant 0 : index
    %354 = vector.load %arg11[%c2_163, %c0_164] : memref<14x128xf32, #tpu.memory_space<vmem>>, vector<10x128xf32>
    %c0_165 = arith.constant 0 : index
    %c0_166 = arith.constant 0 : index
    %355 = vector.load %arg11[%c0_165, %c0_166] : memref<14x128xf32, #tpu.memory_space<vmem>>, vector<10x128xf32>
    %c2_167 = arith.constant 2 : index
    %c0_168 = arith.constant 0 : index
    %356 = vector.load %arg11[%c2_167, %c0_168] : memref<14x128xf32, #tpu.memory_space<vmem>>, vector<10x128xf32>
    %c4_169 = arith.constant 4 : index
    %c0_170 = arith.constant 0 : index
    %357 = vector.load %arg11[%c4_169, %c0_170] : memref<14x128xf32, #tpu.memory_space<vmem>>, vector<10x128xf32>
    %358 = tpu.concatenate %355, %356, %357 in 1 : vector<10x128xf32>, vector<10x128xf32>, vector<10x128xf32> -> vector<10x384xf32>
    %c0_171 = arith.constant 0 : index
    %c0_172 = arith.constant 0 : index
    %c0_173 = arith.constant 0 : index
    %359 = vector.load %arg5[%c0_171, %c0_172, %c0_173] : memref<4x384x128xbf16, #tpu.memory_space<vmem>>, vector<1x384x128xbf16>
    %360 = vector.shape_cast %359 : vector<1x384x128xbf16> to vector<384x128xbf16>
    %361 = arith.truncf %358 : vector<10x384xf32> to vector<10x384xbf16>
    %cst_174 = arith.constant dense<0.000000e+00> : vector<10x128xf32>
    %362 = tpu.matmul %361, %360, %cst_174 {dimension_numbers = #tpu.dot_dimension_numbers<[1], [0], [0], [1], [0, 0, 1, 1], [], []>} : vector<10x384xbf16>, vector<384x128xbf16>, vector<10x128xf32> -> vector<10x128xf32>
    %c21 = arith.constant 21 : index
    %c0_175 = arith.constant 0 : index
    %363 = vector.load %arg7[%c21, %c0_175] : memref<34x128xf32, #tpu.memory_space<vmem>>, vector<1x128xf32>
    %364 = vector.broadcast %363 : vector<1x128xf32> to vector<10x128xf32>
    %365 = arith.addf %362, %364 : vector<10x128xf32>
    %cst_176 = arith.constant 0.000000e+00 : f32
    %366 = vector.broadcast %cst_176 : f32 to vector<10x128xf32>
    %367 = arith.maximumf %365, %366 : vector<10x128xf32>
    %c22 = arith.constant 22 : index
    %c0_177 = arith.constant 0 : index
    %368 = vector.load %arg7[%c22, %c0_177] : memref<34x128xf32, #tpu.memory_space<vmem>>, vector<1x128xf32>
    %c23 = arith.constant 23 : index
    %c0_178 = arith.constant 0 : index
    %369 = vector.load %arg7[%c23, %c0_178] : memref<34x128xf32, #tpu.memory_space<vmem>>, vector<1x128xf32>
    %cst_179 = arith.constant dense<0.000000e+00> : vector<128xf32>
    %370 = vector.multi_reduction <add>, %367, %cst_179 [0] : vector<10x128xf32> to vector<128xf32>
    %371 = vector.shape_cast %370 : vector<128xf32> to vector<1x128xf32>
    %372 = arith.truncf %371 : vector<1x128xf32> to vector<1x128xbf16>
    %373 = arith.extf %372 : vector<1x128xbf16> to vector<1x128xf32>
    %374 = arith.subf %371, %373 : vector<1x128xf32>
    %375 = arith.truncf %374 : vector<1x128xf32> to vector<1x128xbf16>
    %cst_180 = arith.constant dense<0.000000e+00> : vector<1x128xf32>
    %376 = tpu.matmul %372, %0, %cst_180 {dimension_numbers = #tpu.dot_dimension_numbers<[1], [0], [0], [1], [0, 0, 1, 1], [], []>} : vector<1x128xbf16>, vector<128x128xbf16>, vector<1x128xf32> -> vector<1x128xf32>
    %cst_181 = arith.constant dense<0.000000e+00> : vector<1x128xf32>
    %377 = tpu.matmul %375, %0, %cst_181 {dimension_numbers = #tpu.dot_dimension_numbers<[1], [0], [0], [1], [0, 0, 1, 1], [], []>} : vector<1x128xbf16>, vector<128x128xbf16>, vector<1x128xf32> -> vector<1x128xf32>
    %378 = arith.addf %376, %377 : vector<1x128xf32>
    %cst_182 = arith.constant 2.000000e-02 : f32
    %379 = vector.broadcast %cst_182 : f32 to vector<1x128xf32>
    %380 = arith.mulf %378, %379 : vector<1x128xf32>
    %381 = arith.mulf %367, %367 : vector<10x128xf32>
    %cst_183 = arith.constant dense<0.000000e+00> : vector<128xf32>
    %382 = vector.multi_reduction <add>, %381, %cst_183 [0] : vector<10x128xf32> to vector<128xf32>
    %383 = vector.shape_cast %382 : vector<128xf32> to vector<1x128xf32>
    %384 = arith.truncf %383 : vector<1x128xf32> to vector<1x128xbf16>
    %385 = arith.extf %384 : vector<1x128xbf16> to vector<1x128xf32>
    %386 = arith.subf %383, %385 : vector<1x128xf32>
    %387 = arith.truncf %386 : vector<1x128xf32> to vector<1x128xbf16>
    %cst_184 = arith.constant dense<0.000000e+00> : vector<1x128xf32>
    %388 = tpu.matmul %384, %0, %cst_184 {dimension_numbers = #tpu.dot_dimension_numbers<[1], [0], [0], [1], [0, 0, 1, 1], [], []>} : vector<1x128xbf16>, vector<128x128xbf16>, vector<1x128xf32> -> vector<1x128xf32>
    %cst_185 = arith.constant dense<0.000000e+00> : vector<1x128xf32>
    %389 = tpu.matmul %387, %0, %cst_185 {dimension_numbers = #tpu.dot_dimension_numbers<[1], [0], [0], [1], [0, 0, 1, 1], [], []>} : vector<1x128xbf16>, vector<128x128xbf16>, vector<1x128xf32> -> vector<1x128xf32>
    %390 = arith.addf %388, %389 : vector<1x128xf32>
    %cst_186 = arith.constant 2.000000e-02 : f32
    %391 = vector.broadcast %cst_186 : f32 to vector<1x128xf32>
    %392 = arith.mulf %390, %391 : vector<1x128xf32>
    %393 = arith.mulf %380, %380 : vector<1x128xf32>
    %394 = arith.subf %392, %393 : vector<1x128xf32>
    %cst_187 = arith.constant 9.99999974E-6 : f32
    %395 = vector.broadcast %cst_187 : f32 to vector<1x128xf32>
    %396 = arith.addf %394, %395 : vector<1x128xf32>
    %397 = math.rsqrt %396 : vector<1x128xf32>
    %398 = arith.mulf %368, %397 : vector<1x128xf32>
    %399 = vector.broadcast %380 : vector<1x128xf32> to vector<10x128xf32>
    %400 = arith.subf %367, %399 : vector<10x128xf32>
    %401 = vector.broadcast %398 : vector<1x128xf32> to vector<10x128xf32>
    %402 = arith.mulf %400, %401 : vector<10x128xf32>
    %403 = vector.broadcast %369 : vector<1x128xf32> to vector<10x128xf32>
    %404 = arith.addf %402, %403 : vector<10x128xf32>
    %cst_188 = arith.constant 0.000000e+00 : f32
    %405 = vector.broadcast %cst_188 : f32 to vector<10x128xf32>
    %406 = arith.maximumf %404, %405 : vector<10x128xf32>
    %c2_189 = arith.constant 2 : index
    %c0_190 = arith.constant 0 : index
    %407 = vector.load %arg12[%c2_189, %c0_190] : memref<14x128xf32, #tpu.memory_space<vmem>>, vector<10x128xf32>
    tpu.vector_store %arg12[%c2_189, %c0_190], %406 {strides = array<i32>} : memref<14x128xf32, #tpu.memory_space<vmem>>, vector<10x128xf32>,
    %c0_191 = arith.constant 0 : index
    %c0_192 = arith.constant 0 : index
    %408 = vector.load %arg12[%c0_191, %c0_192] : memref<14x128xf32, #tpu.memory_space<vmem>>, vector<10x128xf32>
    %c2_193 = arith.constant 2 : index
    %c0_194 = arith.constant 0 : index
    %409 = vector.load %arg12[%c2_193, %c0_194] : memref<14x128xf32, #tpu.memory_space<vmem>>, vector<10x128xf32>
    %c4_195 = arith.constant 4 : index
    %c0_196 = arith.constant 0 : index
    %410 = vector.load %arg12[%c4_195, %c0_196] : memref<14x128xf32, #tpu.memory_space<vmem>>, vector<10x128xf32>
    %411 = tpu.concatenate %408, %409, %410 in 1 : vector<10x128xf32>, vector<10x128xf32>, vector<10x128xf32> -> vector<10x384xf32>
    %c1_197 = arith.constant 1 : index
    %c0_198 = arith.constant 0 : index
    %c0_199 = arith.constant 0 : index
    %412 = vector.load %arg5[%c1_197, %c0_198, %c0_199] : memref<4x384x128xbf16, #tpu.memory_space<vmem>>, vector<1x384x128xbf16>
    %413 = vector.shape_cast %412 : vector<1x384x128xbf16> to vector<384x128xbf16>
    %414 = arith.truncf %411 : vector<10x384xf32> to vector<10x384xbf16>
    %cst_200 = arith.constant dense<0.000000e+00> : vector<10x128xf32>
    %415 = tpu.matmul %414, %413, %cst_200 {dimension_numbers = #tpu.dot_dimension_numbers<[1], [0], [0], [1], [0, 0, 1, 1], [], []>} : vector<10x384xbf16>, vector<384x128xbf16>, vector<10x128xf32> -> vector<10x128xf32>
    %c24 = arith.constant 24 : index
    %c0_201 = arith.constant 0 : index
    %416 = vector.load %arg7[%c24, %c0_201] : memref<34x128xf32, #tpu.memory_space<vmem>>, vector<1x128xf32>
    %417 = vector.broadcast %416 : vector<1x128xf32> to vector<10x128xf32>
    %418 = arith.addf %415, %417 : vector<10x128xf32>
    %c25 = arith.constant 25 : index
    %c0_202 = arith.constant 0 : index
    %419 = vector.load %arg7[%c25, %c0_202] : memref<34x128xf32, #tpu.memory_space<vmem>>, vector<1x128xf32>
    %c26 = arith.constant 26 : index
    %c0_203 = arith.constant 0 : index
    %420 = vector.load %arg7[%c26, %c0_203] : memref<34x128xf32, #tpu.memory_space<vmem>>, vector<1x128xf32>
    %cst_204 = arith.constant dense<0.000000e+00> : vector<128xf32>
    %421 = vector.multi_reduction <add>, %418, %cst_204 [0] : vector<10x128xf32> to vector<128xf32>
    %422 = vector.shape_cast %421 : vector<128xf32> to vector<1x128xf32>
    %423 = arith.truncf %422 : vector<1x128xf32> to vector<1x128xbf16>
    %424 = arith.extf %423 : vector<1x128xbf16> to vector<1x128xf32>
    %425 = arith.subf %422, %424 : vector<1x128xf32>
    %426 = arith.truncf %425 : vector<1x128xf32> to vector<1x128xbf16>
    %cst_205 = arith.constant dense<0.000000e+00> : vector<1x128xf32>
    %427 = tpu.matmul %423, %0, %cst_205 {dimension_numbers = #tpu.dot_dimension_numbers<[1], [0], [0], [1], [0, 0, 1, 1], [], []>} : vector<1x128xbf16>, vector<128x128xbf16>, vector<1x128xf32> -> vector<1x128xf32>
    %cst_206 = arith.constant dense<0.000000e+00> : vector<1x128xf32>
    %428 = tpu.matmul %426, %0, %cst_206 {dimension_numbers = #tpu.dot_dimension_numbers<[1], [0], [0], [1], [0, 0, 1, 1], [], []>} : vector<1x128xbf16>, vector<128x128xbf16>, vector<1x128xf32> -> vector<1x128xf32>
    %429 = arith.addf %427, %428 : vector<1x128xf32>
    %cst_207 = arith.constant 2.000000e-02 : f32
    %430 = vector.broadcast %cst_207 : f32 to vector<1x128xf32>
    %431 = arith.mulf %429, %430 : vector<1x128xf32>
    %432 = arith.mulf %418, %418 : vector<10x128xf32>
    %cst_208 = arith.constant dense<0.000000e+00> : vector<128xf32>
    %433 = vector.multi_reduction <add>, %432, %cst_208 [0] : vector<10x128xf32> to vector<128xf32>
    %434 = vector.shape_cast %433 : vector<128xf32> to vector<1x128xf32>
    %435 = arith.truncf %434 : vector<1x128xf32> to vector<1x128xbf16>
    %436 = arith.extf %435 : vector<1x128xbf16> to vector<1x128xf32>
    %437 = arith.subf %434, %436 : vector<1x128xf32>
    %438 = arith.truncf %437 : vector<1x128xf32> to vector<1x128xbf16>
    %cst_209 = arith.constant dense<0.000000e+00> : vector<1x128xf32>
    %439 = tpu.matmul %435, %0, %cst_209 {dimension_numbers = #tpu.dot_dimension_numbers<[1], [0], [0], [1], [0, 0, 1, 1], [], []>} : vector<1x128xbf16>, vector<128x128xbf16>, vector<1x128xf32> -> vector<1x128xf32>
    %cst_210 = arith.constant dense<0.000000e+00> : vector<1x128xf32>
    %440 = tpu.matmul %438, %0, %cst_210 {dimension_numbers = #tpu.dot_dimension_numbers<[1], [0], [0], [1], [0, 0, 1, 1], [], []>} : vector<1x128xbf16>, vector<128x128xbf16>, vector<1x128xf32> -> vector<1x128xf32>
    %441 = arith.addf %439, %440 : vector<1x128xf32>
    %cst_211 = arith.constant 2.000000e-02 : f32
    %442 = vector.broadcast %cst_211 : f32 to vector<1x128xf32>
    %443 = arith.mulf %441, %442 : vector<1x128xf32>
    %444 = arith.mulf %431, %431 : vector<1x128xf32>
    %445 = arith.subf %443, %444 : vector<1x128xf32>
    %cst_212 = arith.constant 9.99999974E-6 : f32
    %446 = vector.broadcast %cst_212 : f32 to vector<1x128xf32>
    %447 = arith.addf %445, %446 : vector<1x128xf32>
    %448 = math.rsqrt %447 : vector<1x128xf32>
    %449 = arith.mulf %419, %448 : vector<1x128xf32>
    %450 = vector.broadcast %431 : vector<1x128xf32> to vector<10x128xf32>
    %451 = arith.subf %418, %450 : vector<10x128xf32>
    %452 = vector.broadcast %449 : vector<1x128xf32> to vector<10x128xf32>
    %453 = arith.mulf %451, %452 : vector<10x128xf32>
    %454 = vector.broadcast %420 : vector<1x128xf32> to vector<10x128xf32>
    %455 = arith.addf %453, %454 : vector<10x128xf32>
    %456 = arith.addf %455, %354 : vector<10x128xf32>
    %cst_213 = arith.constant 0.000000e+00 : f32
    %457 = vector.broadcast %cst_213 : f32 to vector<10x128xf32>
    %458 = arith.maximumf %456, %457 : vector<10x128xf32>
    %c2_214 = arith.constant 2 : index
    %c0_215 = arith.constant 0 : index
    %459 = vector.load %arg11[%c2_214, %c0_215] : memref<14x128xf32, #tpu.memory_space<vmem>>, vector<10x128xf32>
    tpu.vector_store %arg11[%c2_214, %c0_215], %458 {strides = array<i32>} : memref<14x128xf32, #tpu.memory_space<vmem>>, vector<10x128xf32>,
    %c2_216 = arith.constant 2 : index
    %c0_217 = arith.constant 0 : index
    %460 = vector.load %arg11[%c2_216, %c0_217] : memref<14x128xf32, #tpu.memory_space<vmem>>, vector<10x128xf32>
    %c0_218 = arith.constant 0 : index
    %c0_219 = arith.constant 0 : index
    %461 = vector.load %arg11[%c0_218, %c0_219] : memref<14x128xf32, #tpu.memory_space<vmem>>, vector<10x128xf32>
    %c2_220 = arith.constant 2 : index
    %c0_221 = arith.constant 0 : index
    %462 = vector.load %arg11[%c2_220, %c0_221] : memref<14x128xf32, #tpu.memory_space<vmem>>, vector<10x128xf32>
    %c4_222 = arith.constant 4 : index
    %c0_223 = arith.constant 0 : index
    %463 = vector.load %arg11[%c4_222, %c0_223] : memref<14x128xf32, #tpu.memory_space<vmem>>, vector<10x128xf32>
    %464 = tpu.concatenate %461, %462, %463 in 1 : vector<10x128xf32>, vector<10x128xf32>, vector<10x128xf32> -> vector<10x384xf32>
    %c2_224 = arith.constant 2 : index
    %c0_225 = arith.constant 0 : index
    %c0_226 = arith.constant 0 : index
    %465 = vector.load %arg5[%c2_224, %c0_225, %c0_226] : memref<4x384x128xbf16, #tpu.memory_space<vmem>>, vector<1x384x128xbf16>
    %466 = vector.shape_cast %465 : vector<1x384x128xbf16> to vector<384x128xbf16>
    %467 = arith.truncf %464 : vector<10x384xf32> to vector<10x384xbf16>
    %cst_227 = arith.constant dense<0.000000e+00> : vector<10x128xf32>
    %468 = tpu.matmul %467, %466, %cst_227 {dimension_numbers = #tpu.dot_dimension_numbers<[1], [0], [0], [1], [0, 0, 1, 1], [], []>} : vector<10x384xbf16>, vector<384x128xbf16>, vector<10x128xf32> -> vector<10x128xf32>
    %c27 = arith.constant 27 : index
    %c0_228 = arith.constant 0 : index
    %469 = vector.load %arg7[%c27, %c0_228] : memref<34x128xf32, #tpu.memory_space<vmem>>, vector<1x128xf32>
    %470 = vector.broadcast %469 : vector<1x128xf32> to vector<10x128xf32>
    %471 = arith.addf %468, %470 : vector<10x128xf32>
    %cst_229 = arith.constant 0.000000e+00 : f32
    %472 = vector.broadcast %cst_229 : f32 to vector<10x128xf32>
    %473 = arith.maximumf %471, %472 : vector<10x128xf32>
    %c28_230 = arith.constant 28 : index
    %c0_231 = arith.constant 0 : index
    %474 = vector.load %arg7[%c28_230, %c0_231] : memref<34x128xf32, #tpu.memory_space<vmem>>, vector<1x128xf32>
    %c29 = arith.constant 29 : index
    %c0_232 = arith.constant 0 : index
    %475 = vector.load %arg7[%c29, %c0_232] : memref<34x128xf32, #tpu.memory_space<vmem>>, vector<1x128xf32>
    %cst_233 = arith.constant dense<0.000000e+00> : vector<128xf32>
    %476 = vector.multi_reduction <add>, %473, %cst_233 [0] : vector<10x128xf32> to vector<128xf32>
    %477 = vector.shape_cast %476 : vector<128xf32> to vector<1x128xf32>
    %478 = arith.truncf %477 : vector<1x128xf32> to vector<1x128xbf16>
    %479 = arith.extf %478 : vector<1x128xbf16> to vector<1x128xf32>
    %480 = arith.subf %477, %479 : vector<1x128xf32>
    %481 = arith.truncf %480 : vector<1x128xf32> to vector<1x128xbf16>
    %cst_234 = arith.constant dense<0.000000e+00> : vector<1x128xf32>
    %482 = tpu.matmul %478, %0, %cst_234 {dimension_numbers = #tpu.dot_dimension_numbers<[1], [0], [0], [1], [0, 0, 1, 1], [], []>} : vector<1x128xbf16>, vector<128x128xbf16>, vector<1x128xf32> -> vector<1x128xf32>
    %cst_235 = arith.constant dense<0.000000e+00> : vector<1x128xf32>
    %483 = tpu.matmul %481, %0, %cst_235 {dimension_numbers = #tpu.dot_dimension_numbers<[1], [0], [0], [1], [0, 0, 1, 1], [], []>} : vector<1x128xbf16>, vector<128x128xbf16>, vector<1x128xf32> -> vector<1x128xf32>
    %484 = arith.addf %482, %483 : vector<1x128xf32>
    %cst_236 = arith.constant 2.000000e-02 : f32
    %485 = vector.broadcast %cst_236 : f32 to vector<1x128xf32>
    %486 = arith.mulf %484, %485 : vector<1x128xf32>
    %487 = arith.mulf %473, %473 : vector<10x128xf32>
    %cst_237 = arith.constant dense<0.000000e+00> : vector<128xf32>
    %488 = vector.multi_reduction <add>, %487, %cst_237 [0] : vector<10x128xf32> to vector<128xf32>
    %489 = vector.shape_cast %488 : vector<128xf32> to vector<1x128xf32>
    %490 = arith.truncf %489 : vector<1x128xf32> to vector<1x128xbf16>
    %491 = arith.extf %490 : vector<1x128xbf16> to vector<1x128xf32>
    %492 = arith.subf %489, %491 : vector<1x128xf32>
    %493 = arith.truncf %492 : vector<1x128xf32> to vector<1x128xbf16>
    %cst_238 = arith.constant dense<0.000000e+00> : vector<1x128xf32>
    %494 = tpu.matmul %490, %0, %cst_238 {dimension_numbers = #tpu.dot_dimension_numbers<[1], [0], [0], [1], [0, 0, 1, 1], [], []>} : vector<1x128xbf16>, vector<128x128xbf16>, vector<1x128xf32> -> vector<1x128xf32>
    %cst_239 = arith.constant dense<0.000000e+00> : vector<1x128xf32>
    %495 = tpu.matmul %493, %0, %cst_239 {dimension_numbers = #tpu.dot_dimension_numbers<[1], [0], [0], [1], [0, 0, 1, 1], [], []>} : vector<1x128xbf16>, vector<128x128xbf16>, vector<1x128xf32> -> vector<1x128xf32>
    %496 = arith.addf %494, %495 : vector<1x128xf32>
    %cst_240 = arith.constant 2.000000e-02 : f32
    %497 = vector.broadcast %cst_240 : f32 to vector<1x128xf32>
    %498 = arith.mulf %496, %497 : vector<1x128xf32>
    %499 = arith.mulf %486, %486 : vector<1x128xf32>
    %500 = arith.subf %498, %499 : vector<1x128xf32>
    %cst_241 = arith.constant 9.99999974E-6 : f32
    %501 = vector.broadcast %cst_241 : f32 to vector<1x128xf32>
    %502 = arith.addf %500, %501 : vector<1x128xf32>
    %503 = math.rsqrt %502 : vector<1x128xf32>
    %504 = arith.mulf %474, %503 : vector<1x128xf32>
    %505 = vector.broadcast %486 : vector<1x128xf32> to vector<10x128xf32>
    %506 = arith.subf %473, %505 : vector<10x128xf32>
    %507 = vector.broadcast %504 : vector<1x128xf32> to vector<10x128xf32>
    %508 = arith.mulf %506, %507 : vector<10x128xf32>
    %509 = vector.broadcast %475 : vector<1x128xf32> to vector<10x128xf32>
    %510 = arith.addf %508, %509 : vector<10x128xf32>
    %cst_242 = arith.constant 0.000000e+00 : f32
    %511 = vector.broadcast %cst_242 : f32 to vector<10x128xf32>
    %512 = arith.maximumf %510, %511 : vector<10x128xf32>
    %c2_243 = arith.constant 2 : index
    %c0_244 = arith.constant 0 : index
    %513 = vector.load %arg12[%c2_243, %c0_244] : memref<14x128xf32, #tpu.memory_space<vmem>>, vector<10x128xf32>
    tpu.vector_store %arg12[%c2_243, %c0_244], %512 {strides = array<i32>} : memref<14x128xf32, #tpu.memory_space<vmem>>, vector<10x128xf32>,
    %c0_245 = arith.constant 0 : index
    %c0_246 = arith.constant 0 : index
    %514 = vector.load %arg12[%c0_245, %c0_246] : memref<14x128xf32, #tpu.memory_space<vmem>>, vector<10x128xf32>
    %c2_247 = arith.constant 2 : index
    %c0_248 = arith.constant 0 : index
    %515 = vector.load %arg12[%c2_247, %c0_248] : memref<14x128xf32, #tpu.memory_space<vmem>>, vector<10x128xf32>
    %c4_249 = arith.constant 4 : index
    %c0_250 = arith.constant 0 : index
    %516 = vector.load %arg12[%c4_249, %c0_250] : memref<14x128xf32, #tpu.memory_space<vmem>>, vector<10x128xf32>
    %517 = tpu.concatenate %514, %515, %516 in 1 : vector<10x128xf32>, vector<10x128xf32>, vector<10x128xf32> -> vector<10x384xf32>
    %c3_251 = arith.constant 3 : index
    %c0_252 = arith.constant 0 : index
    %c0_253 = arith.constant 0 : index
    %518 = vector.load %arg5[%c3_251, %c0_252, %c0_253] : memref<4x384x128xbf16, #tpu.memory_space<vmem>>, vector<1x384x128xbf16>
    %519 = vector.shape_cast %518 : vector<1x384x128xbf16> to vector<384x128xbf16>
    %520 = arith.truncf %517 : vector<10x384xf32> to vector<10x384xbf16>
    %cst_254 = arith.constant dense<0.000000e+00> : vector<10x128xf32>
    %521 = tpu.matmul %520, %519, %cst_254 {dimension_numbers = #tpu.dot_dimension_numbers<[1], [0], [0], [1], [0, 0, 1, 1], [], []>} : vector<10x384xbf16>, vector<384x128xbf16>, vector<10x128xf32> -> vector<10x128xf32>
    %c30_255 = arith.constant 30 : index
    %c0_256 = arith.constant 0 : index
    %522 = vector.load %arg7[%c30_255, %c0_256] : memref<34x128xf32, #tpu.memory_space<vmem>>, vector<1x128xf32>
    %523 = vector.broadcast %522 : vector<1x128xf32> to vector<10x128xf32>
    %524 = arith.addf %521, %523 : vector<10x128xf32>
    %c31 = arith.constant 31 : index
    %c0_257 = arith.constant 0 : index
    %525 = vector.load %arg7[%c31, %c0_257] : memref<34x128xf32, #tpu.memory_space<vmem>>, vector<1x128xf32>
    %c32_258 = arith.constant 32 : index
    %c0_259 = arith.constant 0 : index
    %526 = vector.load %arg7[%c32_258, %c0_259] : memref<34x128xf32, #tpu.memory_space<vmem>>, vector<1x128xf32>
    %cst_260 = arith.constant dense<0.000000e+00> : vector<128xf32>
    %527 = vector.multi_reduction <add>, %524, %cst_260 [0] : vector<10x128xf32> to vector<128xf32>
    %528 = vector.shape_cast %527 : vector<128xf32> to vector<1x128xf32>
    %529 = arith.truncf %528 : vector<1x128xf32> to vector<1x128xbf16>
    %530 = arith.extf %529 : vector<1x128xbf16> to vector<1x128xf32>
    %531 = arith.subf %528, %530 : vector<1x128xf32>
    %532 = arith.truncf %531 : vector<1x128xf32> to vector<1x128xbf16>
    %cst_261 = arith.constant dense<0.000000e+00> : vector<1x128xf32>
    %533 = tpu.matmul %529, %0, %cst_261 {dimension_numbers = #tpu.dot_dimension_numbers<[1], [0], [0], [1], [0, 0, 1, 1], [], []>} : vector<1x128xbf16>, vector<128x128xbf16>, vector<1x128xf32> -> vector<1x128xf32>
    %cst_262 = arith.constant dense<0.000000e+00> : vector<1x128xf32>
    %534 = tpu.matmul %532, %0, %cst_262 {dimension_numbers = #tpu.dot_dimension_numbers<[1], [0], [0], [1], [0, 0, 1, 1], [], []>} : vector<1x128xbf16>, vector<128x128xbf16>, vector<1x128xf32> -> vector<1x128xf32>
    %535 = arith.addf %533, %534 : vector<1x128xf32>
    %cst_263 = arith.constant 2.000000e-02 : f32
    %536 = vector.broadcast %cst_263 : f32 to vector<1x128xf32>
    %537 = arith.mulf %535, %536 : vector<1x128xf32>
    %538 = arith.mulf %524, %524 : vector<10x128xf32>
    %cst_264 = arith.constant dense<0.000000e+00> : vector<128xf32>
    %539 = vector.multi_reduction <add>, %538, %cst_264 [0] : vector<10x128xf32> to vector<128xf32>
    %540 = vector.shape_cast %539 : vector<128xf32> to vector<1x128xf32>
    %541 = arith.truncf %540 : vector<1x128xf32> to vector<1x128xbf16>
    %542 = arith.extf %541 : vector<1x128xbf16> to vector<1x128xf32>
    %543 = arith.subf %540, %542 : vector<1x128xf32>
    %544 = arith.truncf %543 : vector<1x128xf32> to vector<1x128xbf16>
    %cst_265 = arith.constant dense<0.000000e+00> : vector<1x128xf32>
    %545 = tpu.matmul %541, %0, %cst_265 {dimension_numbers = #tpu.dot_dimension_numbers<[1], [0], [0], [1], [0, 0, 1, 1], [], []>} : vector<1x128xbf16>, vector<128x128xbf16>, vector<1x128xf32> -> vector<1x128xf32>
    %cst_266 = arith.constant dense<0.000000e+00> : vector<1x128xf32>
    %546 = tpu.matmul %544, %0, %cst_266 {dimension_numbers = #tpu.dot_dimension_numbers<[1], [0], [0], [1], [0, 0, 1, 1], [], []>} : vector<1x128xbf16>, vector<128x128xbf16>, vector<1x128xf32> -> vector<1x128xf32>
    %547 = arith.addf %545, %546 : vector<1x128xf32>
    %cst_267 = arith.constant 2.000000e-02 : f32
    %548 = vector.broadcast %cst_267 : f32 to vector<1x128xf32>
    %549 = arith.mulf %547, %548 : vector<1x128xf32>
    %550 = arith.mulf %537, %537 : vector<1x128xf32>
    %551 = arith.subf %549, %550 : vector<1x128xf32>
    %cst_268 = arith.constant 9.99999974E-6 : f32
    %552 = vector.broadcast %cst_268 : f32 to vector<1x128xf32>
    %553 = arith.addf %551, %552 : vector<1x128xf32>
    %554 = math.rsqrt %553 : vector<1x128xf32>
    %555 = arith.mulf %525, %554 : vector<1x128xf32>
    %556 = vector.broadcast %537 : vector<1x128xf32> to vector<10x128xf32>
    %557 = arith.subf %524, %556 : vector<10x128xf32>
    %558 = vector.broadcast %555 : vector<1x128xf32> to vector<10x128xf32>
    %559 = arith.mulf %557, %558 : vector<10x128xf32>
    %560 = vector.broadcast %526 : vector<1x128xf32> to vector<10x128xf32>
    %561 = arith.addf %559, %560 : vector<10x128xf32>
    %562 = arith.addf %561, %460 : vector<10x128xf32>
    %cst_269 = arith.constant 0.000000e+00 : f32
    %563 = vector.broadcast %cst_269 : f32 to vector<10x128xf32>
    %564 = arith.maximumf %562, %563 : vector<10x128xf32>
    %c2_270 = arith.constant 2 : index
    %c0_271 = arith.constant 0 : index
    %565 = vector.load %arg11[%c2_270, %c0_271] : memref<14x128xf32, #tpu.memory_space<vmem>>, vector<10x128xf32>
    tpu.vector_store %arg11[%c2_270, %c0_271], %564 {strides = array<i32>} : memref<14x128xf32, #tpu.memory_space<vmem>>, vector<10x128xf32>,
    %c2_272 = arith.constant 2 : index
    %c0_273 = arith.constant 0 : index
    %566 = vector.load %arg11[%c2_272, %c0_273] : memref<14x128xf32, #tpu.memory_space<vmem>>, vector<2x128xf32>
    %c4_274 = arith.constant 4 : index
    %c0_275 = arith.constant 0 : index
    %567 = vector.load %arg11[%c4_274, %c0_275] : memref<14x128xf32, #tpu.memory_space<vmem>>, vector<2x128xf32>
    %568 = arith.addf %566, %567 : vector<2x128xf32>
    %c6_276 = arith.constant 6 : index
    %c0_277 = arith.constant 0 : index
    %569 = vector.load %arg11[%c6_276, %c0_277] : memref<14x128xf32, #tpu.memory_space<vmem>>, vector<2x128xf32>
    %570 = arith.addf %568, %569 : vector<2x128xf32>
    %c8_278 = arith.constant 8 : index
    %c0_279 = arith.constant 0 : index
    %571 = vector.load %arg11[%c8_278, %c0_279] : memref<14x128xf32, #tpu.memory_space<vmem>>, vector<2x128xf32>
    %572 = arith.addf %570, %571 : vector<2x128xf32>
    %c10_280 = arith.constant 10 : index
    %c0_281 = arith.constant 0 : index
    %573 = vector.load %arg11[%c10_280, %c0_281] : memref<14x128xf32, #tpu.memory_space<vmem>>, vector<2x128xf32>
    %574 = arith.addf %572, %573 : vector<2x128xf32>
    %c0_282 = arith.constant 0 : index
    %c0_283 = arith.constant 0 : index
    %575 = vector.load %arg6[%c0_282, %c0_283] : memref<128x128xbf16, #tpu.memory_space<vmem>>, vector<128x128xbf16>
    %576 = arith.truncf %574 : vector<2x128xf32> to vector<2x128xbf16>
    %cst_284 = arith.constant dense<0.000000e+00> : vector<2x128xf32>
    %577 = tpu.matmul %576, %575, %cst_284 {dimension_numbers = #tpu.dot_dimension_numbers<[1], [0], [0], [1], [0, 0, 1, 1], [], []>} : vector<2x128xbf16>, vector<128x128xbf16>, vector<2x128xf32> -> vector<2x128xf32>
    %c33 = arith.constant 33 : index
    %c0_285 = arith.constant 0 : index
    %578 = vector.load %arg7[%c33, %c0_285] : memref<34x128xf32, #tpu.memory_space<vmem>>, vector<1x128xf32>
    %579 = vector.broadcast %578 : vector<1x128xf32> to vector<2x128xf32>
    %580 = arith.addf %577, %579 : vector<2x128xf32>
    %c0_286 = arith.constant 0 : index
    %c0_287 = arith.constant 0 : index
    %581 = vector.load %arg9[%c0_286, %c0_287] : memref<2x128xf32, #tpu.memory_space<vmem>>, vector<2x128xf32>
    tpu.vector_store %arg9[%c0_286, %c0_287], %580 {strides = array<i32>} : memref<2x128xf32, #tpu.memory_space<vmem>>, vector<2x128xf32>,
    return
  }
}

</mosaic_0001>

<llo_original>
// kernel: ssrn_forward.1
$region0: #{ssrn_forward.1}
  #allocation0 [shape = 'u32[]', space=smem, size = 0x4, offset = 0x4, fixed_abs, tag = 'smem constant byte address 0x4 - core index']
  #allocation1 [shape = 'u32[72,128]{1,0:T(1,128)}', space=vmem, size = 0x9000, scoped, tag = 'internal scratch']
  #allocation2 [shape = 'f32[98,128]{1,0:T(8,128)}', space=vmem, size = 0xd000, scoped, tag = 'scratch operand']
  #allocation3 [shape = 'f32[14,128]{1,0:T(8,128)}', space=vmem, size = 0x2000, scoped, tag = 'scratch operand']
  #allocation4 [shape = 'f32[14,128]{1,0:T(8,128)}', space=vmem, size = 0x2000, scoped, tag = 'scratch operand']
  %s0 = inlined_call_operand.vmem [shape: f32[98,16], index: 0, kind: input, shape index: {}]
  %s1 = inlined_call_operand.vmem [shape: bf16[16,128], index: 1, kind: input, shape index: {}]
  %s2 = inlined_call_operand.vmem [shape: bf16[4,128,128], index: 2, kind: input, shape index: {}]
  %s3 = inlined_call_operand.vmem [shape: bf16[128,128], index: 3, kind: input, shape index: {}]
  %s4 = inlined_call_operand.hbm [shape: bf16[3,896,128], index: 4, kind: input, shape index: {}]
  %s5 = inlined_call_operand.hbm [shape: bf16[4,384,128], index: 5, kind: input, shape index: {}]
  %s6 = inlined_call_operand.vmem [shape: bf16[128,128], index: 6, kind: input, shape index: {}]
  %s7 = inlined_call_operand.hbm [shape: f32[34,128], index: 7, kind: input, shape index: {}]
  %s8 = inlined_call_operand.hbm [shape: bf16[128,128], index: 8, kind: input, shape index: {}]
  %s9 = inlined_call_operand.hbm [shape: f32[2,128], index: 9, kind: output, shape index: {}]
  %s10 = sld [smem:[#allocation0]]
  $region62: #{ssrn_forward.1} parent=0
    _
  %s12 = ssub.s32 1, %s10
  %s13 = scalar_select 0, %s12, %s10
  $region1: #{ssrn_forward.1} parent=0
    #allocation5 [shape = 'u8[688128]{0}', space=vmem, size = 0xa8000, scoped, tag = 'input window, operand 4, single buffered']
    #allocation6 [shape = 's32[1]{0}', space=sflag, size = 0x4, scoped, tag = 'scoped memory for ssrn_forward.1']
    #allocation7 [shape = 's32[1]{0}', space=sflag, size = 0x4, scoped, tag = 'scoped memory for ssrn_forward.1']
    #allocation8 [shape = 'u8[393216]{0}', space=vmem, size = 0x60000, scoped, tag = 'input window, operand 5, single buffered']
    #allocation9 [shape = 's32[1]{0}', space=sflag, size = 0x4, scoped, tag = 'scoped memory for ssrn_forward.1']
    #allocation10 [shape = 'u8[20480]{0}', space=vmem, size = 0x5000, scoped, tag = 'input window, operand 7, single buffered']
    #allocation11 [shape = 'u8[32768]{0}', space=vmem, size = 0x8000, scoped, tag = 'input window, operand 8, single buffered']
    #allocation12 [shape = 's32[1]{0}', space=sflag, size = 0x4, scoped, tag = 'scoped memory for ssrn_forward.1']
    #allocation13 [shape = 'u8[1024]{0}', space=vmem, size = 0x400, scoped, tag = 'output window, operand 0, single buffered']
    %14 = vsyncpa [#allocation6], 0
    %15 = vsyncpa [#allocation9], 0
    %16 = vsyncpa [#allocation12], 0
    %17 = vsyncpa [#allocation7], 0
    // Predicated region
    $region2: #{ssrn_forward.1} parent=1 // pred_check
      _
    $region3: #{ssrn_forward.1} parent=1 // pred_check_branch
      %19 = sbr.rel (0) target = $region5
    $region4: #{ssrn_forward.1} parent=1 // pred_region
      _
    $region5: #{ssrn_forward.1} parent=1 // pred_fallthru
      _
    // Predicated region
    $region6: #{ssrn_forward.1} parent=1 // pred_check
      _
    $region7: #{ssrn_forward.1} parent=1 // pred_check_branch
      %21 = sbr.rel (0) target = $region9
    $region8: #{ssrn_forward.1} parent=1 // pred_region
      _
    $region9: #{ssrn_forward.1} parent=1 // pred_fallthru
      _
    // Predicated region
    $region10: #{ssrn_forward.1} parent=1 // pred_check
      _
    $region11: #{ssrn_forward.1} parent=1 // pred_check_branch
      %23 = sbr.rel (0) target = $region13
    $region12: #{ssrn_forward.1} parent=1 // pred_region
      _
    $region13: #{ssrn_forward.1} parent=1 // pred_fallthru
      _
    // Predicated region
    $region14: #{ssrn_forward.1} parent=1 // pred_check
      _
    $region15: #{ssrn_forward.1} parent=1 // pred_check_branch
      %25 = sbr.rel (0) target = $region17
    $region16: #{ssrn_forward.1} parent=1 // pred_region
      _
    $region17: #{ssrn_forward.1} parent=1 // pred_fallthru
      _
    // Predicated region
    $region18: #{ssrn_forward.1} parent=1 // pred_check
      _
    $region19: #{ssrn_forward.1} parent=1 // pred_check_branch
      %27 = sbr.rel (0) target = $region21
    $region20: #{ssrn_forward.1} parent=1 // pred_region
      %29 = vsyncadd [#allocation6], 0
      %s30 = sshll.u32 %s4, 4
      %s31 = int_to_ptr.hbm [resolvable:$true] %s30
      %s32 = sshll.u32 [#allocation5], 4
      %s33 = int_to_ptr.vmem [resolvable:$true] %s32
      %38 = dma.hbm_to_vmem [thread:$0]  %s31, 21504, %s33, [#allocation6], 64, 64, 4
    $region21: #{ssrn_forward.1} parent=1 // pred_fallthru
      _
    // Predicated region
    $region22: #{ssrn_forward.1} parent=1 // pred_check
      _
    $region23: #{ssrn_forward.1} parent=1 // pred_check_branch
      %40 = sbr.rel (0) target = $region25
    $region24: #{ssrn_forward.1} parent=1 // pred_region
      %42 = vsyncadd [#allocation9], 0
      %s43 = sshll.u32 %s5, 4
      %s44 = int_to_ptr.hbm [resolvable:$true] %s43
      %s45 = sshll.u32 [#allocation8], 4
      %s46 = int_to_ptr.vmem [resolvable:$true] %s45
      %51 = dma.hbm_to_vmem [thread:$0]  %s44, 12288, %s46, [#allocation9], 64, 64, 4
    $region25: #{ssrn_forward.1} parent=1 // pred_fallthru
      _
    // Predicated region
    $region26: #{ssrn_forward.1} parent=1 // pred_check
      _
    $region27: #{ssrn_forward.1} parent=1 // pred_check_branch
      %53 = sbr.rel (0) target = $region29
    $region28: #{ssrn_forward.1} parent=1 // pred_region
      _
    $region29: #{ssrn_forward.1} parent=1 // pred_fallthru
      _
    // Predicated region
    $region30: #{ssrn_forward.1} parent=1 // pred_check
      _
    $region31: #{ssrn_forward.1} parent=1 // pred_check_branch
      %55 = sbr.rel (0) target = $region33
    $region32: #{ssrn_forward.1} parent=1 // pred_region
      %57 = vsyncadd [#allocation9], 0
      %s58 = sshll.u32 %s7, 4
      %s59 = int_to_ptr.hbm [resolvable:$true] %s58
      %s60 = sshll.u32 [#allocation10], 4
      %s61 = int_to_ptr.vmem [resolvable:$true] %s60
      %66 = dma.hbm_to_vmem [thread:$0]  %s59, 640, %s61, [#allocation9], 128, 128, 8
    $region33: #{ssrn_forward.1} parent=1 // pred_fallthru
      _
    // Predicated region
    $region34: #{ssrn_forward.1} parent=1 // pred_check
      _
    $region35: #{ssrn_forward.1} parent=1 // pred_check_branch
      %68 = sbr.rel (0) target = $region37
    $region36: #{ssrn_forward.1} parent=1 // pred_region
      %70 = vsyncadd [#allocation12], 0
      %s71 = sshll.u32 %s8, 4
      %s72 = int_to_ptr.hbm [resolvable:$true] %s71
      %s73 = sshll.u32 [#allocation11], 4
      %s74 = int_to_ptr.vmem [resolvable:$true] %s73
      %79 = dma.hbm_to_vmem [thread:$0]  %s72, 1024, %s74, [#allocation12], 64, 64, 4
    $region37: #{ssrn_forward.1} parent=1 // pred_fallthru
      _
    // Predicated region
    $region38: #{ssrn_forward.1} parent=1 // pred_check
      _
    $region39: #{ssrn_forward.1} parent=1 // pred_check_branch
      %81 = sbr.rel (0) target = $region41
    $region40: #{ssrn_forward.1} parent=1 // pred_region
      %83 = dma.done [#allocation6], 21504
    $region41: #{ssrn_forward.1} parent=1 // pred_fallthru
      _
    // Predicated region
    $region42: #{ssrn_forward.1} parent=1 // pred_check
      _
    $region43: #{ssrn_forward.1} parent=1 // pred_check_branch
      %85 = sbr.rel (0) target = $region45
    $region44: #{ssrn_forward.1} parent=1 // pred_region
      %87 = dma.done [#allocation9], 12288
    $region45: #{ssrn_forward.1} parent=1 // pred_fallthru
      _
    // Predicated region
    $region46: #{ssrn_forward.1} parent=1 // pred_check
      _
    $region47: #{ssrn_forward.1} parent=1 // pred_check_branch
      %89 = sbr.rel (0) target = $region49
    $region48: #{ssrn_forward.1} parent=1 // pred_region
      %91 = dma.done [#allocation9], 640
    $region49: #{ssrn_forward.1} parent=1 // pred_fallthru
      _
    // Predicated region
    $region50: #{ssrn_forward.1} parent=1 // pred_check
      _
    $region51: #{ssrn_forward.1} parent=1 // pred_check_branch
      %93 = sbr.rel (0) target = $region53
    $region52: #{ssrn_forward.1} parent=1 // pred_region
      %95 = dma.done [#allocation12], 1024
    $region53: #{ssrn_forward.1} parent=1 // pred_fallthru
      _
    %v97 = vld [vmem:[#allocation11] sm:$0xf]
    %v98 = vld [vmem:[#allocation11 + $0x4] sm:$0xf]
    %v99 = vld [vmem:[#allocation11 + $0x8] sm:$0xf]
    %v100 = vld [vmem:[#allocation11 + $0xc] sm:$0xf]
    %v101 = vld [vmem:[#allocation11 + $0x10] sm:$0xf]
    %v102 = vld [vmem:[#allocation11 + $0x14] sm:$0xf]
    %v103 = vld [vmem:[#allocation11 + $0x18] sm:$0xf]
    %v104 = vld [vmem:[#allocation11 + $0x1c] sm:$0xf]
    %v105 = vld [vmem:[#allocation11 + $0x20] sm:$0xf]
    %v106 = vld [vmem:[#allocation11 + $0x24] sm:$0xf]
    %v107 = vld [vmem:[#allocation11 + $0x28] sm:$0xf]
    %v108 = vld [vmem:[#allocation11 + $0x2c] sm:$0xf]
    %v109 = vld [vmem:[#allocation11 + $0x30] sm:$0xf]
    %v110 = vld [vmem:[#allocation11 + $0x34] sm:$0xf]
    %v111 = vld [vmem:[#allocation11 + $0x38] sm:$0xf]
    %v112 = vld [vmem:[#allocation11 + $0x3c] sm:$0xf]
    %v113 = vld [vmem:[%s0] sm:$0xff]
    %v114 = vld [vmem:[%s0 + $0x8] sm:$0xff]
    %v115 = vld [vmem:[%s0 + $0x10] sm:$0xff]
    %v116 = vld [vmem:[%s0 + $0x18] sm:$0xff]
    %v117 = vld [vmem:[%s0 + $0x20] sm:$0xff]
    %v118 = vld [vmem:[%s0 + $0x28] sm:$0xff]
    %v119 = vld [vmem:[%s0 + $0x30] sm:$0xff]
    %v120 = vld [vmem:[%s0 + $0x38] sm:$0xff]
    %v121 = vld [vmem:[%s0 + $0x40] sm:$0xff]
    %v122 = vld [vmem:[%s0 + $0x48] sm:$0xff]
    %v123 = vld [vmem:[%s0 + $0x50] sm:$0xff]
    %v124 = vld [vmem:[%s0 + $0x58] sm:$0xff]
    %v125 = vld [vmem:[%s0 + $0x60] sm:$0x3]
    %v126 = vld [vmem:[%s1] sm:$0xf]
    %v127 = vld [vmem:[%s1 + $0x4] sm:$0xf]
    %v128 = vpack.c.bf16 %v114, %v113
    %v129 = vpack.c.bf16 %v116, %v115
    %v130 = vpack.c.bf16 %v118, %v117
    %v131 = vpack.c.bf16 %v120, %v119
    %v132 = vpack.c.bf16 %v122, %v121
    %v133 = vpack.c.bf16 %v124, %v123
    %v134 = vpack.c.bf16 %v125, %v125
    %v135 = vld [vmem:[#allocation10] sm:$0x1]
    %v136 = vperm.slane %v135, 0
    %v139 = vunpack.c.l.b16 %v126
    %v140 = vunpack.c.l.b16 %v127
    %v141 = vpack.c.b16 %v140, %v139
    %vm143 = vcmask 130048
    %v145 = vsel %vm143, %v128, 0
    %v148 = vsel %vm143, %v129, 0
    %v151 = vsel %vm143, %v130, 0
    %v154 = vsel %vm143, %v131, 0
    %v157 = vsel %vm143, %v132, 0
    %v160 = vsel %vm143, %v133, 0
    %v163 = vsel %vm143, %v134, 0
    %165 = vmatpush.bf16.msra.mxu0 0
    %166 = vmatpush.bf16.msra.mxu0 0
    %167 = vmatpush.bf16.msra.mxu0 0
    %168 = vmatpush.bf16.msra.mxu0 0
    %169 = vmatpush.bf16.msra.mxu0 0
    %170 = vmatpush.bf16.msra.mxu0 0
    %171 = vmatpush.bf16.msra.mxu0 0
    %172 = vmatpush.bf16.msra.mxu0 %v141
    %173 = vmatmul.bf16.gmra.mxu0 %v145
    %v174 = vpop.f32.mrf.mxu0
    %v175 = vadd.f32 %v136, %v174
    %v176 = vpop.f32.mrf.mxu0
    %v177 = vadd.f32 %v136, %v176
    %178 = vmatmul.bf16.gmra.mxu0 %v148
    %v179 = vpop.f32.mrf.mxu0
    %v180 = vadd.f32 %v136, %v179
    %v181 = vpop.f32.mrf.mxu0
    %v182 = vadd.f32 %v136, %v181
    %183 = vmatmul.bf16.gmra.mxu0 %v151
    %v184 = vpop.f32.mrf.mxu0
    %v185 = vadd.f32 %v136, %v184
    %v186 = vpop.f32.mrf.mxu0
    %v187 = vadd.f32 %v136, %v186
    %188 = vmatmul.bf16.gmra.mxu0 %v154
    %v189 = vpop.f32.mrf.mxu0
    %v190 = vadd.f32 %v136, %v189
    %v191 = vpop.f32.mrf.mxu0
    %v192 = vadd.f32 %v136, %v191
    %193 = vmatmul.bf16.gmra.mxu0 %v157
    %v194 = vpop.f32.mrf.mxu0
    %v195 = vadd.f32 %v136, %v194
    %v196 = vpop.f32.mrf.mxu0
    %v197 = vadd.f32 %v136, %v196
    %198 = vmatmul.bf16.gmra.mxu0 %v160
    %v199 = vpop.f32.mrf.mxu0
    %v200 = vadd.f32 %v136, %v199
    %v201 = vpop.f32.mrf.mxu0
    %v202 = vadd.f32 %v136, %v201
    %203 = vmatmul.bf16.gmra.mxu0 %v163
    %v204 = vpop.f32.mrf.mxu0
    %v205 = vadd.f32 %v136, %v204
    %v206 = vpop.f32.mrf.mxu0
    %207 = vdwg.mxu0
    %v208 = vld [vmem:[#allocation10 + $0x1] sm:$0x1]
    %v209 = vld [vmem:[#allocation10 + $0x2] sm:$0x1]
    %v210 = vadd.f32 %v175, %v177
    %v211 = vadd.f32 %v210, %v180
    %v212 = vadd.f32 %v211, %v182
    %v213 = vadd.f32 %v212, %v185
    %v214 = vadd.f32 %v213, %v187
    %v215 = vadd.f32 %v214, %v190
    %v216 = vadd.f32 %v215, %v192
    %v217 = vadd.f32 %v216, %v195
    %v218 = vadd.f32 %v217, %v197
    %v219 = vadd.f32 %v218, %v200
    %v220 = vadd.f32 %v219, %v202
    %vm221 = vcmask 1041408
    %v222 = vsel %vm221, %v205, 0.0
    %v223 = vadd.f32 %v220, %v222
    %v224 = vrot.slane %v223, 4
    %v225 = vadd.f32 %v223, %v224
    %v226 = vrot.slane %v225, 2
    %v227 = vadd.f32 %v225, %v226
    %v228 = vrot.slane %v227, 1
    %v229 = vadd.f32 %v227, %v228
    %v230 = vpack.c.bf16 %v229, %v229
    %v231 = vunpack.c.l.bf16 %v230
    %v232 = vsub.f32 %v229, %v231
    %v233 = vpack.c.bf16 %v232, %v232
    %v250 = vunpack.c.l.b16 %v97
    %v251 = vunpack.c.l.b16 %v98
    %v252 = vunpack.c.l.b16 %v99
    %v253 = vunpack.c.l.b16 %v100
    %v254 = vunpack.c.l.b16 %v101
    %v255 = vunpack.c.l.b16 %v102
    %v256 = vunpack.c.l.b16 %v103
    %v257 = vunpack.c.l.b16 %v104
    %v258 = vunpack.c.l.b16 %v105
    %v259 = vunpack.c.l.b16 %v106
    %v260 = vunpack.c.l.b16 %v107
    %v261 = vunpack.c.l.b16 %v108
    %v262 = vunpack.c.l.b16 %v109
    %v263 = vunpack.c.l.b16 %v110
    %v264 = vunpack.c.l.b16 %v111
    %v265 = vunpack.c.l.b16 %v112
    %v266 = vpack.c.b16 %v251, %v250
    %v267 = vpack.c.b16 %v253, %v252
    %v268 = vpack.c.b16 %v255, %v254
    %v269 = vpack.c.b16 %v257, %v256
    %v270 = vpack.c.b16 %v259, %v258
    %v271 = vpack.c.b16 %v261, %v260
    %v272 = vpack.c.b16 %v263, %v262
    %v273 = vpack.c.b16 %v265, %v264
    %282 = vmatpush.bf16.msra.mxu0 %v273
    %283 = vmatpush.bf16.msra.mxu0 %v272
    %284 = vmatpush.bf16.msra.mxu0 %v271
    %285 = vmatpush.bf16.msra.mxu0 %v270
    %286 = vmatpush.bf16.msra.mxu0 %v269
    %287 = vmatpush.bf16.msra.mxu0 %v268
    %288 = vmatpush.bf16.msra.mxu0 %v267
    %289 = vmatpush.bf16.msra.mxu0 %v266
    %290 = vmatmul.bf16.gmra.mxu0 %v233
    %v291 = vpop.f32.mrf.mxu0
    %v292 = vadd.f32 0.0, %v291
    %v293 = vpop.f32.mrf.mxu0
    %294 = vdwg.mxu0
    %295 = vmatpush.bf16.msra.mxu0 %v273
    %296 = vmatpush.bf16.msra.mxu0 %v272
    %297 = vmatpush.bf16.msra.mxu0 %v271
    %298 = vmatpush.bf16.msra.mxu0 %v270
    %299 = vmatpush.bf16.msra.mxu0 %v269
    %300 = vmatpush.bf16.msra.mxu0 %v268
    %301 = vmatpush.bf16.msra.mxu0 %v267
    %302 = vmatpush.bf16.msra.mxu0 %v266
    %303 = vmatmul.bf16.gmra.mxu0 %v230
    %v304 = vpop.f32.mrf.mxu0
    %v305 = vadd.f32 %v292, %v304
    %v306 = vpop.f32.mrf.mxu0
    %307 = vdwg.mxu0
    %v308 = vmul.f32 %v305, 0.0020408162
    %v309 = vmul.f32 %v175, %v175
    %v310 = vmul.f32 %v177, %v177
    %v311 = vmul.f32 %v180, %v180
    %v312 = vmul.f32 %v182, %v182
    %v313 = vmul.f32 %v185, %v185
    %v314 = vmul.f32 %v187, %v187
    %v315 = vmul.f32 %v190, %v190
    %v316 = vmul.f32 %v192, %v192
    %v317 = vmul.f32 %v195, %v195
    %v318 = vmul.f32 %v197, %v197
    %v319 = vmul.f32 %v200, %v200
    %v320 = vmul.f32 %v202, %v202
    %v321 = vmul.f32 %v205, %v205
    %v322 = vadd.f32 %v309, %v310
    %v323 = vadd.f32 %v322, %v311
    %v324 = vadd.f32 %v323, %v312
    %v325 = vadd.f32 %v324, %v313
    %v326 = vadd.f32 %v325, %v314
    %v327 = vadd.f32 %v326, %v315
    %v328 = vadd.f32 %v327, %v316
    %v329 = vadd.f32 %v328, %v317
    %v330 = vadd.f32 %v329, %v318
    %v331 = vadd.f32 %v330, %v319
    %v332 = vadd.f32 %v331, %v320
    %v333 = vsel %vm221, %v321, 0.0
    %v334 = vadd.f32 %v332, %v333
    %v335 = vrot.slane %v334, 4
    %v336 = vadd.f32 %v334, %v335
    %v337 = vrot.slane %v336, 2
    %v338 = vadd.f32 %v336, %v337
    %v339 = vrot.slane %v338, 1
    %v340 = vadd.f32 %v338, %v339
    %v341 = vpack.c.bf16 %v340, %v340
    %v342 = vunpack.c.l.bf16 %v341
    %v343 = vsub.f32 %v340, %v342
    %v344 = vpack.c.bf16 %v343, %v343
    %345 = vmatpush.bf16.msra.mxu0 %v273
    %346 = vmatpush.bf16.msra.mxu0 %v272
    %347 = vmatpush.bf16.msra.mxu0 %v271
    %348 = vmatpush.bf16.msra.mxu0 %v270
    %349 = vmatpush.bf16.msra.mxu0 %v269
    %350 = vmatpush.bf16.msra.mxu0 %v268
    %351 = vmatpush.bf16.msra.mxu0 %v267
    %352 = vmatpush.bf16.msra.mxu0 %v266
    %353 = vmatmul.bf16.gmra.mxu0 %v344
    %v354 = vpop.f32.mrf.mxu0
    %v355 = vadd.f32 0.0, %v354
    %v356 = vpop.f32.mrf.mxu0
    %357 = vdwg.mxu0
    %358 = vmatpush.bf16.msra.mxu0 %v273
    %359 = vmatpush.bf16.msra.mxu0 %v272
    %360 = vmatpush.bf16.msra.mxu0 %v271
    %361 = vmatpush.bf16.msra.mxu0 %v270
    %362 = vmatpush.bf16.msra.mxu0 %v269
    %363 = vmatpush.bf16.msra.mxu0 %v268
    %364 = vmatpush.bf16.msra.mxu0 %v267
    %365 = vmatpush.bf16.msra.mxu0 %v266
    %366 = vmatmul.bf16.gmra.mxu0 %v341
    %v367 = vpop.f32.mrf.mxu0
    %v368 = vadd.f32 %v355, %v367
    %v369 = vpop.f32.mrf.mxu0
    %370 = vdwg.mxu0
    %v371 = vmul.f32 %v368, 0.0020408162
    %v372 = vmul.f32 %v308, %v308
    %v373 = vsub.f32 %v371, %v372
    %v374 = vadd.f32 %v373, 0.001
    %v375 = vrsqrt.pop %v374
    %v376 = vmul.f32 %v375, %v374
    %v377 = vmul.f32 %v376, %v375
    %v378 = vmul.f32 0.5, %v377
    %v379 = vsub.f32 1.5, %v378
    %v380 = vmul.f32 %v375, %v379
    %vm381 = vweird.f32 %v374
    %vm382 = vweird.f32 %v375
    %vm383 = vmor %vm381, %vm382
    %v384 = vsel %vm383, %v375, %v380
    %v385 = vmul.f32 %v208, %v384
    %v386 = vperm.slane %v308, 0
    %v387 = vsub.f32 %v175, %v386
    %v388 = vsub.f32 %v177, %v386
    %v389 = vsub.f32 %v180, %v386
    %v390 = vsub.f32 %v182, %v386
    %v391 = vsub.f32 %v185, %v386
    %v392 = vsub.f32 %v187, %v386
    %v393 = vsub.f32 %v190, %v386
    %v394 = vsub.f32 %v192, %v386
    %v395 = vsub.f32 %v195, %v386
    %v396 = vsub.f32 %v197, %v386
    %v397 = vsub.f32 %v200, %v386
    %v398 = vsub.f32 %v202, %v386
    %v399 = vsub.f32 %v205, %v386
    %v400 = vperm.slane %v385, 0
    %v401 = vmul.f32 %v387, %v400
    %v402 = vmul.f32 %v388, %v400
    %v403 = vmul.f32 %v389, %v400
    %v404 = vmul.f32 %v390, %v400
    %v405 = vmul.f32 %v391, %v400
    %v406 = vmul.f32 %v392, %v400
    %v407 = vmul.f32 %v393, %v400
    %v408 = vmul.f32 %v394, %v400
    %v409 = vmul.f32 %v395, %v400
    %v410 = vmul.f32 %v396, %v400
    %v411 = vmul.f32 %v397, %v400
    %v412 = vmul.f32 %v398, %v400
    %v413 = vmul.f32 %v399, %v400
    %v414 = vperm.slane %v209, 0
    %v415 = vadd.f32 %v401, %v414
    %v416 = vadd.f32 %v402, %v414
    %v417 = vadd.f32 %v403, %v414
    %v418 = vadd.f32 %v404, %v414
    %v419 = vadd.f32 %v405, %v414
    %v420 = vadd.f32 %v406, %v414
    %v421 = vadd.f32 %v407, %v414
    %v422 = vadd.f32 %v408, %v414
    %v423 = vadd.f32 %v409, %v414
    %v424 = vadd.f32 %v410, %v414
    %v425 = vadd.f32 %v411, %v414
    %v426 = vadd.f32 %v412, %v414
    %v427 = vadd.f32 %v413, %v414
    %v428 = vmax.f32 %v415, 0.0
    %v429 = vmax.f32 %v416, 0.0
    %v430 = vmax.f32 %v417, 0.0
    %v431 = vmax.f32 %v418, 0.0
    %v432 = vmax.f32 %v419, 0.0
    %v433 = vmax.f32 %v420, 0.0
    %v434 = vmax.f32 %v421, 0.0
    %v435 = vmax.f32 %v422, 0.0
    %v436 = vmax.f32 %v423, 0.0
    %v437 = vmax.f32 %v424, 0.0
    %v438 = vmax.f32 %v425, 0.0
    %v439 = vmax.f32 %v426, 0.0
    %v440 = vmax.f32 %v427, 0.0
    %v441 = vld [vmem:[%s2] sm:$0xf]
    %v442 = vld [vmem:[%s2 + $0x4] sm:$0xf]
    %v443 = vld [vmem:[%s2 + $0x8] sm:$0xf]
    %v444 = vld [vmem:[%s2 + $0xc] sm:$0xf]
    %v445 = vld [vmem:[%s2 + $0x10] sm:$0xf]
    %v446 = vld [vmem:[%s2 + $0x14] sm:$0xf]
    %v447 = vld [vmem:[%s2 + $0x18] sm:$0xf]
    %v448 = vld [vmem:[%s2 + $0x1c] sm:$0xf]
    %v449 = vld [vmem:[%s2 + $0x20] sm:$0xf]
    %v450 = vld [vmem:[%s2 + $0x24] sm:$0xf]
    %v451 = vld [vmem:[%s2 + $0x28] sm:$0xf]
    %v452 = vld [vmem:[%s2 + $0x2c] sm:$0xf]
    %v453 = vld [vmem:[%s2 + $0x30] sm:$0xf]
    %v454 = vld [vmem:[%s2 + $0x34] sm:$0xf]
    %v455 = vld [vmem:[%s2 + $0x38] sm:$0xf]
    %v456 = vld [vmem:[%s2 + $0x3c] sm:$0xf]
    %v457 = vpack.c.bf16 %v429, %v428
    %v458 = vpack.c.bf16 %v431, %v430
    %v459 = vpack.c.bf16 %v433, %v432
    %v460 = vpack.c.bf16 %v435, %v434
    %v461 = vpack.c.bf16 %v437, %v436
    %v462 = vpack.c.bf16 %v439, %v438
    %v463 = vpack.c.bf16 %v440, %v440
    %v464 = vld [vmem:[#allocation10 + $0x3] sm:$0x1]
    %v465 = vperm.slane %v464, 0
    %v482 = vunpack.c.l.b16 %v441
    %v483 = vunpack.c.l.b16 %v442
    %v484 = vunpack.c.l.b16 %v443
    %v485 = vunpack.c.l.b16 %v444
    %v486 = vunpack.c.l.b16 %v445
    %v487 = vunpack.c.l.b16 %v446
    %v488 = vunpack.c.l.b16 %v447
    %v489 = vunpack.c.l.b16 %v448
    %v490 = vunpack.c.l.b16 %v449
    %v491 = vunpack.c.l.b16 %v450
    %v492 = vunpack.c.l.b16 %v451
    %v493 = vunpack.c.l.b16 %v452
    %v494 = vunpack.c.l.b16 %v453
    %v495 = vunpack.c.l.b16 %v454
    %v496 = vunpack.c.l.b16 %v455
    %v497 = vunpack.c.l.b16 %v456
    %v498 = vpack.c.b16 %v483, %v482
    %v499 = vpack.c.b16 %v485, %v484
    %v500 = vpack.c.b16 %v487, %v486
    %v501 = vpack.c.b16 %v489, %v488
    %v502 = vpack.c.b16 %v491, %v490
    %v503 = vpack.c.b16 %v493, %v492
    %v504 = vpack.c.b16 %v495, %v494
    %v505 = vpack.c.b16 %v497, %v496
    %514 = vmatpush.bf16.msra.mxu0 %v505
    %515 = vmatpush.bf16.msra.mxu0 %v504
    %516 = vmatpush.bf16.msra.mxu0 %v503
    %517 = vmatpush.bf16.msra.mxu0 %v502
    %518 = vmatpush.bf16.msra.mxu0 %v501
    %519 = vmatpush.bf16.msra.mxu0 %v500
    %520 = vmatpush.bf16.msra.mxu0 %v499
    %521 = vmatpush.bf16.msra.mxu0 %v498
    %522 = vmatmul.bf16.gmra.mxu0 %v457
    %v523 = vpop.f32.mrf.mxu0
    %v524 = vadd.f32 %v465, %v523
    %v525 = vpop.f32.mrf.mxu0
    %v526 = vadd.f32 %v465, %v525
    %527 = vmatmul.bf16.gmra.mxu0 %v458
    %v528 = vpop.f32.mrf.mxu0
    %v529 = vadd.f32 %v465, %v528
    %v530 = vpop.f32.mrf.mxu0
    %v531 = vadd.f32 %v465, %v530
    %532 = vmatmul.bf16.gmra.mxu0 %v459
    %v533 = vpop.f32.mrf.mxu0
    %v534 = vadd.f32 %v465, %v533
    %v535 = vpop.f32.mrf.mxu0
    %v536 = vadd.f32 %v465, %v535
    %537 = vmatmul.bf16.gmra.mxu0 %v460
    %v538 = vpop.f32.mrf.mxu0
    %v539 = vadd.f32 %v465, %v538
    %v540 = vpop.f32.mrf.mxu0
    %v541 = vadd.f32 %v465, %v540
    %542 = vmatmul.bf16.gmra.mxu0 %v461
    %v543 = vpop.f32.mrf.mxu0
    %v544 = vadd.f32 %v465, %v543
    %v545 = vpop.f32.mrf.mxu0
    %v546 = vadd.f32 %v465, %v545
    %547 = vmatmul.bf16.gmra.mxu0 %v462
    %v548 = vpop.f32.mrf.mxu0
    %v549 = vadd.f32 %v465, %v548
    %v550 = vpop.f32.mrf.mxu0
    %v551 = vadd.f32 %v465, %v550
    %552 = vmatmul.bf16.gmra.mxu0 %v463
    %v553 = vpop.f32.mrf.mxu0
    %v554 = vadd.f32 %v465, %v553
    %v555 = vpop.f32.mrf.mxu0
    %556 = vdwg.mxu0
    %v557 = vmax.f32 %v524, 0.0
    %v558 = vmax.f32 %v526, 0.0
    %v559 = vmax.f32 %v529, 0.0
    %v560 = vmax.f32 %v531, 0.0
    %v561 = vmax.f32 %v534, 0.0
    %v562 = vmax.f32 %v536, 0.0
    %v563 = vmax.f32 %v539, 0.0
    %v564 = vmax.f32 %v541, 0.0
    %v565 = vmax.f32 %v544, 0.0
    %v566 = vmax.f32 %v546, 0.0
    %v567 = vmax.f32 %v549, 0.0
    %v568 = vmax.f32 %v551, 0.0
    %v569 = vmax.f32 %v554, 0.0
    %v570 = vld [vmem:[#allocation10 + $0x4] sm:$0x1]
    %v571 = vld [vmem:[#allocation10 + $0x5] sm:$0x1]
    %v572 = vadd.f32 %v557, %v558
    %v573 = vadd.f32 %v572, %v559
    %v574 = vadd.f32 %v573, %v560
    %v575 = vadd.f32 %v574, %v561
    %v576 = vadd.f32 %v575, %v562
    %v577 = vadd.f32 %v576, %v563
    %v578 = vadd.f32 %v577, %v564
    %v579 = vadd.f32 %v578, %v565
    %v580 = vadd.f32 %v579, %v566
    %v581 = vadd.f32 %v580, %v567
    %v582 = vadd.f32 %v581, %v568
    %v583 = vsel %vm221, %v569, 0.0
    %v584 = vadd.f32 %v582, %v583
    %v585 = vrot.slane %v584, 4
    %v586 = vadd.f32 %v584, %v585
    %v587 = vrot.slane %v586, 2
    %v588 = vadd.f32 %v586, %v587
    %v589 = vrot.slane %v588, 1
    %v590 = vadd.f32 %v588, %v589
    %v591 = vpack.c.bf16 %v590, %v590
    %v592 = vunpack.c.l.bf16 %v591
    %v593 = vsub.f32 %v590, %v592
    %v594 = vpack.c.bf16 %v593, %v593
    %595 = vmatpush.bf16.msra.mxu0 %v273
    %596 = vmatpush.bf16.msra.mxu0 %v272
    %597 = vmatpush.bf16.msra.mxu0 %v271
    %598 = vmatpush.bf16.msra.mxu0 %v270
    %599 = vmatpush.bf16.msra.mxu0 %v269
    %600 = vmatpush.bf16.msra.mxu0 %v268
    %601 = vmatpush.bf16.msra.mxu0 %v267
    %602 = vmatpush.bf16.msra.mxu0 %v266
    %603 = vmatmul.bf16.gmra.mxu0 %v594
    %v604 = vpop.f32.mrf.mxu0
    %v605 = vadd.f32 0.0, %v604
    %v606 = vpop.f32.mrf.mxu0
    %607 = vdwg.mxu0
    %608 = vmatpush.bf16.msra.mxu0 %v273
    %609 = vmatpush.bf16.msra.mxu0 %v272
    %610 = vmatpush.bf16.msra.mxu0 %v271
    %611 = vmatpush.bf16.msra.mxu0 %v270
    %612 = vmatpush.bf16.msra.mxu0 %v269
    %613 = vmatpush.bf16.msra.mxu0 %v268
    %614 = vmatpush.bf16.msra.mxu0 %v267
    %615 = vmatpush.bf16.msra.mxu0 %v266
    %616 = vmatmul.bf16.gmra.mxu0 %v591
    %v617 = vpop.f32.mrf.mxu0
    %v618 = vadd.f32 %v605, %v617
    %v619 = vpop.f32.mrf.mxu0
    %620 = vdwg.mxu0
    %v621 = vmul.f32 %v618, 0.0020408162
    %v622 = vmul.f32 %v557, %v557
    %v623 = vmul.f32 %v558, %v558
    %v624 = vmul.f32 %v559, %v559
    %v625 = vmul.f32 %v560, %v560
    %v626 = vmul.f32 %v561, %v561
    %v627 = vmul.f32 %v562, %v562
    %v628 = vmul.f32 %v563, %v563
    %v629 = vmul.f32 %v564, %v564
    %v630 = vmul.f32 %v565, %v565
    %v631 = vmul.f32 %v566, %v566
    %v632 = vmul.f32 %v567, %v567
    %v633 = vmul.f32 %v568, %v568
    %v634 = vmul.f32 %v569, %v569
    %v635 = vadd.f32 %v622, %v623
    %v636 = vadd.f32 %v635, %v624
    %v637 = vadd.f32 %v636, %v625
    %v638 = vadd.f32 %v637, %v626
    %v639 = vadd.f32 %v638, %v627
    %v640 = vadd.f32 %v639, %v628
    %v641 = vadd.f32 %v640, %v629
    %v642 = vadd.f32 %v641, %v630
    %v643 = vadd.f32 %v642, %v631
    %v644 = vadd.f32 %v643, %v632
    %v645 = vadd.f32 %v644, %v633
    %v646 = vsel %vm221, %v634, 0.0
    %v647 = vadd.f32 %v645, %v646
    %v648 = vrot.slane %v647, 4
    %v649 = vadd.f32 %v647, %v648
    %v650 = vrot.slane %v649, 2
    %v651 = vadd.f32 %v649, %v650
    %v652 = vrot.slane %v651, 1
    %v653 = vadd.f32 %v651, %v652
    %v654 = vpack.c.bf16 %v653, %v653
    %v655 = vunpack.c.l.bf16 %v654
    %v656 = vsub.f32 %v653, %v655
    %v657 = vpack.c.bf16 %v656, %v656
    %658 = vmatpush.bf16.msra.mxu0 %v273
    %659 = vmatpush.bf16.msra.mxu0 %v272
    %660 = vmatpush.bf16.msra.mxu0 %v271
    %661 = vmatpush.bf16.msra.mxu0 %v270
    %662 = vmatpush.bf16.msra.mxu0 %v269
    %663 = vmatpush.bf16.msra.mxu0 %v268
    %664 = vmatpush.bf16.msra.mxu0 %v267
    %665 = vmatpush.bf16.msra.mxu0 %v266
    %666 = vmatmul.bf16.gmra.mxu0 %v657
    %v667 = vpop.f32.mrf.mxu0
    %v668 = vadd.f32 0.0, %v667
    %v669 = vpop.f32.mrf.mxu0
    %670 = vdwg.mxu0
    %671 = vmatpush.bf16.msra.mxu0 %v273
    %672 = vmatpush.bf16.msra.mxu0 %v272
    %673 = vmatpush.bf16.msra.mxu0 %v271
    %674 = vmatpush.bf16.msra.mxu0 %v270
    %675 = vmatpush.bf16.msra.mxu0 %v269
    %676 = vmatpush.bf16.msra.mxu0 %v268
    %677 = vmatpush.bf16.msra.mxu0 %v267
    %678 = vmatpush.bf16.msra.mxu0 %v266
    %679 = vmatmul.bf16.gmra.mxu0 %v654
    %v680 = vpop.f32.mrf.mxu0
    %v681 = vadd.f32 %v668, %v680
    %v682 = vpop.f32.mrf.mxu0
    %683 = vdwg.mxu0
    %v684 = vmul.f32 %v681, 0.0020408162
    %v685 = vmul.f32 %v621, %v621
    %v686 = vsub.f32 %v684, %v685
    %v687 = vadd.f32 %v686, 1e-05
    %v688 = vrsqrt.pop %v687
    %v689 = vmul.f32 %v688, %v687
    %v690 = vmul.f32 %v689, %v688
    %v691 = vmul.f32 0.5, %v690
    %v692 = vsub.f32 1.5, %v691
    %v693 = vmul.f32 %v688, %v692
    %vm694 = vweird.f32 %v687
    %vm695 = vweird.f32 %v688
    %vm696 = vmor %vm694, %vm695
    %v697 = vsel %vm696, %v688, %v693
    %v698 = vmul.f32 %v570, %v697
    %v699 = vperm.slane %v621, 0
    %v700 = vsub.f32 %v557, %v699
    %v701 = vsub.f32 %v558, %v699
    %v702 = vsub.f32 %v559, %v699
    %v703 = vsub.f32 %v560, %v699
    %v704 = vsub.f32 %v561, %v699
    %v705 = vsub.f32 %v562, %v699
    %v706 = vsub.f32 %v563, %v699
    %v707 = vsub.f32 %v564, %v699
    %v708 = vsub.f32 %v565, %v699
    %v709 = vsub.f32 %v566, %v699
    %v710 = vsub.f32 %v567, %v699
    %v711 = vsub.f32 %v568, %v699
    %v712 = vsub.f32 %v569, %v699
    %v713 = vperm.slane %v698, 0
    %v714 = vmul.f32 %v700, %v713
    %v715 = vmul.f32 %v701, %v713
    %v716 = vmul.f32 %v702, %v713
    %v717 = vmul.f32 %v703, %v713
    %v718 = vmul.f32 %v704, %v713
    %v719 = vmul.f32 %v705, %v713
    %v720 = vmul.f32 %v706, %v713
    %v721 = vmul.f32 %v707, %v713
    %v722 = vmul.f32 %v708, %v713
    %v723 = vmul.f32 %v709, %v713
    %v724 = vmul.f32 %v710, %v713
    %v725 = vmul.f32 %v711, %v713
    %v726 = vmul.f32 %v712, %v713
    %v727 = vperm.slane %v571, 0
    %v728 = vadd.f32 %v714, %v727
    %v729 = vadd.f32 %v715, %v727
    %v730 = vadd.f32 %v716, %v727
    %v731 = vadd.f32 %v717, %v727
    %v732 = vadd.f32 %v718, %v727
    %v733 = vadd.f32 %v719, %v727
    %v734 = vadd.f32 %v720, %v727
    %v735 = vadd.f32 %v721, %v727
    %v736 = vadd.f32 %v722, %v727
    %v737 = vadd.f32 %v723, %v727
    %v738 = vadd.f32 %v724, %v727
    %v739 = vadd.f32 %v725, %v727
    %v740 = vadd.f32 %v726, %v727
    %v741 = vmax.f32 %v728, 0.0
    %v742 = vmax.f32 %v729, 0.0
    %v743 = vmax.f32 %v730, 0.0
    %v744 = vmax.f32 %v731, 0.0
    %v745 = vmax.f32 %v732, 0.0
    %v746 = vmax.f32 %v733, 0.0
    %v747 = vmax.f32 %v734, 0.0
    %v748 = vmax.f32 %v735, 0.0
    %v749 = vmax.f32 %v736, 0.0
    %v750 = vmax.f32 %v737, 0.0
    %v751 = vmax.f32 %v738, 0.0
    %v752 = vmax.f32 %v739, 0.0
    %v753 = vmax.f32 %v740, 0.0
    %s754 = scalar_lea.vmem %s2, 64
    %v755 = vld [vmem:[%s754] sm:$0xf]
    %v756 = vld [vmem:[%s754 + $0x4] sm:$0xf]
    %v757 = vld [vmem:[%s754 + $0x8] sm:$0xf]
    %v758 = vld [vmem:[%s754 + $0xc] sm:$0xf]
    %v759 = vld [vmem:[%s754 + $0x10] sm:$0xf]
    %v760 = vld [vmem:[%s754 + $0x14] sm:$0xf]
    %v761 = vld [vmem:[%s754 + $0x18] sm:$0xf]
    %v762 = vld [vmem:[%s754 + $0x1c] sm:$0xf]
    %v763 = vld [vmem:[%s754 + $0x20] sm:$0xf]
    %v764 = vld [vmem:[%s754 + $0x24] sm:$0xf]
    %v765 = vld [vmem:[%s754 + $0x28] sm:$0xf]
    %v766 = vld [vmem:[%s754 + $0x2c] sm:$0xf]
    %v767 = vld [vmem:[%s754 + $0x30] sm:$0xf]
    %v768 = vld [vmem:[%s754 + $0x34] sm:$0xf]
    %v769 = vld [vmem:[%s754 + $0x38] sm:$0xf]
    %v770 = vld [vmem:[%s754 + $0x3c] sm:$0xf]
    %v771 = vpack.c.bf16 %v742, %v741
    %v772 = vpack.c.bf16 %v744, %v743
    %v773 = vpack.c.bf16 %v746, %v745
    %v774 = vpack.c.bf16 %v748, %v747
    %v775 = vpack.c.bf16 %v750, %v749
    %v776 = vpack.c.bf16 %v752, %v751
    %v777 = vpack.c.bf16 %v753, %v753
    %v778 = vld [vmem:[#allocation10 + $0x6] sm:$0x1]
    %v779 = vperm.slane %v778, 0
    %v796 = vunpack.c.l.b16 %v755
    %v797 = vunpack.c.l.b16 %v756
    %v798 = vunpack.c.l.b16 %v757
    %v799 = vunpack.c.l.b16 %v758
    %v800 = vunpack.c.l.b16 %v759
    %v801 = vunpack.c.l.b16 %v760
    %v802 = vunpack.c.l.b16 %v761
    %v803 = vunpack.c.l.b16 %v762
    %v804 = vunpack.c.l.b16 %v763
    %v805 = vunpack.c.l.b16 %v764
    %v806 = vunpack.c.l.b16 %v765
    %v807 = vunpack.c.l.b16 %v766
    %v808 = vunpack.c.l.b16 %v767
    %v809 = vunpack.c.l.b16 %v768
    %v810 = vunpack.c.l.b16 %v769
    %v811 = vunpack.c.l.b16 %v770
    %v812 = vpack.c.b16 %v797, %v796
    %v813 = vpack.c.b16 %v799, %v798
    %v814 = vpack.c.b16 %v801, %v800
    %v815 = vpack.c.b16 %v803, %v802
    %v816 = vpack.c.b16 %v805, %v804
    %v817 = vpack.c.b16 %v807, %v806
    %v818 = vpack.c.b16 %v809, %v808
    %v819 = vpack.c.b16 %v811, %v810
    %828 = vmatpush.bf16.msra.mxu0 %v819
    %829 = vmatpush.bf16.msra.mxu0 %v818
    %830 = vmatpush.bf16.msra.mxu0 %v817
    %831 = vmatpush.bf16.msra.mxu0 %v816
    %832 = vmatpush.bf16.msra.mxu0 %v815
    %833 = vmatpush.bf16.msra.mxu0 %v814
    %834 = vmatpush.bf16.msra.mxu0 %v813
    %835 = vmatpush.bf16.msra.mxu0 %v812
    %836 = vmatmul.bf16.gmra.mxu0 %v771
    %v837 = vpop.f32.mrf.mxu0
    %v838 = vadd.f32 %v779, %v837
    %v839 = vpop.f32.mrf.mxu0
    %v840 = vadd.f32 %v779, %v839
    %841 = vmatmul.bf16.gmra.mxu0 %v772
    %v842 = vpop.f32.mrf.mxu0
    %v843 = vadd.f32 %v779, %v842
    %v844 = vpop.f32.mrf.mxu0
    %v845 = vadd.f32 %v779, %v844
    %846 = vmatmul.bf16.gmra.mxu0 %v773
    %v847 = vpop.f32.mrf.mxu0
    %v848 = vadd.f32 %v779, %v847
    %v849 = vpop.f32.mrf.mxu0
    %v850 = vadd.f32 %v779, %v849
    %851 = vmatmul.bf16.gmra.mxu0 %v774
    %v852 = vpop.f32.mrf.mxu0
    %v853 = vadd.f32 %v779, %v852
    %v854 = vpop.f32.mrf.mxu0
    %v855 = vadd.f32 %v779, %v854
    %856 = vmatmul.bf16.gmra.mxu0 %v775
    %v857 = vpop.f32.mrf.mxu0
    %v858 = vadd.f32 %v779, %v857
    %v859 = vpop.f32.mrf.mxu0
    %v860 = vadd.f32 %v779, %v859
    %861 = vmatmul.bf16.gmra.mxu0 %v776
    %v862 = vpop.f32.mrf.mxu0
    %v863 = vadd.f32 %v779, %v862
    %v864 = vpop.f32.mrf.mxu0
    %v865 = vadd.f32 %v779, %v864
    %866 = vmatmul.bf16.gmra.mxu0 %v777
    %v867 = vpop.f32.mrf.mxu0
    %v868 = vadd.f32 %v779, %v867
    %v869 = vpop.f32.mrf.mxu0
    %870 = vdwg.mxu0
    %v871 = vld [vmem:[#allocation10 + $0x7] sm:$0x1]
    %v872 = vld [vmem:[#allocation10 + $0x8] sm:$0x1]
    %v873 = vadd.f32 %v838, %v840
    %v874 = vadd.f32 %v873, %v843
    %v875 = vadd.f32 %v874, %v845
    %v876 = vadd.f32 %v875, %v848
    %v877 = vadd.f32 %v876, %v850
    %v878 = vadd.f32 %v877, %v853
    %v879 = vadd.f32 %v878, %v855
    %v880 = vadd.f32 %v879, %v858
    %v881 = vadd.f32 %v880, %v860
    %v882 = vadd.f32 %v881, %v863
    %v883 = vadd.f32 %v882, %v865
    %v884 = vsel %vm221, %v868, 0.0
    %v885 = vadd.f32 %v883, %v884
    %v886 = vrot.slane %v885, 4
    %v887 = vadd.f32 %v885, %v886
    %v888 = vrot.slane %v887, 2
    %v889 = vadd.f32 %v887, %v888
    %v890 = vrot.slane %v889, 1
    %v891 = vadd.f32 %v889, %v890
    %v892 = vpack.c.bf16 %v891, %v891
    %v893 = vunpack.c.l.bf16 %v892
    %v894 = vsub.f32 %v891, %v893
    %v895 = vpack.c.bf16 %v894, %v894
    %896 = vmatpush.bf16.msra.mxu0 %v273
    %897 = vmatpush.bf16.msra.mxu0 %v272
    %898 = vmatpush.bf16.msra.mxu0 %v271
    %899 = vmatpush.bf16.msra.mxu0 %v270
    %900 = vmatpush.bf16.msra.mxu0 %v269
    %901 = vmatpush.bf16.msra.mxu0 %v268
    %902 = vmatpush.bf16.msra.mxu0 %v267
    %903 = vmatpush.bf16.msra.mxu0 %v266
    %904 = vmatmul.bf16.gmra.mxu0 %v895
    %v905 = vpop.f32.mrf.mxu0
    %v906 = vadd.f32 0.0, %v905
    %v907 = vpop.f32.mrf.mxu0
    %908 = vdwg.mxu0
    %909 = vmatpush.bf16.msra.mxu0 %v273
    %910 = vmatpush.bf16.msra.mxu0 %v272
    %911 = vmatpush.bf16.msra.mxu0 %v271
    %912 = vmatpush.bf16.msra.mxu0 %v270
    %913 = vmatpush.bf16.msra.mxu0 %v269
    %914 = vmatpush.bf16.msra.mxu0 %v268
    %915 = vmatpush.bf16.msra.mxu0 %v267
    %916 = vmatpush.bf16.msra.mxu0 %v266
    %917 = vmatmul.bf16.gmra.mxu0 %v892
    %v918 = vpop.f32.mrf.mxu0
    %v919 = vadd.f32 %v906, %v918
    %v920 = vpop.f32.mrf.mxu0
    %921 = vdwg.mxu0
    %v922 = vmul.f32 %v919, 0.0020408162
    %v923 = vmul.f32 %v838, %v838
    %v924 = vmul.f32 %v840, %v840
    %v925 = vmul.f32 %v843, %v843
    %v926 = vmul.f32 %v845, %v845
    %v927 = vmul.f32 %v848, %v848
    %v928 = vmul.f32 %v850, %v850
    %v929 = vmul.f32 %v853, %v853
    %v930 = vmul.f32 %v855, %v855
    %v931 = vmul.f32 %v858, %v858
    %v932 = vmul.f32 %v860, %v860
    %v933 = vmul.f32 %v863, %v863
    %v934 = vmul.f32 %v865, %v865
    %v935 = vmul.f32 %v868, %v868
    %v936 = vadd.f32 %v923, %v924
    %v937 = vadd.f32 %v936, %v925
    %v938 = vadd.f32 %v937, %v926
    %v939 = vadd.f32 %v938, %v927
    %v940 = vadd.f32 %v939, %v928
    %v941 = vadd.f32 %v940, %v929
    %v942 = vadd.f32 %v941, %v930
    %v943 = vadd.f32 %v942, %v931
    %v944 = vadd.f32 %v943, %v932
    %v945 = vadd.f32 %v944, %v933
    %v946 = vadd.f32 %v945, %v934
    %v947 = vsel %vm221, %v935, 0.0
    %v948 = vadd.f32 %v946, %v947
    %v949 = vrot.slane %v948, 4
    %v950 = vadd.f32 %v948, %v949
    %v951 = vrot.slane %v950, 2
    %v952 = vadd.f32 %v950, %v951
    %v953 = vrot.slane %v952, 1
    %v954 = vadd.f32 %v952, %v953
    %v955 = vpack.c.bf16 %v954, %v954
    %v956 = vunpack.c.l.bf16 %v955
    %v957 = vsub.f32 %v954, %v956
    %v958 = vpack.c.bf16 %v957, %v957
    %959 = vmatpush.bf16.msra.mxu0 %v273
    %960 = vmatpush.bf16.msra.mxu0 %v272
    %961 = vmatpush.bf16.msra.mxu0 %v271
    %962 = vmatpush.bf16.msra.mxu0 %v270
    %963 = vmatpush.bf16.msra.mxu0 %v269
    %964 = vmatpush.bf16.msra.mxu0 %v268
    %965 = vmatpush.bf16.msra.mxu0 %v267
    %966 = vmatpush.bf16.msra.mxu0 %v266
    %967 = vmatmul.bf16.gmra.mxu0 %v958
    %v968 = vpop.f32.mrf.mxu0
    %v969 = vadd.f32 0.0, %v968
    %v970 = vpop.f32.mrf.mxu0
    %971 = vdwg.mxu0
    %972 = vmatpush.bf16.msra.mxu0 %v273
    %973 = vmatpush.bf16.msra.mxu0 %v272
    %974 = vmatpush.bf16.msra.mxu0 %v271
    %975 = vmatpush.bf16.msra.mxu0 %v270
    %976 = vmatpush.bf16.msra.mxu0 %v269
    %977 = vmatpush.bf16.msra.mxu0 %v268
    %978 = vmatpush.bf16.msra.mxu0 %v267
    %979 = vmatpush.bf16.msra.mxu0 %v266
    %980 = vmatmul.bf16.gmra.mxu0 %v955
    %v981 = vpop.f32.mrf.mxu0
    %v982 = vadd.f32 %v969, %v981
    %v983 = vpop.f32.mrf.mxu0
    %984 = vdwg.mxu0
    %v985 = vmul.f32 %v982, 0.0020408162
    %v986 = vmul.f32 %v922, %v922
    %v987 = vsub.f32 %v985, %v986
    %v988 = vadd.f32 %v987, 1e-05
    %v989 = vrsqrt.pop %v988
    %v990 = vmul.f32 %v989, %v988
    %v991 = vmul.f32 %v990, %v989
    %v992 = vmul.f32 0.5, %v991
    %v993 = vsub.f32 1.5, %v992
    %v994 = vmul.f32 %v989, %v993
    %vm995 = vweird.f32 %v988
    %vm996 = vweird.f32 %v989
    %vm997 = vmor %vm995, %vm996
    %v998 = vsel %vm997, %v989, %v994
    %v999 = vmul.f32 %v871, %v998
    %v1000 = vperm.slane %v922, 0
    %v1001 = vsub.f32 %v838, %v1000
    %v1002 = vsub.f32 %v840, %v1000
    %v1003 = vsub.f32 %v843, %v1000
    %v1004 = vsub.f32 %v845, %v1000
    %v1005 = vsub.f32 %v848, %v1000
    %v1006 = vsub.f32 %v850, %v1000
    %v1007 = vsub.f32 %v853, %v1000
    %v1008 = vsub.f32 %v855, %v1000
    %v1009 = vsub.f32 %v858, %v1000
    %v1010 = vsub.f32 %v860, %v1000
    %v1011 = vsub.f32 %v863, %v1000
    %v1012 = vsub.f32 %v865, %v1000
    %v1013 = vsub.f32 %v868, %v1000
    %v1014 = vperm.slane %v999, 0
    %v1015 = vmul.f32 %v1001, %v1014
    %v1016 = vmul.f32 %v1002, %v1014
    %v1017 = vmul.f32 %v1003, %v1014
    %v1018 = vmul.f32 %v1004, %v1014
    %v1019 = vmul.f32 %v1005, %v1014
    %v1020 = vmul.f32 %v1006, %v1014
    %v1021 = vmul.f32 %v1007, %v1014
    %v1022 = vmul.f32 %v1008, %v1014
    %v1023 = vmul.f32 %v1009, %v1014
    %v1024 = vmul.f32 %v1010, %v1014
    %v1025 = vmul.f32 %v1011, %v1014
    %v1026 = vmul.f32 %v1012, %v1014
    %v1027 = vmul.f32 %v1013, %v1014
    %v1028 = vperm.slane %v872, 0
    %v1029 = vadd.f32 %v1015, %v1028
    %v1030 = vadd.f32 %v1016, %v1028
    %v1031 = vadd.f32 %v1017, %v1028
    %v1032 = vadd.f32 %v1018, %v1028
    %v1033 = vadd.f32 %v1019, %v1028
    %v1034 = vadd.f32 %v1020, %v1028
    %v1035 = vadd.f32 %v1021, %v1028
    %v1036 = vadd.f32 %v1022, %v1028
    %v1037 = vadd.f32 %v1023, %v1028
    %v1038 = vadd.f32 %v1024, %v1028
    %v1039 = vadd.f32 %v1025, %v1028
    %v1040 = vadd.f32 %v1026, %v1028
    %v1041 = vadd.f32 %v1027, %v1028
    %v1042 = vadd.f32 %v1029, %v428
    %v1043 = vadd.f32 %v1030, %v429
    %v1044 = vadd.f32 %v1031, %v430
    %v1045 = vadd.f32 %v1032, %v431
    %v1046 = vadd.f32 %v1033, %v432
    %v1047 = vadd.f32 %v1034, %v433
    %v1048 = vadd.f32 %v1035, %v434
    %v1049 = vadd.f32 %v1036, %v435
    %v1050 = vadd.f32 %v1037, %v436
    %v1051 = vadd.f32 %v1038, %v437
    %v1052 = vadd.f32 %v1039, %v438
    %v1053 = vadd.f32 %v1040, %v439
    %v1054 = vadd.f32 %v1041, %v440
    %v1055 = vmax.f32 %v1042, 0.0
    %v1056 = vmax.f32 %v1043, 0.0
    %v1057 = vmax.f32 %v1044, 0.0
    %v1058 = vmax.f32 %v1045, 0.0
    %v1059 = vmax.f32 %v1046, 0.0
    %v1060 = vmax.f32 %v1047, 0.0
    %v1061 = vmax.f32 %v1048, 0.0
    %v1062 = vmax.f32 %v1049, 0.0
    %v1063 = vmax.f32 %v1050, 0.0
    %v1064 = vmax.f32 %v1051, 0.0
    %v1065 = vmax.f32 %v1052, 0.0
    %v1066 = vmax.f32 %v1053, 0.0
    %v1067 = vmax.f32 %v1054, 0.0
    %s1068 = scalar_lea.vmem %s2, 128
    %v1069 = vld [vmem:[%s1068] sm:$0xf]
    %v1070 = vld [vmem:[%s1068 + $0x4] sm:$0xf]
    %v1071 = vld [vmem:[%s1068 + $0x8] sm:$0xf]
    %v1072 = vld [vmem:[%s1068 + $0xc] sm:$0xf]
    %v1073 = vld [vmem:[%s1068 + $0x10] sm:$0xf]
    %v1074 = vld [vmem:[%s1068 + $0x14] sm:$0xf]
    %v1075 = vld [vmem:[%s1068 + $0x18] sm:$0xf]
    %v1076 = vld [vmem:[%s1068 + $0x1c] sm:$0xf]
    %v1077 = vld [vmem:[%s1068 + $0x20] sm:$0xf]
    %v1078 = vld [vmem:[%s1068 + $0x24] sm:$0xf]
    %v1079 = vld [vmem:[%s1068 + $0x28] sm:$0xf]
    %v1080 = vld [vmem:[%s1068 + $0x2c] sm:$0xf]
    %v1081 = vld [vmem:[%s1068 + $0x30] sm:$0xf]
    %v1082 = vld [vmem:[%s1068 + $0x34] sm:$0xf]
    %v1083 = vld [vmem:[%s1068 + $0x38] sm:$0xf]
    %v1084 = vld [vmem:[%s1068 + $0x3c] sm:$0xf]
    %v1085 = vpack.c.bf16 %v1056, %v1055
    %v1086 = vpack.c.bf16 %v1058, %v1057
    %v1087 = vpack.c.bf16 %v1060, %v1059
    %v1088 = vpack.c.bf16 %v1062, %v1061
    %v1089 = vpack.c.bf16 %v1064, %v1063
    %v1090 = vpack.c.bf16 %v1066, %v1065
    %v1091 = vpack.c.bf16 %v1067, %v1067
    %v1092 = vld [vmem:[#allocation10 + $0x9] sm:$0x1]
    %v1093 = vperm.slane %v1092, 0
    %v1110 = vunpack.c.l.b16 %v1069
    %v1111 = vunpack.c.l.b16 %v1070
    %v1112 = vunpack.c.l.b16 %v1071
    %v1113 = vunpack.c.l.b16 %v1072
    %v1114 = vunpack.c.l.b16 %v1073
    %v1115 = vunpack.c.l.b16 %v1074
    %v1116 = vunpack.c.l.b16 %v1075
    %v1117 = vunpack.c.l.b16 %v1076
    %v1118 = vunpack.c.l.b16 %v1077
    %v1119 = vunpack.c.l.b16 %v1078
    %v1120 = vunpack.c.l.b16 %v1079
    %v1121 = vunpack.c.l.b16 %v1080
    %v1122 = vunpack.c.l.b16 %v1081
    %v1123 = vunpack.c.l.b16 %v1082
    %v1124 = vunpack.c.l.b16 %v1083
    %v1125 = vunpack.c.l.b16 %v1084
    %v1126 = vpack.c.b16 %v1111, %v1110
    %v1127 = vpack.c.b16 %v1113, %v1112
    %v1128 = vpack.c.b16 %v1115, %v1114
    %v1129 = vpack.c.b16 %v1117, %v1116
    %v1130 = vpack.c.b16 %v1119, %v1118
    %v1131 = vpack.c.b16 %v1121, %v1120
    %v1132 = vpack.c.b16 %v1123, %v1122
    %v1133 = vpack.c.b16 %v1125, %v1124
    %1142 = vmatpush.bf16.msra.mxu0 %v1133
    %1143 = vmatpush.bf16.msra.mxu0 %v1132
    %1144 = vmatpush.bf16.msra.mxu0 %v1131
    %1145 = vmatpush.bf16.msra.mxu0 %v1130
    %1146 = vmatpush.bf16.msra.mxu0 %v1129
    %1147 = vmatpush.bf16.msra.mxu0 %v1128
    %1148 = vmatpush.bf16.msra.mxu0 %v1127
    %1149 = vmatpush.bf16.msra.mxu0 %v1126
    %1150 = vmatmul.bf16.gmra.mxu0 %v1085
    %v1151 = vpop.f32.mrf.mxu0
    %v1152 = vadd.f32 %v1093, %v1151
    %v1153 = vpop.f32.mrf.mxu0
    %v1154 = vadd.f32 %v1093, %v1153
    %1155 = vmatmul.bf16.gmra.mxu0 %v1086
    %v1156 = vpop.f32.mrf.mxu0
    %v1157 = vadd.f32 %v1093, %v1156
    %v1158 = vpop.f32.mrf.mxu0
    %v1159 = vadd.f32 %v1093, %v1158
    %1160 = vmatmul.bf16.gmra.mxu0 %v1087
    %v1161 = vpop.f32.mrf.mxu0
    %v1162 = vadd.f32 %v1093, %v1161
    %v1163 = vpop.f32.mrf.mxu0
    %v1164 = vadd.f32 %v1093, %v1163
    %1165 = vmatmul.bf16.gmra.mxu0 %v1088
    %v1166 = vpop.f32.mrf.mxu0
    %v1167 = vadd.f32 %v1093, %v1166
    %v1168 = vpop.f32.mrf.mxu0
    %v1169 = vadd.f32 %v1093, %v1168
    %1170 = vmatmul.bf16.gmra.mxu0 %v1089
    %v1171 = vpop.f32.mrf.mxu0
    %v1172 = vadd.f32 %v1093, %v1171
    %v1173 = vpop.f32.mrf.mxu0
    %v1174 = vadd.f32 %v1093, %v1173
    %1175 = vmatmul.bf16.gmra.mxu0 %v1090
    %v1176 = vpop.f32.mrf.mxu0
    %v1177 = vadd.f32 %v1093, %v1176
    %v1178 = vpop.f32.mrf.mxu0
    %v1179 = vadd.f32 %v1093, %v1178
    %1180 = vmatmul.bf16.gmra.mxu0 %v1091
    %v1181 = vpop.f32.mrf.mxu0
    %v1182 = vadd.f32 %v1093, %v1181
    %v1183 = vpop.f32.mrf.mxu0
    %1184 = vdwg.mxu0
    %v1185 = vmax.f32 %v1152, 0.0
    %v1186 = vmax.f32 %v1154, 0.0
    %v1187 = vmax.f32 %v1157, 0.0
    %v1188 = vmax.f32 %v1159, 0.0
    %v1189 = vmax.f32 %v1162, 0.0
    %v1190 = vmax.f32 %v1164, 0.0
    %v1191 = vmax.f32 %v1167, 0.0
    %v1192 = vmax.f32 %v1169, 0.0
    %v1193 = vmax.f32 %v1172, 0.0
    %v1194 = vmax.f32 %v1174, 0.0
    %v1195 = vmax.f32 %v1177, 0.0
    %v1196 = vmax.f32 %v1179, 0.0
    %v1197 = vmax.f32 %v1182, 0.0
    %v1198 = vld [vmem:[#allocation10 + $0xa] sm:$0x1]
    %v1199 = vld [vmem:[#allocation10 + $0xb] sm:$0x1]
    %v1200 = vadd.f32 %v1185, %v1186
    %v1201 = vadd.f32 %v1200, %v1187
    %v1202 = vadd.f32 %v1201, %v1188
    %v1203 = vadd.f32 %v1202, %v1189
    %v1204 = vadd.f32 %v1203, %v1190
    %v1205 = vadd.f32 %v1204, %v1191
    %v1206 = vadd.f32 %v1205, %v1192
    %v1207 = vadd.f32 %v1206, %v1193
    %v1208 = vadd.f32 %v1207, %v1194
    %v1209 = vadd.f32 %v1208, %v1195
    %v1210 = vadd.f32 %v1209, %v1196
    %v1211 = vsel %vm221, %v1197, 0.0
    %v1212 = vadd.f32 %v1210, %v1211
    %v1213 = vrot.slane %v1212, 4
    %v1214 = vadd.f32 %v1212, %v1213
    %v1215 = vrot.slane %v1214, 2
    %v1216 = vadd.f32 %v1214, %v1215
    %v1217 = vrot.slane %v1216, 1
    %v1218 = vadd.f32 %v1216, %v1217
    %v1219 = vpack.c.bf16 %v1218, %v1218
    %v1220 = vunpack.c.l.bf16 %v1219
    %v1221 = vsub.f32 %v1218, %v1220
    %v1222 = vpack.c.bf16 %v1221, %v1221
    %1223 = vmatpush.bf16.msra.mxu0 %v273
    %1224 = vmatpush.bf16.msra.mxu0 %v272
    %1225 = vmatpush.bf16.msra.mxu0 %v271
    %1226 = vmatpush.bf16.msra.mxu0 %v270
    %1227 = vmatpush.bf16.msra.mxu0 %v269
    %1228 = vmatpush.bf16.msra.mxu0 %v268
    %1229 = vmatpush.bf16.msra.mxu0 %v267
    %1230 = vmatpush.bf16.msra.mxu0 %v266
    %1231 = vmatmul.bf16.gmra.mxu0 %v1222
    %v1232 = vpop.f32.mrf.mxu0
    %v1233 = vadd.f32 0.0, %v1232
    %v1234 = vpop.f32.mrf.mxu0
    %1235 = vdwg.mxu0
    %1236 = vmatpush.bf16.msra.mxu0 %v273
    %1237 = vmatpush.bf16.msra.mxu0 %v272
    %1238 = vmatpush.bf16.msra.mxu0 %v271
    %1239 = vmatpush.bf16.msra.mxu0 %v270
    %1240 = vmatpush.bf16.msra.mxu0 %v269
    %1241 = vmatpush.bf16.msra.mxu0 %v268
    %1242 = vmatpush.bf16.msra.mxu0 %v267
    %1243 = vmatpush.bf16.msra.mxu0 %v266
    %1244 = vmatmul.bf16.gmra.mxu0 %v1219
    %v1245 = vpop.f32.mrf.mxu0
    %v1246 = vadd.f32 %v1233, %v1245
    %v1247 = vpop.f32.mrf.mxu0
    %1248 = vdwg.mxu0
    %v1249 = vmul.f32 %v1246, 0.0020408162
    %v1250 = vmul.f32 %v1185, %v1185
    %v1251 = vmul.f32 %v1186, %v1186
    %v1252 = vmul.f32 %v1187, %v1187
    %v1253 = vmul.f32 %v1188, %v1188
    %v1254 = vmul.f32 %v1189, %v1189
    %v1255 = vmul.f32 %v1190, %v1190
    %v1256 = vmul.f32 %v1191, %v1191
    %v1257 = vmul.f32 %v1192, %v1192
    %v1258 = vmul.f32 %v1193, %v1193
    %v1259 = vmul.f32 %v1194, %v1194
    %v1260 = vmul.f32 %v1195, %v1195
    %v1261 = vmul.f32 %v1196, %v1196
    %v1262 = vmul.f32 %v1197, %v1197
    %v1263 = vadd.f32 %v1250, %v1251
    %v1264 = vadd.f32 %v1263, %v1252
    %v1265 = vadd.f32 %v1264, %v1253
    %v1266 = vadd.f32 %v1265, %v1254
    %v1267 = vadd.f32 %v1266, %v1255
    %v1268 = vadd.f32 %v1267, %v1256
    %v1269 = vadd.f32 %v1268, %v1257
    %v1270 = vadd.f32 %v1269, %v1258
    %v1271 = vadd.f32 %v1270, %v1259
    %v1272 = vadd.f32 %v1271, %v1260
    %v1273 = vadd.f32 %v1272, %v1261
    %v1274 = vsel %vm221, %v1262, 0.0
    %v1275 = vadd.f32 %v1273, %v1274
    %v1276 = vrot.slane %v1275, 4
    %v1277 = vadd.f32 %v1275, %v1276
    %v1278 = vrot.slane %v1277, 2
    %v1279 = vadd.f32 %v1277, %v1278
    %v1280 = vrot.slane %v1279, 1
    %v1281 = vadd.f32 %v1279, %v1280
    %v1282 = vpack.c.bf16 %v1281, %v1281
    %v1283 = vunpack.c.l.bf16 %v1282
    %v1284 = vsub.f32 %v1281, %v1283
    %v1285 = vpack.c.bf16 %v1284, %v1284
    %1286 = vmatpush.bf16.msra.mxu0 %v273
    %1287 = vmatpush.bf16.msra.mxu0 %v272
    %1288 = vmatpush.bf16.msra.mxu0 %v271
    %1289 = vmatpush.bf16.msra.mxu0 %v270
    %1290 = vmatpush.bf16.msra.mxu0 %v269
    %1291 = vmatpush.bf16.msra.mxu0 %v268
    %1292 = vmatpush.bf16.msra.mxu0 %v267
    %1293 = vmatpush.bf16.msra.mxu0 %v266
    %1294 = vmatmul.bf16.gmra.mxu0 %v1285
    %v1295 = vpop.f32.mrf.mxu0
    %v1296 = vadd.f32 0.0, %v1295
    %v1297 = vpop.f32.mrf.mxu0
    %1298 = vdwg.mxu0
    %1299 = vmatpush.bf16.msra.mxu0 %v273
    %1300 = vmatpush.bf16.msra.mxu0 %v272
    %1301 = vmatpush.bf16.msra.mxu0 %v271
    %1302 = vmatpush.bf16.msra.mxu0 %v270
    %1303 = vmatpush.bf16.msra.mxu0 %v269
    %1304 = vmatpush.bf16.msra.mxu0 %v268
    %1305 = vmatpush.bf16.msra.mxu0 %v267
    %1306 = vmatpush.bf16.msra.mxu0 %v266
    %1307 = vmatmul.bf16.gmra.mxu0 %v1282
    %v1308 = vpop.f32.mrf.mxu0
    %v1309 = vadd.f32 %v1296, %v1308
    %v1310 = vpop.f32.mrf.mxu0
    %1311 = vdwg.mxu0
    %v1312 = vmul.f32 %v1309, 0.0020408162
    %v1313 = vmul.f32 %v1249, %v1249
    %v1314 = vsub.f32 %v1312, %v1313
    %v1315 = vadd.f32 %v1314, 1e-05
    %v1316 = vrsqrt.pop %v1315
    %v1317 = vmul.f32 %v1316, %v1315
    %v1318 = vmul.f32 %v1317, %v1316
    %v1319 = vmul.f32 0.5, %v1318
    %v1320 = vsub.f32 1.5, %v1319
    %v1321 = vmul.f32 %v1316, %v1320
    %vm1322 = vweird.f32 %v1315
    %vm1323 = vweird.f32 %v1316
    %vm1324 = vmor %vm1322, %vm1323
    %v1325 = vsel %vm1324, %v1316, %v1321
    %v1326 = vmul.f32 %v1198, %v1325
    %v1327 = vperm.slane %v1249, 0
    %v1328 = vsub.f32 %v1185, %v1327
    %v1329 = vsub.f32 %v1186, %v1327
    %v1330 = vsub.f32 %v1187, %v1327
    %v1331 = vsub.f32 %v1188, %v1327
    %v1332 = vsub.f32 %v1189, %v1327
    %v1333 = vsub.f32 %v1190, %v1327
    %v1334 = vsub.f32 %v1191, %v1327
    %v1335 = vsub.f32 %v1192, %v1327
    %v1336 = vsub.f32 %v1193, %v1327
    %v1337 = vsub.f32 %v1194, %v1327
    %v1338 = vsub.f32 %v1195, %v1327
    %v1339 = vsub.f32 %v1196, %v1327
    %v1340 = vsub.f32 %v1197, %v1327
    %v1341 = vperm.slane %v1326, 0
    %v1342 = vmul.f32 %v1328, %v1341
    %v1343 = vmul.f32 %v1329, %v1341
    %v1344 = vmul.f32 %v1330, %v1341
    %v1345 = vmul.f32 %v1331, %v1341
    %v1346 = vmul.f32 %v1332, %v1341
    %v1347 = vmul.f32 %v1333, %v1341
    %v1348 = vmul.f32 %v1334, %v1341
    %v1349 = vmul.f32 %v1335, %v1341
    %v1350 = vmul.f32 %v1336, %v1341
    %v1351 = vmul.f32 %v1337, %v1341
    %v1352 = vmul.f32 %v1338, %v1341
    %v1353 = vmul.f32 %v1339, %v1341
    %v1354 = vmul.f32 %v1340, %v1341
    %v1355 = vperm.slane %v1199, 0
    %v1356 = vadd.f32 %v1342, %v1355
    %v1357 = vadd.f32 %v1343, %v1355
    %v1358 = vadd.f32 %v1344, %v1355
    %v1359 = vadd.f32 %v1345, %v1355
    %v1360 = vadd.f32 %v1346, %v1355
    %v1361 = vadd.f32 %v1347, %v1355
    %v1362 = vadd.f32 %v1348, %v1355
    %v1363 = vadd.f32 %v1349, %v1355
    %v1364 = vadd.f32 %v1350, %v1355
    %v1365 = vadd.f32 %v1351, %v1355
    %v1366 = vadd.f32 %v1352, %v1355
    %v1367 = vadd.f32 %v1353, %v1355
    %v1368 = vadd.f32 %v1354, %v1355
    %v1369 = vmax.f32 %v1356, 0.0
    %v1370 = vmax.f32 %v1357, 0.0
    %v1371 = vmax.f32 %v1358, 0.0
    %v1372 = vmax.f32 %v1359, 0.0
    %v1373 = vmax.f32 %v1360, 0.0
    %v1374 = vmax.f32 %v1361, 0.0
    %v1375 = vmax.f32 %v1362, 0.0
    %v1376 = vmax.f32 %v1363, 0.0
    %v1377 = vmax.f32 %v1364, 0.0
    %v1378 = vmax.f32 %v1365, 0.0
    %v1379 = vmax.f32 %v1366, 0.0
    %v1380 = vmax.f32 %v1367, 0.0
    %v1381 = vmax.f32 %v1368, 0.0
    %s1382 = scalar_lea.vmem %s2, 192
    %v1383 = vld [vmem:[%s1382] sm:$0xf]
    %v1384 = vld [vmem:[%s1382 + $0x4] sm:$0xf]
    %v1385 = vld [vmem:[%s1382 + $0x8] sm:$0xf]
    %v1386 = vld [vmem:[%s1382 + $0xc] sm:$0xf]
    %v1387 = vld [vmem:[%s1382 + $0x10] sm:$0xf]
    %v1388 = vld [vmem:[%s1382 + $0x14] sm:$0xf]
    %v1389 = vld [vmem:[%s1382 + $0x18] sm:$0xf]
    %v1390 = vld [vmem:[%s1382 + $0x1c] sm:$0xf]
    %v1391 = vld [vmem:[%s1382 + $0x20] sm:$0xf]
    %v1392 = vld [vmem:[%s1382 + $0x24] sm:$0xf]
    %v1393 = vld [vmem:[%s1382 + $0x28] sm:$0xf]
    %v1394 = vld [vmem:[%s1382 + $0x2c] sm:$0xf]
    %v1395 = vld [vmem:[%s1382 + $0x30] sm:$0xf]
    %v1396 = vld [vmem:[%s1382 + $0x34] sm:$0xf]
    %v1397 = vld [vmem:[%s1382 + $0x38] sm:$0xf]
    %v1398 = vld [vmem:[%s1382 + $0x3c] sm:$0xf]
    %v1399 = vpack.c.bf16 %v1370, %v1369
    %v1400 = vpack.c.bf16 %v1372, %v1371
    %v1401 = vpack.c.bf16 %v1374, %v1373
    %v1402 = vpack.c.bf16 %v1376, %v1375
    %v1403 = vpack.c.bf16 %v1378, %v1377
    %v1404 = vpack.c.bf16 %v1380, %v1379
    %v1405 = vpack.c.bf16 %v1381, %v1381
    %v1406 = vld [vmem:[#allocation10 + $0xc] sm:$0x1]
    %v1407 = vperm.slane %v1406, 0
    %v1424 = vunpack.c.l.b16 %v1383
    %v1425 = vunpack.c.l.b16 %v1384
    %v1426 = vunpack.c.l.b16 %v1385
    %v1427 = vunpack.c.l.b16 %v1386
    %v1428 = vunpack.c.l.b16 %v1387
    %v1429 = vunpack.c.l.b16 %v1388
    %v1430 = vunpack.c.l.b16 %v1389
    %v1431 = vunpack.c.l.b16 %v1390
    %v1432 = vunpack.c.l.b16 %v1391
    %v1433 = vunpack.c.l.b16 %v1392
    %v1434 = vunpack.c.l.b16 %v1393
    %v1435 = vunpack.c.l.b16 %v1394
    %v1436 = vunpack.c.l.b16 %v1395
    %v1437 = vunpack.c.l.b16 %v1396
    %v1438 = vunpack.c.l.b16 %v1397
    %v1439 = vunpack.c.l.b16 %v1398
    %v1440 = vpack.c.b16 %v1425, %v1424
    %v1441 = vpack.c.b16 %v1427, %v1426
    %v1442 = vpack.c.b16 %v1429, %v1428
    %v1443 = vpack.c.b16 %v1431, %v1430
    %v1444 = vpack.c.b16 %v1433, %v1432
    %v1445 = vpack.c.b16 %v1435, %v1434
    %v1446 = vpack.c.b16 %v1437, %v1436
    %v1447 = vpack.c.b16 %v1439, %v1438
    %1456 = vmatpush.bf16.msra.mxu0 %v1447
    %1457 = vmatpush.bf16.msra.mxu0 %v1446
    %1458 = vmatpush.bf16.msra.mxu0 %v1445
    %1459 = vmatpush.bf16.msra.mxu0 %v1444
    %1460 = vmatpush.bf16.msra.mxu0 %v1443
    %1461 = vmatpush.bf16.msra.mxu0 %v1442
    %1462 = vmatpush.bf16.msra.mxu0 %v1441
    %1463 = vmatpush.bf16.msra.mxu0 %v1440
    %1464 = vmatmul.bf16.gmra.mxu0 %v1399
    %v1465 = vpop.f32.mrf.mxu0
    %v1466 = vadd.f32 %v1407, %v1465
    %v1467 = vpop.f32.mrf.mxu0
    %v1468 = vadd.f32 %v1407, %v1467
    %1469 = vmatmul.bf16.gmra.mxu0 %v1400
    %v1470 = vpop.f32.mrf.mxu0
    %v1471 = vadd.f32 %v1407, %v1470
    %v1472 = vpop.f32.mrf.mxu0
    %v1473 = vadd.f32 %v1407, %v1472
    %1474 = vmatmul.bf16.gmra.mxu0 %v1401
    %v1475 = vpop.f32.mrf.mxu0
    %v1476 = vadd.f32 %v1407, %v1475
    %v1477 = vpop.f32.mrf.mxu0
    %v1478 = vadd.f32 %v1407, %v1477
    %1479 = vmatmul.bf16.gmra.mxu0 %v1402
    %v1480 = vpop.f32.mrf.mxu0
    %v1481 = vadd.f32 %v1407, %v1480
    %v1482 = vpop.f32.mrf.mxu0
    %v1483 = vadd.f32 %v1407, %v1482
    %1484 = vmatmul.bf16.gmra.mxu0 %v1403
    %v1485 = vpop.f32.mrf.mxu0
    %v1486 = vadd.f32 %v1407, %v1485
    %v1487 = vpop.f32.mrf.mxu0
    %v1488 = vadd.f32 %v1407, %v1487
    %1489 = vmatmul.bf16.gmra.mxu0 %v1404
    %v1490 = vpop.f32.mrf.mxu0
    %v1491 = vadd.f32 %v1407, %v1490
    %v1492 = vpop.f32.mrf.mxu0
    %v1493 = vadd.f32 %v1407, %v1492
    %1494 = vmatmul.bf16.gmra.mxu0 %v1405
    %v1495 = vpop.f32.mrf.mxu0
    %v1496 = vadd.f32 %v1407, %v1495
    %v1497 = vpop.f32.mrf.mxu0
    %1498 = vdwg.mxu0
    %v1499 = vld [vmem:[#allocation10 + $0xd] sm:$0x1]
    %v1500 = vld [vmem:[#allocation10 + $0xe] sm:$0x1]
    %v1501 = vadd.f32 %v1466, %v1468
    %v1502 = vadd.f32 %v1501, %v1471
    %v1503 = vadd.f32 %v1502, %v1473
    %v1504 = vadd.f32 %v1503, %v1476
    %v1505 = vadd.f32 %v1504, %v1478
    %v1506 = vadd.f32 %v1505, %v1481
    %v1507 = vadd.f32 %v1506, %v1483
    %v1508 = vadd.f32 %v1507, %v1486
    %v1509 = vadd.f32 %v1508, %v1488
    %v1510 = vadd.f32 %v1509, %v1491
    %v1511 = vadd.f32 %v1510, %v1493
    %v1512 = vsel %vm221, %v1496, 0.0
    %v1513 = vadd.f32 %v1511, %v1512
    %v1514 = vrot.slane %v1513, 4
    %v1515 = vadd.f32 %v1513, %v1514
    %v1516 = vrot.slane %v1515, 2
    %v1517 = vadd.f32 %v1515, %v1516
    %v1518 = vrot.slane %v1517, 1
    %v1519 = vadd.f32 %v1517, %v1518
    %v1520 = vpack.c.bf16 %v1519, %v1519
    %v1521 = vunpack.c.l.bf16 %v1520
    %v1522 = vsub.f32 %v1519, %v1521
    %v1523 = vpack.c.bf16 %v1522, %v1522
    %1524 = vmatpush.bf16.msra.mxu0 %v273
    %1525 = vmatpush.bf16.msra.mxu0 %v272
    %1526 = vmatpush.bf16.msra.mxu0 %v271
    %1527 = vmatpush.bf16.msra.mxu0 %v270
    %1528 = vmatpush.bf16.msra.mxu0 %v269
    %1529 = vmatpush.bf16.msra.mxu0 %v268
    %1530 = vmatpush.bf16.msra.mxu0 %v267
    %1531 = vmatpush.bf16.msra.mxu0 %v266
    %1532 = vmatmul.bf16.gmra.mxu0 %v1523
    %v1533 = vpop.f32.mrf.mxu0
    %v1534 = vadd.f32 0.0, %v1533
    %v1535 = vpop.f32.mrf.mxu0
    %1536 = vdwg.mxu0
    %1537 = vmatpush.bf16.msra.mxu0 %v273
    %1538 = vmatpush.bf16.msra.mxu0 %v272
    %1539 = vmatpush.bf16.msra.mxu0 %v271
    %1540 = vmatpush.bf16.msra.mxu0 %v270
    %1541 = vmatpush.bf16.msra.mxu0 %v269
    %1542 = vmatpush.bf16.msra.mxu0 %v268
    %1543 = vmatpush.bf16.msra.mxu0 %v267
    %1544 = vmatpush.bf16.msra.mxu0 %v266
    %1545 = vmatmul.bf16.gmra.mxu0 %v1520
    %v1546 = vpop.f32.mrf.mxu0
    %v1547 = vadd.f32 %v1534, %v1546
    %v1548 = vpop.f32.mrf.mxu0
    %1549 = vdwg.mxu0
    %v1550 = vmul.f32 %v1547, 0.0020408162
    %v1551 = vmul.f32 %v1466, %v1466
    %v1552 = vmul.f32 %v1468, %v1468
    %v1553 = vmul.f32 %v1471, %v1471
    %v1554 = vmul.f32 %v1473, %v1473
    %v1555 = vmul.f32 %v1476, %v1476
    %v1556 = vmul.f32 %v1478, %v1478
    %v1557 = vmul.f32 %v1481, %v1481
    %v1558 = vmul.f32 %v1483, %v1483
    %v1559 = vmul.f32 %v1486, %v1486
    %v1560 = vmul.f32 %v1488, %v1488
    %v1561 = vmul.f32 %v1491, %v1491
    %v1562 = vmul.f32 %v1493, %v1493
    %v1563 = vmul.f32 %v1496, %v1496
    %v1564 = vadd.f32 %v1551, %v1552
    %v1565 = vadd.f32 %v1564, %v1553
    %v1566 = vadd.f32 %v1565, %v1554
    %v1567 = vadd.f32 %v1566, %v1555
    %v1568 = vadd.f32 %v1567, %v1556
    %v1569 = vadd.f32 %v1568, %v1557
    %v1570 = vadd.f32 %v1569, %v1558
    %v1571 = vadd.f32 %v1570, %v1559
    %v1572 = vadd.f32 %v1571, %v1560
    %v1573 = vadd.f32 %v1572, %v1561
    %v1574 = vadd.f32 %v1573, %v1562
    %v1575 = vsel %vm221, %v1563, 0.0
    %v1576 = vadd.f32 %v1574, %v1575
    %v1577 = vrot.slane %v1576, 4
    %v1578 = vadd.f32 %v1576, %v1577
    %v1579 = vrot.slane %v1578, 2
    %v1580 = vadd.f32 %v1578, %v1579
    %v1581 = vrot.slane %v1580, 1
    %v1582 = vadd.f32 %v1580, %v1581
    %v1583 = vpack.c.bf16 %v1582, %v1582
    %v1584 = vunpack.c.l.bf16 %v1583
    %v1585 = vsub.f32 %v1582, %v1584
    %v1586 = vpack.c.bf16 %v1585, %v1585
    %1587 = vmatpush.bf16.msra.mxu0 %v273
    %1588 = vmatpush.bf16.msra.mxu0 %v272
    %1589 = vmatpush.bf16.msra.mxu0 %v271
    %1590 = vmatpush.bf16.msra.mxu0 %v270
    %1591 = vmatpush.bf16.msra.mxu0 %v269
    %1592 = vmatpush.bf16.msra.mxu0 %v268
    %1593 = vmatpush.bf16.msra.mxu0 %v267
    %1594 = vmatpush.bf16.msra.mxu0 %v266
    %1595 = vmatmul.bf16.gmra.mxu0 %v1586
    %v1596 = vpop.f32.mrf.mxu0
    %v1597 = vadd.f32 0.0, %v1596
    %v1598 = vpop.f32.mrf.mxu0
    %1599 = vdwg.mxu0
    %1600 = vmatpush.bf16.msra.mxu0 %v273
    %1601 = vmatpush.bf16.msra.mxu0 %v272
    %1602 = vmatpush.bf16.msra.mxu0 %v271
    %1603 = vmatpush.bf16.msra.mxu0 %v270
    %1604 = vmatpush.bf16.msra.mxu0 %v269
    %1605 = vmatpush.bf16.msra.mxu0 %v268
    %1606 = vmatpush.bf16.msra.mxu0 %v267
    %1607 = vmatpush.bf16.msra.mxu0 %v266
    %1608 = vmatmul.bf16.gmra.mxu0 %v1583
    %v1609 = vpop.f32.mrf.mxu0
    %v1610 = vadd.f32 %v1597, %v1609
    %v1611 = vpop.f32.mrf.mxu0
    %1612 = vdwg.mxu0
    %v1613 = vmul.f32 %v1610, 0.0020408162
    %v1614 = vmul.f32 %v1550, %v1550
    %v1615 = vsub.f32 %v1613, %v1614
    %v1616 = vadd.f32 %v1615, 1e-05
    %v1617 = vrsqrt.pop %v1616
    %v1618 = vmul.f32 %v1617, %v1616
    %v1619 = vmul.f32 %v1618, %v1617
    %v1620 = vmul.f32 0.5, %v1619
    %v1621 = vsub.f32 1.5, %v1620
    %v1622 = vmul.f32 %v1617, %v1621
    %vm1623 = vweird.f32 %v1616
    %vm1624 = vweird.f32 %v1617
    %vm1625 = vmor %vm1623, %vm1624
    %v1626 = vsel %vm1625, %v1617, %v1622
    %v1627 = vmul.f32 %v1499, %v1626
    %v1628 = vperm.slane %v1550, 0
    %v1629 = vsub.f32 %v1466, %v1628
    %v1630 = vsub.f32 %v1468, %v1628
    %v1631 = vsub.f32 %v1471, %v1628
    %v1632 = vsub.f32 %v1473, %v1628
    %v1633 = vsub.f32 %v1476, %v1628
    %v1634 = vsub.f32 %v1478, %v1628
    %v1635 = vsub.f32 %v1481, %v1628
    %v1636 = vsub.f32 %v1483, %v1628
    %v1637 = vsub.f32 %v1486, %v1628
    %v1638 = vsub.f32 %v1488, %v1628
    %v1639 = vsub.f32 %v1491, %v1628
    %v1640 = vsub.f32 %v1493, %v1628
    %v1641 = vsub.f32 %v1496, %v1628
    %v1642 = vperm.slane %v1627, 0
    %v1643 = vmul.f32 %v1629, %v1642
    %v1644 = vmul.f32 %v1630, %v1642
    %v1645 = vmul.f32 %v1631, %v1642
    %v1646 = vmul.f32 %v1632, %v1642
    %v1647 = vmul.f32 %v1633, %v1642
    %v1648 = vmul.f32 %v1634, %v1642
    %v1649 = vmul.f32 %v1635, %v1642
    %v1650 = vmul.f32 %v1636, %v1642
    %v1651 = vmul.f32 %v1637, %v1642
    %v1652 = vmul.f32 %v1638, %v1642
    %v1653 = vmul.f32 %v1639, %v1642
    %v1654 = vmul.f32 %v1640, %v1642
    %v1655 = vmul.f32 %v1641, %v1642
    %v1656 = vperm.slane %v1500, 0
    %v1657 = vadd.f32 %v1643, %v1656
    %v1658 = vadd.f32 %v1644, %v1656
    %v1659 = vadd.f32 %v1645, %v1656
    %v1660 = vadd.f32 %v1646, %v1656
    %v1661 = vadd.f32 %v1647, %v1656
    %v1662 = vadd.f32 %v1648, %v1656
    %v1663 = vadd.f32 %v1649, %v1656
    %v1664 = vadd.f32 %v1650, %v1656
    %v1665 = vadd.f32 %v1651, %v1656
    %v1666 = vadd.f32 %v1652, %v1656
    %v1667 = vadd.f32 %v1653, %v1656
    %v1668 = vadd.f32 %v1654, %v1656
    %v1669 = vadd.f32 %v1655, %v1656
    %v1670 = vadd.f32 %v1657, %v1055
    %v1671 = vadd.f32 %v1658, %v1056
    %v1672 = vadd.f32 %v1659, %v1057
    %v1673 = vadd.f32 %v1660, %v1058
    %v1674 = vadd.f32 %v1661, %v1059
    %v1675 = vadd.f32 %v1662, %v1060
    %v1676 = vadd.f32 %v1663, %v1061
    %v1677 = vadd.f32 %v1664, %v1062
    %v1678 = vadd.f32 %v1665, %v1063
    %v1679 = vadd.f32 %v1666, %v1064
    %v1680 = vadd.f32 %v1667, %v1065
    %v1681 = vadd.f32 %v1668, %v1066
    %v1682 = vadd.f32 %v1669, %v1067
    %v1683 = vmax.f32 %v1670, 0.0
    %v1684 = vmax.f32 %v1671, 0.0
    %v1685 = vmax.f32 %v1672, 0.0
    %v1686 = vmax.f32 %v1673, 0.0
    %v1687 = vmax.f32 %v1674, 0.0
    %v1688 = vmax.f32 %v1675, 0.0
    %v1689 = vmax.f32 %v1676, 0.0
    %v1690 = vmax.f32 %v1677, 0.0
    %v1691 = vmax.f32 %v1678, 0.0
    %v1692 = vmax.f32 %v1679, 0.0
    %v1693 = vmax.f32 %v1680, 0.0
    %v1694 = vmax.f32 %v1681, 0.0
    %v1695 = vmax.f32 %v1682, 0.0
    %v1696 = vld [vmem:[%s3] sm:$0xf]
    %v1697 = vld [vmem:[%s3 + $0x4] sm:$0xf]
    %v1698 = vld [vmem:[%s3 + $0x8] sm:$0xf]
    %v1699 = vld [vmem:[%s3 + $0xc] sm:$0xf]
    %v1700 = vld [vmem:[%s3 + $0x10] sm:$0xf]
    %v1701 = vld [vmem:[%s3 + $0x14] sm:$0xf]
    %v1702 = vld [vmem:[%s3 + $0x18] sm:$0xf]
    %v1703 = vld [vmem:[%s3 + $0x1c] sm:$0xf]
    %v1704 = vld [vmem:[%s3 + $0x20] sm:$0xf]
    %v1705 = vld [vmem:[%s3 + $0x24] sm:$0xf]
    %v1706 = vld [vmem:[%s3 + $0x28] sm:$0xf]
    %v1707 = vld [vmem:[%s3 + $0x2c] sm:$0xf]
    %v1708 = vld [vmem:[%s3 + $0x30] sm:$0xf]
    %v1709 = vld [vmem:[%s3 + $0x34] sm:$0xf]
    %v1710 = vld [vmem:[%s3 + $0x38] sm:$0xf]
    %v1711 = vld [vmem:[%s3 + $0x3c] sm:$0xf]
    %v1712 = vpack.c.bf16 %v1684, %v1683
    %v1713 = vpack.c.bf16 %v1686, %v1685
    %v1714 = vpack.c.bf16 %v1688, %v1687
    %v1715 = vpack.c.bf16 %v1690, %v1689
    %v1716 = vpack.c.bf16 %v1692, %v1691
    %v1717 = vpack.c.bf16 %v1694, %v1693
    %v1718 = vpack.c.bf16 %v1695, %v1695
    %v1719 = vld [vmem:[#allocation10 + $0xf] sm:$0x1]
    %v1720 = vperm.slane %v1719, 0
    %v1737 = vunpack.c.l.b16 %v1696
    %v1738 = vunpack.c.l.b16 %v1697
    %v1739 = vunpack.c.l.b16 %v1698
    %v1740 = vunpack.c.l.b16 %v1699
    %v1741 = vunpack.c.l.b16 %v1700
    %v1742 = vunpack.c.l.b16 %v1701
    %v1743 = vunpack.c.l.b16 %v1702
    %v1744 = vunpack.c.l.b16 %v1703
    %v1745 = vunpack.c.l.b16 %v1704
    %v1746 = vunpack.c.l.b16 %v1705
    %v1747 = vunpack.c.l.b16 %v1706
    %v1748 = vunpack.c.l.b16 %v1707
    %v1749 = vunpack.c.l.b16 %v1708
    %v1750 = vunpack.c.l.b16 %v1709
    %v1751 = vunpack.c.l.b16 %v1710
    %v1752 = vunpack.c.l.b16 %v1711
    %v1753 = vpack.c.b16 %v1738, %v1737
    %v1754 = vpack.c.b16 %v1740, %v1739
    %v1755 = vpack.c.b16 %v1742, %v1741
    %v1756 = vpack.c.b16 %v1744, %v1743
    %v1757 = vpack.c.b16 %v1746, %v1745
    %v1758 = vpack.c.b16 %v1748, %v1747
    %v1759 = vpack.c.b16 %v1750, %v1749
    %v1760 = vpack.c.b16 %v1752, %v1751
    %1769 = vmatpush.bf16.msra.mxu0 %v1760
    %1770 = vmatpush.bf16.msra.mxu0 %v1759
    %1771 = vmatpush.bf16.msra.mxu0 %v1758
    %1772 = vmatpush.bf16.msra.mxu0 %v1757
    %1773 = vmatpush.bf16.msra.mxu0 %v1756
    %1774 = vmatpush.bf16.msra.mxu0 %v1755
    %1775 = vmatpush.bf16.msra.mxu0 %v1754
    %1776 = vmatpush.bf16.msra.mxu0 %v1753
    %1777 = vmatmul.bf16.gmra.mxu0 %v1712
    %v1778 = vpop.f32.mrf.mxu0
    %v1779 = vadd.f32 %v1720, %v1778
    %v1780 = vpop.f32.mrf.mxu0
    %v1781 = vadd.f32 %v1720, %v1780
    %1782 = vmatmul.bf16.gmra.mxu0 %v1713
    %v1783 = vpop.f32.mrf.mxu0
    %v1784 = vadd.f32 %v1720, %v1783
    %v1785 = vpop.f32.mrf.mxu0
    %v1786 = vadd.f32 %v1720, %v1785
    %1787 = vmatmul.bf16.gmra.mxu0 %v1714
    %v1788 = vpop.f32.mrf.mxu0
    %v1789 = vadd.f32 %v1720, %v1788
    %v1790 = vpop.f32.mrf.mxu0
    %v1791 = vadd.f32 %v1720, %v1790
    %1792 = vmatmul.bf16.gmra.mxu0 %v1715
    %v1793 = vpop.f32.mrf.mxu0
    %v1794 = vadd.f32 %v1720, %v1793
    %v1795 = vpop.f32.mrf.mxu0
    %v1796 = vadd.f32 %v1720, %v1795
    %1797 = vmatmul.bf16.gmra.mxu0 %v1716
    %v1798 = vpop.f32.mrf.mxu0
    %v1799 = vadd.f32 %v1720, %v1798
    %v1800 = vpop.f32.mrf.mxu0
    %v1801 = vadd.f32 %v1720, %v1800
    %1802 = vmatmul.bf16.gmra.mxu0 %v1717
    %v1803 = vpop.f32.mrf.mxu0
    %v1804 = vadd.f32 %v1720, %v1803
    %v1805 = vpop.f32.mrf.mxu0
    %v1806 = vadd.f32 %v1720, %v1805
    %1807 = vmatmul.bf16.gmra.mxu0 %v1718
    %v1808 = vpop.f32.mrf.mxu0
    %v1809 = vadd.f32 %v1720, %v1808
    %v1810 = vpop.f32.mrf.mxu0
    %1811 = vdwg.mxu0
    %v1812 = vld [vmem:[#allocation10 + $0x10] sm:$0x1]
    %v1813 = vld [vmem:[#allocation10 + $0x11] sm:$0x1]
    %v1814 = vadd.f32 %v1779, %v1781
    %v1815 = vadd.f32 %v1814, %v1784
    %v1816 = vadd.f32 %v1815, %v1786
    %v1817 = vadd.f32 %v1816, %v1789
    %v1818 = vadd.f32 %v1817, %v1791
    %v1819 = vadd.f32 %v1818, %v1794
    %v1820 = vadd.f32 %v1819, %v1796
    %v1821 = vadd.f32 %v1820, %v1799
    %v1822 = vadd.f32 %v1821, %v1801
    %v1823 = vadd.f32 %v1822, %v1804
    %v1824 = vadd.f32 %v1823, %v1806
    %v1825 = vsel %vm221, %v1809, 0.0
    %v1826 = vadd.f32 %v1824, %v1825
    %v1827 = vrot.slane %v1826, 4
    %v1828 = vadd.f32 %v1826, %v1827
    %v1829 = vrot.slane %v1828, 2
    %v1830 = vadd.f32 %v1828, %v1829
    %v1831 = vrot.slane %v1830, 1
    %v1832 = vadd.f32 %v1830, %v1831
    %v1833 = vmul.f32 %v1832, 0.010204081
    %v1834 = vmul.f32 %v1779, %v1779
    %v1835 = vmul.f32 %v1781, %v1781
    %v1836 = vmul.f32 %v1784, %v1784
    %v1837 = vmul.f32 %v1786, %v1786
    %v1838 = vmul.f32 %v1789, %v1789
    %v1839 = vmul.f32 %v1791, %v1791
    %v1840 = vmul.f32 %v1794, %v1794
    %v1841 = vmul.f32 %v1796, %v1796
    %v1842 = vmul.f32 %v1799, %v1799
    %v1843 = vmul.f32 %v1801, %v1801
    %v1844 = vmul.f32 %v1804, %v1804
    %v1845 = vmul.f32 %v1806, %v1806
    %v1846 = vmul.f32 %v1809, %v1809
    %v1847 = vadd.f32 %v1834, %v1835
    %v1848 = vadd.f32 %v1847, %v1836
    %v1849 = vadd.f32 %v1848, %v1837
    %v1850 = vadd.f32 %v1849, %v1838
    %v1851 = vadd.f32 %v1850, %v1839
    %v1852 = vadd.f32 %v1851, %v1840
    %v1853 = vadd.f32 %v1852, %v1841
    %v1854 = vadd.f32 %v1853, %v1842
    %v1855 = vadd.f32 %v1854, %v1843
    %v1856 = vadd.f32 %v1855, %v1844
    %v1857 = vadd.f32 %v1856, %v1845
    %v1858 = vsel %vm221, %v1846, 0.0
    %v1859 = vadd.f32 %v1857, %v1858
    %v1860 = vrot.slane %v1859, 4
    %v1861 = vadd.f32 %v1859, %v1860
    %v1862 = vrot.slane %v1861, 2
    %v1863 = vadd.f32 %v1861, %v1862
    %v1864 = vrot.slane %v1863, 1
    %v1865 = vadd.f32 %v1863, %v1864
    %v1866 = vmul.f32 %v1865, 0.010204081
    %v1867 = vmul.f32 %v1833, %v1833
    %v1868 = vsub.f32 %v1866, %v1867
    %v1869 = vadd.f32 %v1868, 0.001
    %v1870 = vrsqrt.pop %v1869
    %v1871 = vmul.f32 %v1870, %v1869
    %v1872 = vmul.f32 %v1871, %v1870
    %v1873 = vmul.f32 0.5, %v1872
    %v1874 = vsub.f32 1.5, %v1873
    %v1875 = vmul.f32 %v1870, %v1874
    %vm1876 = vweird.f32 %v1869
    %vm1877 = vweird.f32 %v1870
    %vm1878 = vmor %vm1876, %vm1877
    %v1879 = vsel %vm1878, %v1870, %v1875
    %v1880 = vmul.f32 %v1812, %v1879
    %v1881 = vsub.f32 %v1779, %v1833
    %v1882 = vsub.f32 %v1781, %v1833
    %v1883 = vsub.f32 %v1784, %v1833
    %v1884 = vsub.f32 %v1786, %v1833
    %v1885 = vsub.f32 %v1789, %v1833
    %v1886 = vsub.f32 %v1791, %v1833
    %v1887 = vsub.f32 %v1794, %v1833
    %v1888 = vsub.f32 %v1796, %v1833
    %v1889 = vsub.f32 %v1799, %v1833
    %v1890 = vsub.f32 %v1801, %v1833
    %v1891 = vsub.f32 %v1804, %v1833
    %v1892 = vsub.f32 %v1806, %v1833
    %v1893 = vsub.f32 %v1809, %v1833
    %v1894 = vperm.slane %v1880, 0
    %v1895 = vmul.f32 %v1881, %v1894
    %v1896 = vmul.f32 %v1882, %v1894
    %v1897 = vmul.f32 %v1883, %v1894
    %v1898 = vmul.f32 %v1884, %v1894
    %v1899 = vmul.f32 %v1885, %v1894
    %v1900 = vmul.f32 %v1886, %v1894
    %v1901 = vmul.f32 %v1887, %v1894
    %v1902 = vmul.f32 %v1888, %v1894
    %v1903 = vmul.f32 %v1889, %v1894
    %v1904 = vmul.f32 %v1890, %v1894
    %v1905 = vmul.f32 %v1891, %v1894
    %v1906 = vmul.f32 %v1892, %v1894
    %v1907 = vmul.f32 %v1893, %v1894
    %v1908 = vperm.slane %v1813, 0
    %v1909 = vadd.f32 %v1895, %v1908
    %v1910 = vadd.f32 %v1896, %v1908
    %v1911 = vadd.f32 %v1897, %v1908
    %v1912 = vadd.f32 %v1898, %v1908
    %v1913 = vadd.f32 %v1899, %v1908
    %v1914 = vadd.f32 %v1900, %v1908
    %v1915 = vadd.f32 %v1901, %v1908
    %v1916 = vadd.f32 %v1902, %v1908
    %v1917 = vadd.f32 %v1903, %v1908
    %v1918 = vadd.f32 %v1904, %v1908
    %v1919 = vadd.f32 %v1905, %v1908
    %v1920 = vadd.f32 %v1906, %v1908
    %v1921 = vadd.f32 %v1907, %v1908
    %v1922 = vmax.f32 %v1909, 0.0
    %v1923 = vmax.f32 %v1910, 0.0
    %v1924 = vmax.f32 %v1911, 0.0
    %v1925 = vmax.f32 %v1912, 0.0
    %v1926 = vmax.f32 %v1913, 0.0
    %v1927 = vmax.f32 %v1914, 0.0
    %v1928 = vmax.f32 %v1915, 0.0
    %v1929 = vmax.f32 %v1916, 0.0
    %v1930 = vmax.f32 %v1917, 0.0
    %v1931 = vmax.f32 %v1918, 0.0
    %v1932 = vmax.f32 %v1919, 0.0
    %v1933 = vmax.f32 %v1920, 0.0
    %v1934 = vmax.f32 %v1921, 0.0
    %1935 = vst [vmem:[#allocation2] sm:$0xff] %v1922
    %1936 = vst [vmem:[#allocation2 + $0x8] sm:$0xff] %v1923
    %1937 = vst [vmem:[#allocation2 + $0x10] sm:$0xff] %v1924
    %1938 = vst [vmem:[#allocation2 + $0x18] sm:$0xff] %v1925
    %1939 = vst [vmem:[#allocation2 + $0x20] sm:$0xff] %v1926
    %1940 = vst [vmem:[#allocation2 + $0x28] sm:$0xff] %v1927
    %1941 = vst [vmem:[#allocation2 + $0x30] sm:$0xff] %v1928
    %1942 = vst [vmem:[#allocation2 + $0x38] sm:$0xff] %v1929
    %1943 = vst [vmem:[#allocation2 + $0x40] sm:$0xff] %v1930
    %1944 = vst [vmem:[#allocation2 + $0x48] sm:$0xff] %v1931
    %1945 = vst [vmem:[#allocation2 + $0x50] sm:$0xff] %v1932
    %1946 = vst [vmem:[#allocation2 + $0x58] sm:$0xff] %v1933
    %1947 = vst [vmem:[#allocation2 + $0x60] sm:$0x3] %v1934
    %v1948 = vld [vmem:[#allocation10 + $0x12] sm:$0x1]
    %v1949 = vld [vmem:[#allocation2] sm:$0xff]
    %v1950 = vld [vmem:[#allocation2 + $0x8] sm:$0x3]
    %v1951 = vld [vmem:[#allocation2 + $0xe] sm:$0xff]
    %v1952 = vld [vmem:[#allocation2 + $0x16] sm:$0x3]
    %v1953 = vld [vmem:[#allocation2 + $0x1c] sm:$0xff]
    %v1954 = vld [vmem:[#allocation2 + $0x24] sm:$0x3]
    %v1955 = vld [vmem:[#allocation2 + $0x2a] sm:$0xff]
    %v1956 = vld [vmem:[#allocation2 + $0x32] sm:$0x3]
    %v1957 = vld [vmem:[#allocation2 + $0x38] sm:$0xff]
    %v1958 = vld [vmem:[#allocation2 + $0x40] sm:$0x3]
    %v1959 = vld [vmem:[#allocation2 + $0x46] sm:$0xff]
    %v1960 = vld [vmem:[#allocation2 + $0x4e] sm:$0x3]
    %v1961 = vld [vmem:[#allocation2 + $0x54] sm:$0xff]
    %v1962 = vld [vmem:[#allocation2 + $0x5c] sm:$0x3]
    %v1963 = vld [vmem:[#allocation5] sm:$0xf]
    %v1964 = vld [vmem:[#allocation5 + $0x4] sm:$0xf]
    %v1965 = vld [vmem:[#allocation5 + $0x8] sm:$0xf]
    %v1966 = vld [vmem:[#allocation5 + $0xc] sm:$0xf]
    %v1967 = vld [vmem:[#allocation5 + $0x10] sm:$0xf]
    %v1968 = vld [vmem:[#allocation5 + $0x14] sm:$0xf]
    %v1969 = vld [vmem:[#allocation5 + $0x18] sm:$0xf]
    %v1970 = vld [vmem:[#allocation5 + $0x1c] sm:$0xf]
    %v1971 = vld [vmem:[#allocation5 + $0x20] sm:$0xf]
    %v1972 = vld [vmem:[#allocation5 + $0x24] sm:$0xf]
    %v1973 = vld [vmem:[#allocation5 + $0x28] sm:$0xf]
    %v1974 = vld [vmem:[#allocation5 + $0x2c] sm:$0xf]
    %v1975 = vld [vmem:[#allocation5 + $0x30] sm:$0xf]
    %v1976 = vld [vmem:[#allocation5 + $0x34] sm:$0xf]
    %v1977 = vld [vmem:[#allocation5 + $0x38] sm:$0xf]
    %v1978 = vld [vmem:[#allocation5 + $0x3c] sm:$0xf]
    %v1979 = vld [vmem:[#allocation5 + $0x40] sm:$0xf]
    %v1980 = vld [vmem:[#allocation5 + $0x44] sm:$0xf]
    %v1981 = vld [vmem:[#allocation5 + $0x48] sm:$0xf]
    %v1982 = vld [vmem:[#allocation5 + $0x4c] sm:$0xf]
    %v1983 = vld [vmem:[#allocation5 + $0x50] sm:$0xf]
    %v1984 = vld [vmem:[#allocation5 + $0x54] sm:$0xf]
    %v1985 = vld [vmem:[#allocation5 + $0x58] sm:$0xf]
    %v1986 = vld [vmem:[#allocation5 + $0x5c] sm:$0xf]
    %v1987 = vld [vmem:[#allocation5 + $0x60] sm:$0xf]
    %v1988 = vld [vmem:[#allocation5 + $0x64] sm:$0xf]
    %v1989 = vld [vmem:[#allocation5 + $0x68] sm:$0xf]
    %v1990 = vld [vmem:[#allocation5 + $0x6c] sm:$0xf]
    %v1991 = vld [vmem:[#allocation5 + $0x70] sm:$0xf]
    %v1992 = vld [vmem:[#allocation5 + $0x74] sm:$0xf]
    %v1993 = vld [vmem:[#allocation5 + $0x78] sm:$0xf]
    %v1994 = vld [vmem:[#allocation5 + $0x7c] sm:$0xf]
    %v1995 = vld [vmem:[#allocation5 + $0x80] sm:$0xf]
    %v1996 = vld [vmem:[#allocation5 + $0x84] sm:$0xf]
    %v1997 = vld [vmem:[#allocation5 + $0x88] sm:$0xf]
    %v1998 = vld [vmem:[#allocation5 + $0x8c] sm:$0xf]
    %v1999 = vld [vmem:[#allocation5 + $0x90] sm:$0xf]
    %v2000 = vld [vmem:[#allocation5 + $0x94] sm:$0xf]
    %v2001 = vld [vmem:[#allocation5 + $0x98] sm:$0xf]
    %v2002 = vld [vmem:[#allocation5 + $0x9c] sm:$0xf]
    %v2003 = vld [vmem:[#allocation5 + $0xa0] sm:$0xf]
    %v2004 = vld [vmem:[#allocation5 + $0xa4] sm:$0xf]
    %v2005 = vld [vmem:[#allocation5 + $0xa8] sm:$0xf]
    %v2006 = vld [vmem:[#allocation5 + $0xac] sm:$0xf]
    %v2007 = vld [vmem:[#allocation5 + $0xb0] sm:$0xf]
    %v2008 = vld [vmem:[#allocation5 + $0xb4] sm:$0xf]
    %v2009 = vld [vmem:[#allocation5 + $0xb8] sm:$0xf]
    %v2010 = vld [vmem:[#allocation5 + $0xbc] sm:$0xf]
    %v2011 = vld [vmem:[#allocation5 + $0xc0] sm:$0xf]
    %v2012 = vld [vmem:[#allocation5 + $0xc4] sm:$0xf]
    %v2013 = vld [vmem:[#allocation5 + $0xc8] sm:$0xf]
    %v2014 = vld [vmem:[#allocation5 + $0xcc] sm:$0xf]
    %v2015 = vld [vmem:[#allocation5 + $0xd0] sm:$0xf]
    %v2016 = vld [vmem:[#allocation5 + $0xd4] sm:$0xf]
    %v2017 = vld [vmem:[#allocation5 + $0xd8] sm:$0xf]
    %v2018 = vld [vmem:[#allocation5 + $0xdc] sm:$0xf]
    %v2019 = vld [vmem:[#allocation5 + $0xe0] sm:$0xf]
    %v2020 = vld [vmem:[#allocation5 + $0xe4] sm:$0xf]
    %v2021 = vld [vmem:[#allocation5 + $0xe8] sm:$0xf]
    %v2022 = vld [vmem:[#allocation5 + $0xec] sm:$0xf]
    %v2023 = vld [vmem:[#allocation5 + $0xf0] sm:$0xf]
    %v2024 = vld [vmem:[#allocation5 + $0xf4] sm:$0xf]
    %v2025 = vld [vmem:[#allocation5 + $0xf8] sm:$0xf]
    %v2026 = vld [vmem:[#allocation5 + $0xfc] sm:$0xf]
    %v2027 = vld [vmem:[#allocation5 + $0x100] sm:$0xf]
    %v2028 = vld [vmem:[#allocation5 + $0x104] sm:$0xf]
    %v2029 = vld [vmem:[#allocation5 + $0x108] sm:$0xf]
    %v2030 = vld [vmem:[#allocation5 + $0x10c] sm:$0xf]
    %v2031 = vld [vmem:[#allocation5 + $0x110] sm:$0xf]
    %v2032 = vld [vmem:[#allocation5 + $0x114] sm:$0xf]
    %v2033 = vld [vmem:[#allocation5 + $0x118] sm:$0xf]
    %v2034 = vld [vmem:[#allocation5 + $0x11c] sm:$0xf]
    %v2035 = vld [vmem:[#allocation5 + $0x120] sm:$0xf]
    %v2036 = vld [vmem:[#allocation5 + $0x124] sm:$0xf]
    %v2037 = vld [vmem:[#allocation5 + $0x128] sm:$0xf]
    %v2038 = vld [vmem:[#allocation5 + $0x12c] sm:$0xf]
    %v2039 = vld [vmem:[#allocation5 + $0x130] sm:$0xf]
    %v2040 = vld [vmem:[#allocation5 + $0x134] sm:$0xf]
    %v2041 = vld [vmem:[#allocation5 + $0x138] sm:$0xf]
    %v2042 = vld [vmem:[#allocation5 + $0x13c] sm:$0xf]
    %v2043 = vld [vmem:[#allocation5 + $0x140] sm:$0xf]
    %v2044 = vld [vmem:[#allocation5 + $0x144] sm:$0xf]
    %v2045 = vld [vmem:[#allocation5 + $0x148] sm:$0xf]
    %v2046 = vld [vmem:[#allocation5 + $0x14c] sm:$0xf]
    %v2047 = vld [vmem:[#allocation5 + $0x150] sm:$0xf]
    %v2048 = vld [vmem:[#allocation5 + $0x154] sm:$0xf]
    %v2049 = vld [vmem:[#allocation5 + $0x158] sm:$0xf]
    %v2050 = vld [vmem:[#allocation5 + $0x15c] sm:$0xf]
    %v2051 = vld [vmem:[#allocation5 + $0x160] sm:$0xf]
    %v2052 = vld [vmem:[#allocation5 + $0x164] sm:$0xf]
    %v2053 = vld [vmem:[#allocation5 + $0x168] sm:$0xf]
    %v2054 = vld [vmem:[#allocation5 + $0x16c] sm:$0xf]
    %v2055 = vld [vmem:[#allocation5 + $0x170] sm:$0xf]
    %v2056 = vld [vmem:[#allocation5 + $0x174] sm:$0xf]
    %v2057 = vld [vmem:[#allocation5 + $0x178] sm:$0xf]
    %v2058 = vld [vmem:[#allocation5 + $0x17c] sm:$0xf]
    %v2059 = vld [vmem:[#allocation5 + $0x180] sm:$0xf]
    %v2060 = vld [vmem:[#allocation5 + $0x184] sm:$0xf]
    %v2061 = vld [vmem:[#allocation5 + $0x188] sm:$0xf]
    %v2062 = vld [vmem:[#allocation5 + $0x18c] sm:$0xf]
    %v2063 = vld [vmem:[#allocation5 + $0x190] sm:$0xf]
    %v2064 = vld [vmem:[#allocation5 + $0x194] sm:$0xf]
    %v2065 = vld [vmem:[#allocation5 + $0x198] sm:$0xf]
    %v2066 = vld [vmem:[#allocation5 + $0x19c] sm:$0xf]
    %v2067 = vld [vmem:[#allocation5 + $0x1a0] sm:$0xf]
    %v2068 = vld [vmem:[#allocation5 + $0x1a4] sm:$0xf]
    %v2069 = vld [vmem:[#allocation5 + $0x1a8] sm:$0xf]
    %v2070 = vld [vmem:[#allocation5 + $0x1ac] sm:$0xf]
    %v2071 = vld [vmem:[#allocation5 + $0x1b0] sm:$0xf]
    %v2072 = vld [vmem:[#allocation5 + $0x1b4] sm:$0xf]
    %v2073 = vld [vmem:[#allocation5 + $0x1b8] sm:$0xf]
    %v2074 = vld [vmem:[#allocation5 + $0x1bc] sm:$0xf]
    %v2075 = vpack.c.bf16 %v1950, %v1949
    %v2076 = vpack.c.bf16 %v1952, %v1951
    %v2077 = vpack.c.bf16 %v1954, %v1953
    %v2078 = vpack.c.bf16 %v1956, %v1955
    %v2079 = vpack.c.bf16 %v1958, %v1957
    %v2080 = vpack.c.bf16 %v1960, %v1959
    %v2081 = vpack.c.bf16 %v1962, %v1961
    %v2194 = vunpack.c.l.b16 %v1963
    %v2195 = vunpack.c.l.b16 %v1964
    %v2196 = vunpack.c.l.b16 %v1965
    %v2197 = vunpack.c.l.b16 %v1966
    %v2198 = vunpack.c.l.b16 %v1967
    %v2199 = vunpack.c.l.b16 %v1968
    %v2200 = vunpack.c.l.b16 %v1969
    %v2201 = vunpack.c.l.b16 %v1970
    %v2202 = vunpack.c.l.b16 %v1971
    %v2203 = vunpack.c.l.b16 %v1972
    %v2204 = vunpack.c.l.b16 %v1973
    %v2205 = vunpack.c.l.b16 %v1974
    %v2206 = vunpack.c.l.b16 %v1975
    %v2207 = vunpack.c.l.b16 %v1976
    %v2208 = vunpack.c.l.b16 %v1977
    %v2209 = vunpack.c.l.b16 %v1978
    %v2210 = vunpack.c.l.b16 %v1979
    %v2211 = vunpack.c.l.b16 %v1980
    %v2212 = vunpack.c.l.b16 %v1981
    %v2213 = vunpack.c.l.b16 %v1982
    %v2214 = vunpack.c.l.b16 %v1983
    %v2215 = vunpack.c.l.b16 %v1984
    %v2216 = vunpack.c.l.b16 %v1985
    %v2217 = vunpack.c.l.b16 %v1986
    %v2218 = vunpack.c.l.b16 %v1987
    %v2219 = vunpack.c.l.b16 %v1988
    %v2220 = vunpack.c.l.b16 %v1989
    %v2221 = vunpack.c.l.b16 %v1990
    %v2222 = vunpack.c.l.b16 %v1991
    %v2223 = vunpack.c.l.b16 %v1992
    %v2224 = vunpack.c.l.b16 %v1993
    %v2225 = vunpack.c.l.b16 %v1994
    %v2226 = vunpack.c.l.b16 %v1995
    %v2227 = vunpack.c.l.b16 %v1996
    %v2228 = vunpack.c.l.b16 %v1997
    %v2229 = vunpack.c.l.b16 %v1998
    %v2230 = vunpack.c.l.b16 %v1999
    %v2231 = vunpack.c.l.b16 %v2000
    %v2232 = vunpack.c.l.b16 %v2001
    %v2233 = vunpack.c.l.b16 %v2002
    %v2234 = vunpack.c.l.b16 %v2003
    %v2235 = vunpack.c.l.b16 %v2004
    %v2236 = vunpack.c.l.b16 %v2005
    %v2237 = vunpack.c.l.b16 %v2006
    %v2238 = vunpack.c.l.b16 %v2007
    %v2239 = vunpack.c.l.b16 %v2008
    %v2240 = vunpack.c.l.b16 %v2009
    %v2241 = vunpack.c.l.b16 %v2010
    %v2242 = vunpack.c.l.b16 %v2011
    %v2243 = vunpack.c.l.b16 %v2012
    %v2244 = vunpack.c.l.b16 %v2013
    %v2245 = vunpack.c.l.b16 %v2014
    %v2246 = vunpack.c.l.b16 %v2015
    %v2247 = vunpack.c.l.b16 %v2016
    %v2248 = vunpack.c.l.b16 %v2017
    %v2249 = vunpack.c.l.b16 %v2018
    %v2250 = vunpack.c.l.b16 %v2019
    %v2251 = vunpack.c.l.b16 %v2020
    %v2252 = vunpack.c.l.b16 %v2021
    %v2253 = vunpack.c.l.b16 %v2022
    %v2254 = vunpack.c.l.b16 %v2023
    %v2255 = vunpack.c.l.b16 %v2024
    %v2256 = vunpack.c.l.b16 %v2025
    %v2257 = vunpack.c.l.b16 %v2026
    %v2258 = vunpack.c.l.b16 %v2027
    %v2259 = vunpack.c.l.b16 %v2028
    %v2260 = vunpack.c.l.b16 %v2029
    %v2261 = vunpack.c.l.b16 %v2030
    %v2262 = vunpack.c.l.b16 %v2031
    %v2263 = vunpack.c.l.b16 %v2032
    %v2264 = vunpack.c.l.b16 %v2033
    %v2265 = vunpack.c.l.b16 %v2034
    %v2266 = vunpack.c.l.b16 %v2035
    %v2267 = vunpack.c.l.b16 %v2036
    %v2268 = vunpack.c.l.b16 %v2037
    %v2269 = vunpack.c.l.b16 %v2038
    %v2270 = vunpack.c.l.b16 %v2039
    %v2271 = vunpack.c.l.b16 %v2040
    %v2272 = vunpack.c.l.b16 %v2041
    %v2273 = vunpack.c.l.b16 %v2042
    %v2274 = vunpack.c.l.b16 %v2043
    %v2275 = vunpack.c.l.b16 %v2044
    %v2276 = vunpack.c.l.b16 %v2045
    %v2277 = vunpack.c.l.b16 %v2046
    %v2278 = vunpack.c.l.b16 %v2047
    %v2279 = vunpack.c.l.b16 %v2048
    %v2280 = vunpack.c.l.b16 %v2049
    %v2281 = vunpack.c.l.b16 %v2050
    %v2282 = vunpack.c.l.b16 %v2051
    %v2283 = vunpack.c.l.b16 %v2052
    %v2284 = vunpack.c.l.b16 %v2053
    %v2285 = vunpack.c.l.b16 %v2054
    %v2286 = vunpack.c.l.b16 %v2055
    %v2287 = vunpack.c.l.b16 %v2056
    %v2288 = vunpack.c.l.b16 %v2057
    %v2289 = vunpack.c.l.b16 %v2058
    %v2290 = vunpack.c.l.b16 %v2059
    %v2291 = vunpack.c.l.b16 %v2060
    %v2292 = vunpack.c.l.b16 %v2061
    %v2293 = vunpack.c.l.b16 %v2062
    %v2294 = vunpack.c.l.b16 %v2063
    %v2295 = vunpack.c.l.b16 %v2064
    %v2296 = vunpack.c.l.b16 %v2065
    %v2297 = vunpack.c.l.b16 %v2066
    %v2298 = vunpack.c.l.b16 %v2067
    %v2299 = vunpack.c.l.b16 %v2068
    %v2300 = vunpack.c.l.b16 %v2069
    %v2301 = vunpack.c.l.b16 %v2070
    %v2302 = vunpack.c.l.b16 %v2071
    %v2303 = vunpack.c.l.b16 %v2072
    %v2304 = vunpack.c.l.b16 %v2073
    %v2305 = vunpack.c.l.b16 %v2074
    %v2306 = vpack.c.b16 %v2195, %v2194
    %v2307 = vpack.c.b16 %v2197, %v2196
    %v2308 = vpack.c.b16 %v2199, %v2198
    %v2309 = vpack.c.b16 %v2201, %v2200
    %v2310 = vpack.c.b16 %v2203, %v2202
    %v2311 = vpack.c.b16 %v2205, %v2204
    %v2312 = vpack.c.b16 %v2207, %v2206
    %v2313 = vpack.c.b16 %v2209, %v2208
    %v2314 = vpack.c.b16 %v2211, %v2210
    %v2315 = vpack.c.b16 %v2213, %v2212
    %v2316 = vpack.c.b16 %v2215, %v2214
    %v2317 = vpack.c.b16 %v2217, %v2216
    %v2318 = vpack.c.b16 %v2219, %v2218
    %v2319 = vpack.c.b16 %v2221, %v2220
    %v2320 = vpack.c.b16 %v2223, %v2222
    %v2321 = vpack.c.b16 %v2225, %v2224
    %v2322 = vpack.c.b16 %v2227, %v2226
    %v2323 = vpack.c.b16 %v2229, %v2228
    %v2324 = vpack.c.b16 %v2231, %v2230
    %v2325 = vpack.c.b16 %v2233, %v2232
    %v2326 = vpack.c.b16 %v2235, %v2234
    %v2327 = vpack.c.b16 %v2237, %v2236
    %v2328 = vpack.c.b16 %v2239, %v2238
    %v2329 = vpack.c.b16 %v2241, %v2240
    %v2330 = vpack.c.b16 %v2243, %v2242
    %v2331 = vpack.c.b16 %v2245, %v2244
    %v2332 = vpack.c.b16 %v2247, %v2246
    %v2333 = vpack.c.b16 %v2249, %v2248
    %v2334 = vpack.c.b16 %v2251, %v2250
    %v2335 = vpack.c.b16 %v2253, %v2252
    %v2336 = vpack.c.b16 %v2255, %v2254
    %v2337 = vpack.c.b16 %v2257, %v2256
    %v2338 = vpack.c.b16 %v2259, %v2258
    %v2339 = vpack.c.b16 %v2261, %v2260
    %v2340 = vpack.c.b16 %v2263, %v2262
    %v2341 = vpack.c.b16 %v2265, %v2264
    %v2342 = vpack.c.b16 %v2267, %v2266
    %v2343 = vpack.c.b16 %v2269, %v2268
    %v2344 = vpack.c.b16 %v2271, %v2270
    %v2345 = vpack.c.b16 %v2273, %v2272
    %v2346 = vpack.c.b16 %v2275, %v2274
    %v2347 = vpack.c.b16 %v2277, %v2276
    %v2348 = vpack.c.b16 %v2279, %v2278
    %v2349 = vpack.c.b16 %v2281, %v2280
    %v2350 = vpack.c.b16 %v2283, %v2282
    %v2351 = vpack.c.b16 %v2285, %v2284
    %v2352 = vpack.c.b16 %v2287, %v2286
    %v2353 = vpack.c.b16 %v2289, %v2288
    %v2354 = vpack.c.b16 %v2291, %v2290
    %v2355 = vpack.c.b16 %v2293, %v2292
    %v2356 = vpack.c.b16 %v2295, %v2294
    %v2357 = vpack.c.b16 %v2297, %v2296
    %v2358 = vpack.c.b16 %v2299, %v2298
    %v2359 = vpack.c.b16 %v2301, %v2300
    %v2360 = vpack.c.b16 %v2303, %v2302
    %v2361 = vpack.c.b16 %v2305, %v2304
    %2418 = vmatpush.bf16.msra.mxu0 %v2313
    %2419 = vmatpush.bf16.msra.mxu0 %v2312
    %2420 = vmatpush.bf16.msra.mxu0 %v2311
    %2421 = vmatpush.bf16.msra.mxu0 %v2310
    %2422 = vmatpush.bf16.msra.mxu0 %v2309
    %2423 = vmatpush.bf16.msra.mxu0 %v2308
    %2424 = vmatpush.bf16.msra.mxu0 %v2307
    %2425 = vmatpush.bf16.msra.mxu0 %v2306
    %2426 = vmatmul.bf16.gmra.mxu0 %v2075
    %v2427 = vpop.f32.mrf.mxu0
    %v2428 = vadd.f32 0.0, %v2427
    %v2429 = vpop.f32.mrf.mxu0
    %v2430 = vadd.f32 0.0, %v2429
    %2431 = vdwg.mxu0
    %2432 = vmatpush.bf16.msra.mxu0 %v2321
    %2433 = vmatpush.bf16.msra.mxu0 %v2320
    %2434 = vmatpush.bf16.msra.mxu0 %v2319
    %2435 = vmatpush.bf16.msra.mxu0 %v2318
    %2436 = vmatpush.bf16.msra.mxu0 %v2317
    %2437 = vmatpush.bf16.msra.mxu0 %v2316
    %2438 = vmatpush.bf16.msra.mxu0 %v2315
    %2439 = vmatpush.bf16.msra.mxu0 %v2314
    %2440 = vmatmul.bf16.gmra.mxu0 %v2076
    %v2441 = vpop.f32.mrf.mxu0
    %v2442 = vadd.f32 %v2428, %v2441
    %v2443 = vpop.f32.mrf.mxu0
    %v2444 = vadd.f32 %v2430, %v2443
    %2445 = vdwg.mxu0
    %2446 = vmatpush.bf16.msra.mxu0 %v2329
    %2447 = vmatpush.bf16.msra.mxu0 %v2328
    %2448 = vmatpush.bf16.msra.mxu0 %v2327
    %2449 = vmatpush.bf16.msra.mxu0 %v2326
    %2450 = vmatpush.bf16.msra.mxu0 %v2325
    %2451 = vmatpush.bf16.msra.mxu0 %v2324
    %2452 = vmatpush.bf16.msra.mxu0 %v2323
    %2453 = vmatpush.bf16.msra.mxu0 %v2322
    %2454 = vmatmul.bf16.gmra.mxu0 %v2077
    %v2455 = vpop.f32.mrf.mxu0
    %v2456 = vadd.f32 %v2442, %v2455
    %v2457 = vpop.f32.mrf.mxu0
    %v2458 = vadd.f32 %v2444, %v2457
    %2459 = vdwg.mxu0
    %2460 = vmatpush.bf16.msra.mxu0 %v2337
    %2461 = vmatpush.bf16.msra.mxu0 %v2336
    %2462 = vmatpush.bf16.msra.mxu0 %v2335
    %2463 = vmatpush.bf16.msra.mxu0 %v2334
    %2464 = vmatpush.bf16.msra.mxu0 %v2333
    %2465 = vmatpush.bf16.msra.mxu0 %v2332
    %2466 = vmatpush.bf16.msra.mxu0 %v2331
    %2467 = vmatpush.bf16.msra.mxu0 %v2330
    %2468 = vmatmul.bf16.gmra.mxu0 %v2078
    %v2469 = vpop.f32.mrf.mxu0
    %v2470 = vadd.f32 %v2456, %v2469
    %v2471 = vpop.f32.mrf.mxu0
    %v2472 = vadd.f32 %v2458, %v2471
    %2473 = vdwg.mxu0
    %2474 = vmatpush.bf16.msra.mxu0 %v2345
    %2475 = vmatpush.bf16.msra.mxu0 %v2344
    %2476 = vmatpush.bf16.msra.mxu0 %v2343
    %2477 = vmatpush.bf16.msra.mxu0 %v2342
    %2478 = vmatpush.bf16.msra.mxu0 %v2341
    %2479 = vmatpush.bf16.msra.mxu0 %v2340
    %2480 = vmatpush.bf16.msra.mxu0 %v2339
    %2481 = vmatpush.bf16.msra.mxu0 %v2338
    %2482 = vmatmul.bf16.gmra.mxu0 %v2079
    %v2483 = vpop.f32.mrf.mxu0
    %v2484 = vadd.f32 %v2470, %v2483
    %v2485 = vpop.f32.mrf.mxu0
    %v2486 = vadd.f32 %v2472, %v2485
    %2487 = vdwg.mxu0
    %2488 = vmatpush.bf16.msra.mxu0 %v2353
    %2489 = vmatpush.bf16.msra.mxu0 %v2352
    %2490 = vmatpush.bf16.msra.mxu0 %v2351
    %2491 = vmatpush.bf16.msra.mxu0 %v2350
    %2492 = vmatpush.bf16.msra.mxu0 %v2349
    %2493 = vmatpush.bf16.msra.mxu0 %v2348
    %2494 = vmatpush.bf16.msra.mxu0 %v2347
    %2495 = vmatpush.bf16.msra.mxu0 %v2346
    %2496 = vmatmul.bf16.gmra.mxu0 %v2080
    %v2497 = vpop.f32.mrf.mxu0
    %v2498 = vadd.f32 %v2484, %v2497
    %v2499 = vpop.f32.mrf.mxu0
    %v2500 = vadd.f32 %v2486, %v2499
    %2501 = vdwg.mxu0
    %2502 = vmatpush.bf16.msra.mxu0 %v2361
    %2503 = vmatpush.bf16.msra.mxu0 %v2360
    %2504 = vmatpush.bf16.msra.mxu0 %v2359
    %2505 = vmatpush.bf16.msra.mxu0 %v2358
    %2506 = vmatpush.bf16.msra.mxu0 %v2357
    %2507 = vmatpush.bf16.msra.mxu0 %v2356
    %2508 = vmatpush.bf16.msra.mxu0 %v2355
    %2509 = vmatpush.bf16.msra.mxu0 %v2354
    %2510 = vmatmul.bf16.gmra.mxu0 %v2081
    %v2511 = vpop.f32.mrf.mxu0
    %v2512 = vadd.f32 %v2498, %v2511
    %v2513 = vpop.f32.mrf.mxu0
    %v2514 = vadd.f32 %v2500, %v2513
    %2515 = vdwg.mxu0
    %v2516 = vperm.slane %v1948, 0
    %v2517 = vadd.f32 %v2516, %v2512
    %v2518 = vadd.f32 %v2516, %v2514
    %v2519 = vld [vmem:[#allocation2 + $0x2] sm:$0xff]
    %v2520 = vld [vmem:[#allocation2 + $0xa] sm:$0x3]
    %v2521 = vld [vmem:[#allocation2 + $0x10] sm:$0xff]
    %v2522 = vld [vmem:[#allocation2 + $0x18] sm:$0x3]
    %v2523 = vld [vmem:[#allocation2 + $0x1e] sm:$0xff]
    %v2524 = vld [vmem:[#allocation2 + $0x26] sm:$0x3]
    %v2525 = vld [vmem:[#allocation2 + $0x2c] sm:$0xff]
    %v2526 = vld [vmem:[#allocation2 + $0x34] sm:$0x3]
    %v2527 = vld [vmem:[#allocation2 + $0x3a] sm:$0xff]
    %v2528 = vld [vmem:[#allocation2 + $0x42] sm:$0x3]
    %v2529 = vld [vmem:[#allocation2 + $0x48] sm:$0xff]
    %v2530 = vld [vmem:[#allocation2 + $0x50] sm:$0x3]
    %v2531 = vld [vmem:[#allocation2 + $0x56] sm:$0xff]
    %v2532 = vld [vmem:[#allocation2 + $0x5e] sm:$0x3]
    %s2533 = scalar_lea.vmem [#allocation5], 448
    %v2534 = vld [vmem:[%s2533] sm:$0xf]
    %v2535 = vld [vmem:[%s2533 + $0x4] sm:$0xf]
    %v2536 = vld [vmem:[%s2533 + $0x8] sm:$0xf]
    %v2537 = vld [vmem:[%s2533 + $0xc] sm:$0xf]
    %v2538 = vld [vmem:[%s2533 + $0x10] sm:$0xf]
    %v2539 = vld [vmem:[%s2533 + $0x14] sm:$0xf]
    %v2540 = vld [vmem:[%s2533 + $0x18] sm:$0xf]
    %v2541 = vld [vmem:[%s2533 + $0x1c] sm:$0xf]
    %v2542 = vld [vmem:[%s2533 + $0x20] sm:$0xf]
    %v2543 = vld [vmem:[%s2533 + $0x24] sm:$0xf]
    %v2544 = vld [vmem:[%s2533 + $0x28] sm:$0xf]
    %v2545 = vld [vmem:[%s2533 + $0x2c] sm:$0xf]
    %v2546 = vld [vmem:[%s2533 + $0x30] sm:$0xf]
    %v2547 = vld [vmem:[%s2533 + $0x34] sm:$0xf]
    %v2548 = vld [vmem:[%s2533 + $0x38] sm:$0xf]
    %v2549 = vld [vmem:[%s2533 + $0x3c] sm:$0xf]
    %v2550 = vld [vmem:[%s2533 + $0x40] sm:$0xf]
    %v2551 = vld [vmem:[%s2533 + $0x44] sm:$0xf]
    %v2552 = vld [vmem:[%s2533 + $0x48] sm:$0xf]
    %v2553 = vld [vmem:[%s2533 + $0x4c] sm:$0xf]
    %v2554 = vld [vmem:[%s2533 + $0x50] sm:$0xf]
    %v2555 = vld [vmem:[%s2533 + $0x54] sm:$0xf]
    %v2556 = vld [vmem:[%s2533 + $0x58] sm:$0xf]
    %v2557 = vld [vmem:[%s2533 + $0x5c] sm:$0xf]
    %v2558 = vld [vmem:[%s2533 + $0x60] sm:$0xf]
    %v2559 = vld [vmem:[%s2533 + $0x64] sm:$0xf]
    %v2560 = vld [vmem:[%s2533 + $0x68] sm:$0xf]
    %v2561 = vld [vmem:[%s2533 + $0x6c] sm:$0xf]
    %v2562 = vld [vmem:[%s2533 + $0x70] sm:$0xf]
    %v2563 = vld [vmem:[%s2533 + $0x74] sm:$0xf]
    %v2564 = vld [vmem:[%s2533 + $0x78] sm:$0xf]
    %v2565 = vld [vmem:[%s2533 + $0x7c] sm:$0xf]
    %v2566 = vld [vmem:[%s2533 + $0x80] sm:$0xf]
    %v2567 = vld [vmem:[%s2533 + $0x84] sm:$0xf]
    %v2568 = vld [vmem:[%s2533 + $0x88] sm:$0xf]
    %v2569 = vld [vmem:[%s2533 + $0x8c] sm:$0xf]
    %v2570 = vld [vmem:[%s2533 + $0x90] sm:$0xf]
    %v2571 = vld [vmem:[%s2533 + $0x94] sm:$0xf]
    %v2572 = vld [vmem:[%s2533 + $0x98] sm:$0xf]
    %v2573 = vld [vmem:[%s2533 + $0x9c] sm:$0xf]
    %v2574 = vld [vmem:[%s2533 + $0xa0] sm:$0xf]
    %v2575 = vld [vmem:[%s2533 + $0xa4] sm:$0xf]
    %v2576 = vld [vmem:[%s2533 + $0xa8] sm:$0xf]
    %v2577 = vld [vmem:[%s2533 + $0xac] sm:$0xf]
    %v2578 = vld [vmem:[%s2533 + $0xb0] sm:$0xf]
    %v2579 = vld [vmem:[%s2533 + $0xb4] sm:$0xf]
    %v2580 = vld [vmem:[%s2533 + $0xb8] sm:$0xf]
    %v2581 = vld [vmem:[%s2533 + $0xbc] sm:$0xf]
    %v2582 = vld [vmem:[%s2533 + $0xc0] sm:$0xf]
    %v2583 = vld [vmem:[%s2533 + $0xc4] sm:$0xf]
    %v2584 = vld [vmem:[%s2533 + $0xc8] sm:$0xf]
    %v2585 = vld [vmem:[%s2533 + $0xcc] sm:$0xf]
    %v2586 = vld [vmem:[%s2533 + $0xd0] sm:$0xf]
    %v2587 = vld [vmem:[%s2533 + $0xd4] sm:$0xf]
    %v2588 = vld [vmem:[%s2533 + $0xd8] sm:$0xf]
    %v2589 = vld [vmem:[%s2533 + $0xdc] sm:$0xf]
    %v2590 = vld [vmem:[%s2533 + $0xe0] sm:$0xf]
    %v2591 = vld [vmem:[%s2533 + $0xe4] sm:$0xf]
    %v2592 = vld [vmem:[%s2533 + $0xe8] sm:$0xf]
    %v2593 = vld [vmem:[%s2533 + $0xec] sm:$0xf]
    %v2594 = vld [vmem:[%s2533 + $0xf0] sm:$0xf]
    %v2595 = vld [vmem:[%s2533 + $0xf4] sm:$0xf]
    %v2596 = vld [vmem:[%s2533 + $0xf8] sm:$0xf]
    %v2597 = vld [vmem:[%s2533 + $0xfc] sm:$0xf]
    %v2598 = vld [vmem:[%s2533 + $0x100] sm:$0xf]
    %v2599 = vld [vmem:[%s2533 + $0x104] sm:$0xf]
    %v2600 = vld [vmem:[%s2533 + $0x108] sm:$0xf]
    %v2601 = vld [vmem:[%s2533 + $0x10c] sm:$0xf]
    %v2602 = vld [vmem:[%s2533 + $0x110] sm:$0xf]
    %v2603 = vld [vmem:[%s2533 + $0x114] sm:$0xf]
    %v2604 = vld [vmem:[%s2533 + $0x118] sm:$0xf]
    %v2605 = vld [vmem:[%s2533 + $0x11c] sm:$0xf]
    %v2606 = vld [vmem:[%s2533 + $0x120] sm:$0xf]
    %v2607 = vld [vmem:[%s2533 + $0x124] sm:$0xf]
    %v2608 = vld [vmem:[%s2533 + $0x128] sm:$0xf]
    %v2609 = vld [vmem:[%s2533 + $0x12c] sm:$0xf]
    %v2610 = vld [vmem:[%s2533 + $0x130] sm:$0xf]
    %v2611 = vld [vmem:[%s2533 + $0x134] sm:$0xf]
    %v2612 = vld [vmem:[%s2533 + $0x138] sm:$0xf]
    %v2613 = vld [vmem:[%s2533 + $0x13c] sm:$0xf]
    %v2614 = vld [vmem:[%s2533 + $0x140] sm:$0xf]
    %v2615 = vld [vmem:[%s2533 + $0x144] sm:$0xf]
    %v2616 = vld [vmem:[%s2533 + $0x148] sm:$0xf]
    %v2617 = vld [vmem:[%s2533 + $0x14c] sm:$0xf]
    %v2618 = vld [vmem:[%s2533 + $0x150] sm:$0xf]
    %v2619 = vld [vmem:[%s2533 + $0x154] sm:$0xf]
    %v2620 = vld [vmem:[%s2533 + $0x158] sm:$0xf]
    %v2621 = vld [vmem:[%s2533 + $0x15c] sm:$0xf]
    %v2622 = vld [vmem:[%s2533 + $0x160] sm:$0xf]
    %v2623 = vld [vmem:[%s2533 + $0x164] sm:$0xf]
    %v2624 = vld [vmem:[%s2533 + $0x168] sm:$0xf]
    %v2625 = vld [vmem:[%s2533 + $0x16c] sm:$0xf]
    %v2626 = vld [vmem:[%s2533 + $0x170] sm:$0xf]
    %v2627 = vld [vmem:[%s2533 + $0x174] sm:$0xf]
    %v2628 = vld [vmem:[%s2533 + $0x178] sm:$0xf]
    %v2629 = vld [vmem:[%s2533 + $0x17c] sm:$0xf]
    %v2630 = vld [vmem:[%s2533 + $0x180] sm:$0xf]
    %v2631 = vld [vmem:[%s2533 + $0x184] sm:$0xf]
    %v2632 = vld [vmem:[%s2533 + $0x188] sm:$0xf]
    %v2633 = vld [vmem:[%s2533 + $0x18c] sm:$0xf]
    %v2634 = vld [vmem:[%s2533 + $0x190] sm:$0xf]
    %v2635 = vld [vmem:[%s2533 + $0x194] sm:$0xf]
    %v2636 = vld [vmem:[%s2533 + $0x198] sm:$0xf]
    %v2637 = vld [vmem:[%s2533 + $0x19c] sm:$0xf]
    %v2638 = vld [vmem:[%s2533 + $0x1a0] sm:$0xf]
    %v2639 = vld [vmem:[%s2533 + $0x1a4] sm:$0xf]
    %v2640 = vld [vmem:[%s2533 + $0x1a8] sm:$0xf]
    %v2641 = vld [vmem:[%s2533 + $0x1ac] sm:$0xf]
    %v2642 = vld [vmem:[%s2533 + $0x1b0] sm:$0xf]
    %v2643 = vld [vmem:[%s2533 + $0x1b4] sm:$0xf]
    %v2644 = vld [vmem:[%s2533 + $0x1b8] sm:$0xf]
    %v2645 = vld [vmem:[%s2533 + $0x1bc] sm:$0xf]
    %v2646 = vpack.c.bf16 %v2520, %v2519
    %v2647 = vpack.c.bf16 %v2522, %v2521
    %v2648 = vpack.c.bf16 %v2524, %v2523
    %v2649 = vpack.c.bf16 %v2526, %v2525
    %v2650 = vpack.c.bf16 %v2528, %v2527
    %v2651 = vpack.c.bf16 %v2530, %v2529
    %v2652 = vpack.c.bf16 %v2532, %v2531
    %v2765 = vunpack.c.l.b16 %v2534
    %v2766 = vunpack.c.l.b16 %v2535
    %v2767 = vunpack.c.l.b16 %v2536
    %v2768 = vunpack.c.l.b16 %v2537
    %v2769 = vunpack.c.l.b16 %v2538
    %v2770 = vunpack.c.l.b16 %v2539
    %v2771 = vunpack.c.l.b16 %v2540
    %v2772 = vunpack.c.l.b16 %v2541
    %v2773 = vunpack.c.l.b16 %v2542
    %v2774 = vunpack.c.l.b16 %v2543
    %v2775 = vunpack.c.l.b16 %v2544
    %v2776 = vunpack.c.l.b16 %v2545
    %v2777 = vunpack.c.l.b16 %v2546
    %v2778 = vunpack.c.l.b16 %v2547
    %v2779 = vunpack.c.l.b16 %v2548
    %v2780 = vunpack.c.l.b16 %v2549
    %v2781 = vunpack.c.l.b16 %v2550
    %v2782 = vunpack.c.l.b16 %v2551
    %v2783 = vunpack.c.l.b16 %v2552
    %v2784 = vunpack.c.l.b16 %v2553
    %v2785 = vunpack.c.l.b16 %v2554
    %v2786 = vunpack.c.l.b16 %v2555
    %v2787 = vunpack.c.l.b16 %v2556
    %v2788 = vunpack.c.l.b16 %v2557
    %v2789 = vunpack.c.l.b16 %v2558
    %v2790 = vunpack.c.l.b16 %v2559
    %v2791 = vunpack.c.l.b16 %v2560
    %v2792 = vunpack.c.l.b16 %v2561
    %v2793 = vunpack.c.l.b16 %v2562
    %v2794 = vunpack.c.l.b16 %v2563
    %v2795 = vunpack.c.l.b16 %v2564
    %v2796 = vunpack.c.l.b16 %v2565
    %v2797 = vunpack.c.l.b16 %v2566
    %v2798 = vunpack.c.l.b16 %v2567
    %v2799 = vunpack.c.l.b16 %v2568
    %v2800 = vunpack.c.l.b16 %v2569
    %v2801 = vunpack.c.l.b16 %v2570
    %v2802 = vunpack.c.l.b16 %v2571
    %v2803 = vunpack.c.l.b16 %v2572
    %v2804 = vunpack.c.l.b16 %v2573
    %v2805 = vunpack.c.l.b16 %v2574
    %v2806 = vunpack.c.l.b16 %v2575
    %v2807 = vunpack.c.l.b16 %v2576
    %v2808 = vunpack.c.l.b16 %v2577
    %v2809 = vunpack.c.l.b16 %v2578
    %v2810 = vunpack.c.l.b16 %v2579
    %v2811 = vunpack.c.l.b16 %v2580
    %v2812 = vunpack.c.l.b16 %v2581
    %v2813 = vunpack.c.l.b16 %v2582
    %v2814 = vunpack.c.l.b16 %v2583
    %v2815 = vunpack.c.l.b16 %v2584
    %v2816 = vunpack.c.l.b16 %v2585
    %v2817 = vunpack.c.l.b16 %v2586
    %v2818 = vunpack.c.l.b16 %v2587
    %v2819 = vunpack.c.l.b16 %v2588
    %v2820 = vunpack.c.l.b16 %v2589
    %v2821 = vunpack.c.l.b16 %v2590
    %v2822 = vunpack.c.l.b16 %v2591
    %v2823 = vunpack.c.l.b16 %v2592
    %v2824 = vunpack.c.l.b16 %v2593
    %v2825 = vunpack.c.l.b16 %v2594
    %v2826 = vunpack.c.l.b16 %v2595
    %v2827 = vunpack.c.l.b16 %v2596
    %v2828 = vunpack.c.l.b16 %v2597
    %v2829 = vunpack.c.l.b16 %v2598
    %v2830 = vunpack.c.l.b16 %v2599
    %v2831 = vunpack.c.l.b16 %v2600
    %v2832 = vunpack.c.l.b16 %v2601
    %v2833 = vunpack.c.l.b16 %v2602
    %v2834 = vunpack.c.l.b16 %v2603
    %v2835 = vunpack.c.l.b16 %v2604
    %v2836 = vunpack.c.l.b16 %v2605
    %v2837 = vunpack.c.l.b16 %v2606
    %v2838 = vunpack.c.l.b16 %v2607
    %v2839 = vunpack.c.l.b16 %v2608
    %v2840 = vunpack.c.l.b16 %v2609
    %v2841 = vunpack.c.l.b16 %v2610
    %v2842 = vunpack.c.l.b16 %v2611
    %v2843 = vunpack.c.l.b16 %v2612
    %v2844 = vunpack.c.l.b16 %v2613
    %v2845 = vunpack.c.l.b16 %v2614
    %v2846 = vunpack.c.l.b16 %v2615
    %v2847 = vunpack.c.l.b16 %v2616
    %v2848 = vunpack.c.l.b16 %v2617
    %v2849 = vunpack.c.l.b16 %v2618
    %v2850 = vunpack.c.l.b16 %v2619
    %v2851 = vunpack.c.l.b16 %v2620
    %v2852 = vunpack.c.l.b16 %v2621
    %v2853 = vunpack.c.l.b16 %v2622
    %v2854 = vunpack.c.l.b16 %v2623
    %v2855 = vunpack.c.l.b16 %v2624
    %v2856 = vunpack.c.l.b16 %v2625
    %v2857 = vunpack.c.l.b16 %v2626
    %v2858 = vunpack.c.l.b16 %v2627
    %v2859 = vunpack.c.l.b16 %v2628
    %v2860 = vunpack.c.l.b16 %v2629
    %v2861 = vunpack.c.l.b16 %v2630
    %v2862 = vunpack.c.l.b16 %v2631
    %v2863 = vunpack.c.l.b16 %v2632
    %v2864 = vunpack.c.l.b16 %v2633
    %v2865 = vunpack.c.l.b16 %v2634
    %v2866 = vunpack.c.l.b16 %v2635
    %v2867 = vunpack.c.l.b16 %v2636
    %v2868 = vunpack.c.l.b16 %v2637
    %v2869 = vunpack.c.l.b16 %v2638
    %v2870 = vunpack.c.l.b16 %v2639
    %v2871 = vunpack.c.l.b16 %v2640
    %v2872 = vunpack.c.l.b16 %v2641
    %v2873 = vunpack.c.l.b16 %v2642
    %v2874 = vunpack.c.l.b16 %v2643
    %v2875 = vunpack.c.l.b16 %v2644
    %v2876 = vunpack.c.l.b16 %v2645
    %v2877 = vpack.c.b16 %v2766, %v2765
    %v2878 = vpack.c.b16 %v2768, %v2767
    %v2879 = vpack.c.b16 %v2770, %v2769
    %v2880 = vpack.c.b16 %v2772, %v2771
    %v2881 = vpack.c.b16 %v2774, %v2773
    %v2882 = vpack.c.b16 %v2776, %v2775
    %v2883 = vpack.c.b16 %v2778, %v2777
    %v2884 = vpack.c.b16 %v2780, %v2779
    %v2885 = vpack.c.b16 %v2782, %v2781
    %v2886 = vpack.c.b16 %v2784, %v2783
    %v2887 = vpack.c.b16 %v2786, %v2785
    %v2888 = vpack.c.b16 %v2788, %v2787
    %v2889 = vpack.c.b16 %v2790, %v2789
    %v2890 = vpack.c.b16 %v2792, %v2791
    %v2891 = vpack.c.b16 %v2794, %v2793
    %v2892 = vpack.c.b16 %v2796, %v2795
    %v2893 = vpack.c.b16 %v2798, %v2797
    %v2894 = vpack.c.b16 %v2800, %v2799
    %v2895 = vpack.c.b16 %v2802, %v2801
    %v2896 = vpack.c.b16 %v2804, %v2803
    %v2897 = vpack.c.b16 %v2806, %v2805
    %v2898 = vpack.c.b16 %v2808, %v2807
    %v2899 = vpack.c.b16 %v2810, %v2809
    %v2900 = vpack.c.b16 %v2812, %v2811
    %v2901 = vpack.c.b16 %v2814, %v2813
    %v2902 = vpack.c.b16 %v2816, %v2815
    %v2903 = vpack.c.b16 %v2818, %v2817
    %v2904 = vpack.c.b16 %v2820, %v2819
    %v2905 = vpack.c.b16 %v2822, %v2821
    %v2906 = vpack.c.b16 %v2824, %v2823
    %v2907 = vpack.c.b16 %v2826, %v2825
    %v2908 = vpack.c.b16 %v2828, %v2827
    %v2909 = vpack.c.b16 %v2830, %v2829
    %v2910 = vpack.c.b16 %v2832, %v2831
    %v2911 = vpack.c.b16 %v2834, %v2833
    %v2912 = vpack.c.b16 %v2836, %v2835
    %v2913 = vpack.c.b16 %v2838, %v2837
    %v2914 = vpack.c.b16 %v2840, %v2839
    %v2915 = vpack.c.b16 %v2842, %v2841
    %v2916 = vpack.c.b16 %v2844, %v2843
    %v2917 = vpack.c.b16 %v2846, %v2845
    %v2918 = vpack.c.b16 %v2848, %v2847
    %v2919 = vpack.c.b16 %v2850, %v2849
    %v2920 = vpack.c.b16 %v2852, %v2851
    %v2921 = vpack.c.b16 %v2854, %v2853
    %v2922 = vpack.c.b16 %v2856, %v2855
    %v2923 = vpack.c.b16 %v2858, %v2857
    %v2924 = vpack.c.b16 %v2860, %v2859
    %v2925 = vpack.c.b16 %v2862, %v2861
    %v2926 = vpack.c.b16 %v2864, %v2863
    %v2927 = vpack.c.b16 %v2866, %v2865
    %v2928 = vpack.c.b16 %v2868, %v2867
    %v2929 = vpack.c.b16 %v2870, %v2869
    %v2930 = vpack.c.b16 %v2872, %v2871
    %v2931 = vpack.c.b16 %v2874, %v2873
    %v2932 = vpack.c.b16 %v2876, %v2875
    %2989 = vmatpush.bf16.msra.mxu0 %v2884
    %2990 = vmatpush.bf16.msra.mxu0 %v2883
    %2991 = vmatpush.bf16.msra.mxu0 %v2882
    %2992 = vmatpush.bf16.msra.mxu0 %v2881
    %2993 = vmatpush.bf16.msra.mxu0 %v2880
    %2994 = vmatpush.bf16.msra.mxu0 %v2879
    %2995 = vmatpush.bf16.msra.mxu0 %v2878
    %2996 = vmatpush.bf16.msra.mxu0 %v2877
    %2997 = vmatmul.bf16.gmra.mxu0 %v2646
    %v2998 = vpop.f32.mrf.mxu0
    %v2999 = vadd.f32 0.0, %v2998
    %v3000 = vpop.f32.mrf.mxu0
    %v3001 = vadd.f32 0.0, %v3000
    %3002 = vdwg.mxu0
    %3003 = vmatpush.bf16.msra.mxu0 %v2892
    %3004 = vmatpush.bf16.msra.mxu0 %v2891
    %3005 = vmatpush.bf16.msra.mxu0 %v2890
    %3006 = vmatpush.bf16.msra.mxu0 %v2889
    %3007 = vmatpush.bf16.msra.mxu0 %v2888
    %3008 = vmatpush.bf16.msra.mxu0 %v2887
    %3009 = vmatpush.bf16.msra.mxu0 %v2886
    %3010 = vmatpush.bf16.msra.mxu0 %v2885
    %3011 = vmatmul.bf16.gmra.mxu0 %v2647
    %v3012 = vpop.f32.mrf.mxu0
    %v3013 = vadd.f32 %v2999, %v3012
    %v3014 = vpop.f32.mrf.mxu0
    %v3015 = vadd.f32 %v3001, %v3014
    %3016 = vdwg.mxu0
    %3017 = vmatpush.bf16.msra.mxu0 %v2900
    %3018 = vmatpush.bf16.msra.mxu0 %v2899
    %3019 = vmatpush.bf16.msra.mxu0 %v2898
    %3020 = vmatpush.bf16.msra.mxu0 %v2897
    %3021 = vmatpush.bf16.msra.mxu0 %v2896
    %3022 = vmatpush.bf16.msra.mxu0 %v2895
    %3023 = vmatpush.bf16.msra.mxu0 %v2894
    %3024 = vmatpush.bf16.msra.mxu0 %v2893
    %3025 = vmatmul.bf16.gmra.mxu0 %v2648
    %v3026 = vpop.f32.mrf.mxu0
    %v3027 = vadd.f32 %v3013, %v3026
    %v3028 = vpop.f32.mrf.mxu0
    %v3029 = vadd.f32 %v3015, %v3028
    %3030 = vdwg.mxu0
    %3031 = vmatpush.bf16.msra.mxu0 %v2908
    %3032 = vmatpush.bf16.msra.mxu0 %v2907
    %3033 = vmatpush.bf16.msra.mxu0 %v2906
    %3034 = vmatpush.bf16.msra.mxu0 %v2905
    %3035 = vmatpush.bf16.msra.mxu0 %v2904
    %3036 = vmatpush.bf16.msra.mxu0 %v2903
    %3037 = vmatpush.bf16.msra.mxu0 %v2902
    %3038 = vmatpush.bf16.msra.mxu0 %v2901
    %3039 = vmatmul.bf16.gmra.mxu0 %v2649
    %v3040 = vpop.f32.mrf.mxu0
    %v3041 = vadd.f32 %v3027, %v3040
    %v3042 = vpop.f32.mrf.mxu0
    %v3043 = vadd.f32 %v3029, %v3042
    %3044 = vdwg.mxu0
    %3045 = vmatpush.bf16.msra.mxu0 %v2916
    %3046 = vmatpush.bf16.msra.mxu0 %v2915
    %3047 = vmatpush.bf16.msra.mxu0 %v2914
    %3048 = vmatpush.bf16.msra.mxu0 %v2913
    %3049 = vmatpush.bf16.msra.mxu0 %v2912
    %3050 = vmatpush.bf16.msra.mxu0 %v2911
    %3051 = vmatpush.bf16.msra.mxu0 %v2910
    %3052 = vmatpush.bf16.msra.mxu0 %v2909
    %3053 = vmatmul.bf16.gmra.mxu0 %v2650
    %v3054 = vpop.f32.mrf.mxu0
    %v3055 = vadd.f32 %v3041, %v3054
    %v3056 = vpop.f32.mrf.mxu0
    %v3057 = vadd.f32 %v3043, %v3056
    %3058 = vdwg.mxu0
    %3059 = vmatpush.bf16.msra.mxu0 %v2924
    %3060 = vmatpush.bf16.msra.mxu0 %v2923
    %3061 = vmatpush.bf16.msra.mxu0 %v2922
    %3062 = vmatpush.bf16.msra.mxu0 %v2921
    %3063 = vmatpush.bf16.msra.mxu0 %v2920
    %3064 = vmatpush.bf16.msra.mxu0 %v2919
    %3065 = vmatpush.bf16.msra.mxu0 %v2918
    %3066 = vmatpush.bf16.msra.mxu0 %v2917
    %3067 = vmatmul.bf16.gmra.mxu0 %v2651
    %v3068 = vpop.f32.mrf.mxu0
    %v3069 = vadd.f32 %v3055, %v3068
    %v3070 = vpop.f32.mrf.mxu0
    %v3071 = vadd.f32 %v3057, %v3070
    %3072 = vdwg.mxu0
    %3073 = vmatpush.bf16.msra.mxu0 %v2932
    %3074 = vmatpush.bf16.msra.mxu0 %v2931
    %3075 = vmatpush.bf16.msra.mxu0 %v2930
    %3076 = vmatpush.bf16.msra.mxu0 %v2929
    %3077 = vmatpush.bf16.msra.mxu0 %v2928
    %3078 = vmatpush.bf16.msra.mxu0 %v2927
    %3079 = vmatpush.bf16.msra.mxu0 %v2926
    %3080 = vmatpush.bf16.msra.mxu0 %v2925
    %3081 = vmatmul.bf16.gmra.mxu0 %v2652
    %v3082 = vpop.f32.mrf.mxu0
    %v3083 = vadd.f32 %v3069, %v3082
    %v3084 = vpop.f32.mrf.mxu0
    %v3085 = vadd.f32 %v3071, %v3084
    %3086 = vdwg.mxu0
    %v3087 = vadd.f32 %v2517, %v3083
    %v3088 = vadd.f32 %v2518, %v3085
    %v3089 = vld [vmem:[#allocation2 + $0x4] sm:$0xff]
    %v3090 = vld [vmem:[#allocation2 + $0xc] sm:$0x3]
    %v3091 = vld [vmem:[#allocation2 + $0x12] sm:$0xff]
    %v3092 = vld [vmem:[#allocation2 + $0x1a] sm:$0x3]
    %v3093 = vld [vmem:[#allocation2 + $0x20] sm:$0xff]
    %v3094 = vld [vmem:[#allocation2 + $0x28] sm:$0x3]
    %v3095 = vld [vmem:[#allocation2 + $0x2e] sm:$0xff]
    %v3096 = vld [vmem:[#allocation2 + $0x36] sm:$0x3]
    %v3097 = vld [vmem:[#allocation2 + $0x3c] sm:$0xff]
    %v3098 = vld [vmem:[#allocation2 + $0x44] sm:$0x3]
    %v3099 = vld [vmem:[#allocation2 + $0x4a] sm:$0xff]
    %v3100 = vld [vmem:[#allocation2 + $0x52] sm:$0x3]
    %v3101 = vld [vmem:[#allocation2 + $0x58] sm:$0xff]
    %v3102 = vld [vmem:[#allocation2 + $0x60] sm:$0x3]
    %s3103 = scalar_lea.vmem [#allocation5], 896
    %v3104 = vld [vmem:[%s3103] sm:$0xf]
    %v3105 = vld [vmem:[%s3103 + $0x4] sm:$0xf]
    %v3106 = vld [vmem:[%s3103 + $0x8] sm:$0xf]
    %v3107 = vld [vmem:[%s3103 + $0xc] sm:$0xf]
    %v3108 = vld [vmem:[%s3103 + $0x10] sm:$0xf]
    %v3109 = vld [vmem:[%s3103 + $0x14] sm:$0xf]
    %v3110 = vld [vmem:[%s3103 + $0x18] sm:$0xf]
    %v3111 = vld [vmem:[%s3103 + $0x1c] sm:$0xf]
    %v3112 = vld [vmem:[%s3103 + $0x20] sm:$0xf]
    %v3113 = vld [vmem:[%s3103 + $0x24] sm:$0xf]
    %v3114 = vld [vmem:[%s3103 + $0x28] sm:$0xf]
    %v3115 = vld [vmem:[%s3103 + $0x2c] sm:$0xf]
    %v3116 = vld [vmem:[%s3103 + $0x30] sm:$0xf]
    %v3117 = vld [vmem:[%s3103 + $0x34] sm:$0xf]
    %v3118 = vld [vmem:[%s3103 + $0x38] sm:$0xf]
    %v3119 = vld [vmem:[%s3103 + $0x3c] sm:$0xf]
    %v3120 = vld [vmem:[%s3103 + $0x40] sm:$0xf]
    %v3121 = vld [vmem:[%s3103 + $0x44] sm:$0xf]
    %v3122 = vld [vmem:[%s3103 + $0x48] sm:$0xf]
    %v3123 = vld [vmem:[%s3103 + $0x4c] sm:$0xf]
    %v3124 = vld [vmem:[%s3103 + $0x50] sm:$0xf]
    %v3125 = vld [vmem:[%s3103 + $0x54] sm:$0xf]
    %v3126 = vld [vmem:[%s3103 + $0x58] sm:$0xf]
    %v3127 = vld [vmem:[%s3103 + $0x5c] sm:$0xf]
    %v3128 = vld [vmem:[%s3103 + $0x60] sm:$0xf]
    %v3129 = vld [vmem:[%s3103 + $0x64] sm:$0xf]
    %v3130 = vld [vmem:[%s3103 + $0x68] sm:$0xf]
    %v3131 = vld [vmem:[%s3103 + $0x6c] sm:$0xf]
    %v3132 = vld [vmem:[%s3103 + $0x70] sm:$0xf]
    %v3133 = vld [vmem:[%s3103 + $0x74] sm:$0xf]
    %v3134 = vld [vmem:[%s3103 + $0x78] sm:$0xf]
    %v3135 = vld [vmem:[%s3103 + $0x7c] sm:$0xf]
    %v3136 = vld [vmem:[%s3103 + $0x80] sm:$0xf]
    %v3137 = vld [vmem:[%s3103 + $0x84] sm:$0xf]
    %v3138 = vld [vmem:[%s3103 + $0x88] sm:$0xf]
    %v3139 = vld [vmem:[%s3103 + $0x8c] sm:$0xf]
    %v3140 = vld [vmem:[%s3103 + $0x90] sm:$0xf]
    %v3141 = vld [vmem:[%s3103 + $0x94] sm:$0xf]
    %v3142 = vld [vmem:[%s3103 + $0x98] sm:$0xf]
    %v3143 = vld [vmem:[%s3103 + $0x9c] sm:$0xf]
    %v3144 = vld [vmem:[%s3103 + $0xa0] sm:$0xf]
    %v3145 = vld [vmem:[%s3103 + $0xa4] sm:$0xf]
    %v3146 = vld [vmem:[%s3103 + $0xa8] sm:$0xf]
    %v3147 = vld [vmem:[%s3103 + $0xac] sm:$0xf]
    %v3148 = vld [vmem:[%s3103 + $0xb0] sm:$0xf]
    %v3149 = vld [vmem:[%s3103 + $0xb4] sm:$0xf]
    %v3150 = vld [vmem:[%s3103 + $0xb8] sm:$0xf]
    %v3151 = vld [vmem:[%s3103 + $0xbc] sm:$0xf]
    %v3152 = vld [vmem:[%s3103 + $0xc0] sm:$0xf]
    %v3153 = vld [vmem:[%s3103 + $0xc4] sm:$0xf]
    %v3154 = vld [vmem:[%s3103 + $0xc8] sm:$0xf]
    %v3155 = vld [vmem:[%s3103 + $0xcc] sm:$0xf]
    %v3156 = vld [vmem:[%s3103 + $0xd0] sm:$0xf]
    %v3157 = vld [vmem:[%s3103 + $0xd4] sm:$0xf]
    %v3158 = vld [vmem:[%s3103 + $0xd8] sm:$0xf]
    %v3159 = vld [vmem:[%s3103 + $0xdc] sm:$0xf]
    %v3160 = vld [vmem:[%s3103 + $0xe0] sm:$0xf]
    %v3161 = vld [vmem:[%s3103 + $0xe4] sm:$0xf]
    %v3162 = vld [vmem:[%s3103 + $0xe8] sm:$0xf]
    %v3163 = vld [vmem:[%s3103 + $0xec] sm:$0xf]
    %v3164 = vld [vmem:[%s3103 + $0xf0] sm:$0xf]
    %v3165 = vld [vmem:[%s3103 + $0xf4] sm:$0xf]
    %v3166 = vld [vmem:[%s3103 + $0xf8] sm:$0xf]
    %v3167 = vld [vmem:[%s3103 + $0xfc] sm:$0xf]
    %v3168 = vld [vmem:[%s3103 + $0x100] sm:$0xf]
    %v3169 = vld [vmem:[%s3103 + $0x104] sm:$0xf]
    %v3170 = vld [vmem:[%s3103 + $0x108] sm:$0xf]
    %v3171 = vld [vmem:[%s3103 + $0x10c] sm:$0xf]
    %v3172 = vld [vmem:[%s3103 + $0x110] sm:$0xf]
    %v3173 = vld [vmem:[%s3103 + $0x114] sm:$0xf]
    %v3174 = vld [vmem:[%s3103 + $0x118] sm:$0xf]
    %v3175 = vld [vmem:[%s3103 + $0x11c] sm:$0xf]
    %v3176 = vld [vmem:[%s3103 + $0x120] sm:$0xf]
    %v3177 = vld [vmem:[%s3103 + $0x124] sm:$0xf]
    %v3178 = vld [vmem:[%s3103 + $0x128] sm:$0xf]
    %v3179 = vld [vmem:[%s3103 + $0x12c] sm:$0xf]
    %v3180 = vld [vmem:[%s3103 + $0x130] sm:$0xf]
    %v3181 = vld [vmem:[%s3103 + $0x134] sm:$0xf]
    %v3182 = vld [vmem:[%s3103 + $0x138] sm:$0xf]
    %v3183 = vld [vmem:[%s3103 + $0x13c] sm:$0xf]
    %v3184 = vld [vmem:[%s3103 + $0x140] sm:$0xf]
    %v3185 = vld [vmem:[%s3103 + $0x144] sm:$0xf]
    %v3186 = vld [vmem:[%s3103 + $0x148] sm:$0xf]
    %v3187 = vld [vmem:[%s3103 + $0x14c] sm:$0xf]
    %v3188 = vld [vmem:[%s3103 + $0x150] sm:$0xf]
    %v3189 = vld [vmem:[%s3103 + $0x154] sm:$0xf]
    %v3190 = vld [vmem:[%s3103 + $0x158] sm:$0xf]
    %v3191 = vld [vmem:[%s3103 + $0x15c] sm:$0xf]
    %v3192 = vld [vmem:[%s3103 + $0x160] sm:$0xf]
    %v3193 = vld [vmem:[%s3103 + $0x164] sm:$0xf]
    %v3194 = vld [vmem:[%s3103 + $0x168] sm:$0xf]
    %v3195 = vld [vmem:[%s3103 + $0x16c] sm:$0xf]
    %v3196 = vld [vmem:[%s3103 + $0x170] sm:$0xf]
    %v3197 = vld [vmem:[%s3103 + $0x174] sm:$0xf]
    %v3198 = vld [vmem:[%s3103 + $0x178] sm:$0xf]
    %v3199 = vld [vmem:[%s3103 + $0x17c] sm:$0xf]
    %v3200 = vld [vmem:[%s3103 + $0x180] sm:$0xf]
    %v3201 = vld [vmem:[%s3103 + $0x184] sm:$0xf]
    %v3202 = vld [vmem:[%s3103 + $0x188] sm:$0xf]
    %v3203 = vld [vmem:[%s3103 + $0x18c] sm:$0xf]
    %v3204 = vld [vmem:[%s3103 + $0x190] sm:$0xf]
    %v3205 = vld [vmem:[%s3103 + $0x194] sm:$0xf]
    %v3206 = vld [vmem:[%s3103 + $0x198] sm:$0xf]
    %v3207 = vld [vmem:[%s3103 + $0x19c] sm:$0xf]
    %v3208 = vld [vmem:[%s3103 + $0x1a0] sm:$0xf]
    %v3209 = vld [vmem:[%s3103 + $0x1a4] sm:$0xf]
    %v3210 = vld [vmem:[%s3103 + $0x1a8] sm:$0xf]
    %v3211 = vld [vmem:[%s3103 + $0x1ac] sm:$0xf]
    %v3212 = vld [vmem:[%s3103 + $0x1b0] sm:$0xf]
    %v3213 = vld [vmem:[%s3103 + $0x1b4] sm:$0xf]
    %v3214 = vld [vmem:[%s3103 + $0x1b8] sm:$0xf]
    %v3215 = vld [vmem:[%s3103 + $0x1bc] sm:$0xf]
    %v3216 = vpack.c.bf16 %v3090, %v3089
    %v3217 = vpack.c.bf16 %v3092, %v3091
    %v3218 = vpack.c.bf16 %v3094, %v3093
    %v3219 = vpack.c.bf16 %v3096, %v3095
    %v3220 = vpack.c.bf16 %v3098, %v3097
    %v3221 = vpack.c.bf16 %v3100, %v3099
    %v3222 = vpack.c.bf16 %v3102, %v3101
    %v3335 = vunpack.c.l.b16 %v3104
    %v3336 = vunpack.c.l.b16 %v3105
    %v3337 = vunpack.c.l.b16 %v3106
    %v3338 = vunpack.c.l.b16 %v3107
    %v3339 = vunpack.c.l.b16 %v3108
    %v3340 = vunpack.c.l.b16 %v3109
    %v3341 = vunpack.c.l.b16 %v3110
    %v3342 = vunpack.c.l.b16 %v3111
    %v3343 = vunpack.c.l.b16 %v3112
    %v3344 = vunpack.c.l.b16 %v3113
    %v3345 = vunpack.c.l.b16 %v3114
    %v3346 = vunpack.c.l.b16 %v3115
    %v3347 = vunpack.c.l.b16 %v3116
    %v3348 = vunpack.c.l.b16 %v3117
    %v3349 = vunpack.c.l.b16 %v3118
    %v3350 = vunpack.c.l.b16 %v3119
    %v3351 = vunpack.c.l.b16 %v3120
    %v3352 = vunpack.c.l.b16 %v3121
    %v3353 = vunpack.c.l.b16 %v3122
    %v3354 = vunpack.c.l.b16 %v3123
    %v3355 = vunpack.c.l.b16 %v3124
    %v3356 = vunpack.c.l.b16 %v3125
    %v3357 = vunpack.c.l.b16 %v3126
    %v3358 = vunpack.c.l.b16 %v3127
    %v3359 = vunpack.c.l.b16 %v3128
    %v3360 = vunpack.c.l.b16 %v3129
    %v3361 = vunpack.c.l.b16 %v3130
    %v3362 = vunpack.c.l.b16 %v3131
    %v3363 = vunpack.c.l.b16 %v3132
    %v3364 = vunpack.c.l.b16 %v3133
    %v3365 = vunpack.c.l.b16 %v3134
    %v3366 = vunpack.c.l.b16 %v3135
    %v3367 = vunpack.c.l.b16 %v3136
    %v3368 = vunpack.c.l.b16 %v3137
    %v3369 = vunpack.c.l.b16 %v3138
    %v3370 = vunpack.c.l.b16 %v3139
    %v3371 = vunpack.c.l.b16 %v3140
    %v3372 = vunpack.c.l.b16 %v3141
    %v3373 = vunpack.c.l.b16 %v3142
    %v3374 = vunpack.c.l.b16 %v3143
    %v3375 = vunpack.c.l.b16 %v3144
    %v3376 = vunpack.c.l.b16 %v3145
    %v3377 = vunpack.c.l.b16 %v3146
    %v3378 = vunpack.c.l.b16 %v3147
    %v3379 = vunpack.c.l.b16 %v3148
    %v3380 = vunpack.c.l.b16 %v3149
    %v3381 = vunpack.c.l.b16 %v3150
    %v3382 = vunpack.c.l.b16 %v3151
    %v3383 = vunpack.c.l.b16 %v3152
    %v3384 = vunpack.c.l.b16 %v3153
    %v3385 = vunpack.c.l.b16 %v3154
    %v3386 = vunpack.c.l.b16 %v3155
    %v3387 = vunpack.c.l.b16 %v3156
    %v3388 = vunpack.c.l.b16 %v3157
    %v3389 = vunpack.c.l.b16 %v3158
    %v3390 = vunpack.c.l.b16 %v3159
    %v3391 = vunpack.c.l.b16 %v3160
    %v3392 = vunpack.c.l.b16 %v3161
    %v3393 = vunpack.c.l.b16 %v3162
    %v3394 = vunpack.c.l.b16 %v3163
    %v3395 = vunpack.c.l.b16 %v3164
    %v3396 = vunpack.c.l.b16 %v3165
    %v3397 = vunpack.c.l.b16 %v3166
    %v3398 = vunpack.c.l.b16 %v3167
    %v3399 = vunpack.c.l.b16 %v3168
    %v3400 = vunpack.c.l.b16 %v3169
    %v3401 = vunpack.c.l.b16 %v3170
    %v3402 = vunpack.c.l.b16 %v3171
    %v3403 = vunpack.c.l.b16 %v3172
    %v3404 = vunpack.c.l.b16 %v3173
    %v3405 = vunpack.c.l.b16 %v3174
    %v3406 = vunpack.c.l.b16 %v3175
    %v3407 = vunpack.c.l.b16 %v3176
    %v3408 = vunpack.c.l.b16 %v3177
    %v3409 = vunpack.c.l.b16 %v3178
    %v3410 = vunpack.c.l.b16 %v3179
    %v3411 = vunpack.c.l.b16 %v3180
    %v3412 = vunpack.c.l.b16 %v3181
    %v3413 = vunpack.c.l.b16 %v3182
    %v3414 = vunpack.c.l.b16 %v3183
    %v3415 = vunpack.c.l.b16 %v3184
    %v3416 = vunpack.c.l.b16 %v3185
    %v3417 = vunpack.c.l.b16 %v3186
    %v3418 = vunpack.c.l.b16 %v3187
    %v3419 = vunpack.c.l.b16 %v3188
    %v3420 = vunpack.c.l.b16 %v3189
    %v3421 = vunpack.c.l.b16 %v3190
    %v3422 = vunpack.c.l.b16 %v3191
    %v3423 = vunpack.c.l.b16 %v3192
    %v3424 = vunpack.c.l.b16 %v3193
    %v3425 = vunpack.c.l.b16 %v3194
    %v3426 = vunpack.c.l.b16 %v3195
    %v3427 = vunpack.c.l.b16 %v3196
    %v3428 = vunpack.c.l.b16 %v3197
    %v3429 = vunpack.c.l.b16 %v3198
    %v3430 = vunpack.c.l.b16 %v3199
    %v3431 = vunpack.c.l.b16 %v3200
    %v3432 = vunpack.c.l.b16 %v3201
    %v3433 = vunpack.c.l.b16 %v3202
    %v3434 = vunpack.c.l.b16 %v3203
    %v3435 = vunpack.c.l.b16 %v3204
    %v3436 = vunpack.c.l.b16 %v3205
    %v3437 = vunpack.c.l.b16 %v3206
    %v3438 = vunpack.c.l.b16 %v3207
    %v3439 = vunpack.c.l.b16 %v3208
    %v3440 = vunpack.c.l.b16 %v3209
    %v3441 = vunpack.c.l.b16 %v3210
    %v3442 = vunpack.c.l.b16 %v3211
    %v3443 = vunpack.c.l.b16 %v3212
    %v3444 = vunpack.c.l.b16 %v3213
    %v3445 = vunpack.c.l.b16 %v3214
    %v3446 = vunpack.c.l.b16 %v3215
    %v3447 = vpack.c.b16 %v3336, %v3335
    %v3448 = vpack.c.b16 %v3338, %v3337
    %v3449 = vpack.c.b16 %v3340, %v3339
    %v3450 = vpack.c.b16 %v3342, %v3341
    %v3451 = vpack.c.b16 %v3344, %v3343
    %v3452 = vpack.c.b16 %v3346, %v3345
    %v3453 = vpack.c.b16 %v3348, %v3347
    %v3454 = vpack.c.b16 %v3350, %v3349
    %v3455 = vpack.c.b16 %v3352, %v3351
    %v3456 = vpack.c.b16 %v3354, %v3353
    %v3457 = vpack.c.b16 %v3356, %v3355
    %v3458 = vpack.c.b16 %v3358, %v3357
    %v3459 = vpack.c.b16 %v3360, %v3359
    %v3460 = vpack.c.b16 %v3362, %v3361
    %v3461 = vpack.c.b16 %v3364, %v3363
    %v3462 = vpack.c.b16 %v3366, %v3365
    %v3463 = vpack.c.b16 %v3368, %v3367
    %v3464 = vpack.c.b16 %v3370, %v3369
    %v3465 = vpack.c.b16 %v3372, %v3371
    %v3466 = vpack.c.b16 %v3374, %v3373
    %v3467 = vpack.c.b16 %v3376, %v3375
    %v3468 = vpack.c.b16 %v3378, %v3377
    %v3469 = vpack.c.b16 %v3380, %v3379
    %v3470 = vpack.c.b16 %v3382, %v3381
    %v3471 = vpack.c.b16 %v3384, %v3383
    %v3472 = vpack.c.b16 %v3386, %v3385
    %v3473 = vpack.c.b16 %v3388, %v3387
    %v3474 = vpack.c.b16 %v3390, %v3389
    %v3475 = vpack.c.b16 %v3392, %v3391
    %v3476 = vpack.c.b16 %v3394, %v3393
    %v3477 = vpack.c.b16 %v3396, %v3395
    %v3478 = vpack.c.b16 %v3398, %v3397
    %v3479 = vpack.c.b16 %v3400, %v3399
    %v3480 = vpack.c.b16 %v3402, %v3401
    %v3481 = vpack.c.b16 %v3404, %v3403
    %v3482 = vpack.c.b16 %v3406, %v3405
    %v3483 = vpack.c.b16 %v3408, %v3407
    %v3484 = vpack.c.b16 %v3410, %v3409
    %v3485 = vpack.c.b16 %v3412, %v3411
    %v3486 = vpack.c.b16 %v3414, %v3413
    %v3487 = vpack.c.b16 %v3416, %v3415
    %v3488 = vpack.c.b16 %v3418, %v3417
    %v3489 = vpack.c.b16 %v3420, %v3419
    %v3490 = vpack.c.b16 %v3422, %v3421
    %v3491 = vpack.c.b16 %v3424, %v3423
    %v3492 = vpack.c.b16 %v3426, %v3425
    %v3493 = vpack.c.b16 %v3428, %v3427
    %v3494 = vpack.c.b16 %v3430, %v3429
    %v3495 = vpack.c.b16 %v3432, %v3431
    %v3496 = vpack.c.b16 %v3434, %v3433
    %v3497 = vpack.c.b16 %v3436, %v3435
    %v3498 = vpack.c.b16 %v3438, %v3437
    %v3499 = vpack.c.b16 %v3440, %v3439
    %v3500 = vpack.c.b16 %v3442, %v3441
    %v3501 = vpack.c.b16 %v3444, %v3443
    %v3502 = vpack.c.b16 %v3446, %v3445
    %3559 = vmatpush.bf16.msra.mxu0 %v3454
    %3560 = vmatpush.bf16.msra.mxu0 %v3453
    %3561 = vmatpush.bf16.msra.mxu0 %v3452
    %3562 = vmatpush.bf16.msra.mxu0 %v3451
    %3563 = vmatpush.bf16.msra.mxu0 %v3450
    %3564 = vmatpush.bf16.msra.mxu0 %v3449
    %3565 = vmatpush.bf16.msra.mxu0 %v3448
    %3566 = vmatpush.bf16.msra.mxu0 %v3447
    %3567 = vmatmul.bf16.gmra.mxu0 %v3216
    %v3568 = vpop.f32.mrf.mxu0
    %v3569 = vadd.f32 0.0, %v3568
    %v3570 = vpop.f32.mrf.mxu0
    %v3571 = vadd.f32 0.0, %v3570
    %3572 = vdwg.mxu0
    %3573 = vmatpush.bf16.msra.mxu0 %v3462
    %3574 = vmatpush.bf16.msra.mxu0 %v3461
    %3575 = vmatpush.bf16.msra.mxu0 %v3460
    %3576 = vmatpush.bf16.msra.mxu0 %v3459
    %3577 = vmatpush.bf16.msra.mxu0 %v3458
    %3578 = vmatpush.bf16.msra.mxu0 %v3457
    %3579 = vmatpush.bf16.msra.mxu0 %v3456
    %3580 = vmatpush.bf16.msra.mxu0 %v3455
    %3581 = vmatmul.bf16.gmra.mxu0 %v3217
    %v3582 = vpop.f32.mrf.mxu0
    %v3583 = vadd.f32 %v3569, %v3582
    %v3584 = vpop.f32.mrf.mxu0
    %v3585 = vadd.f32 %v3571, %v3584
    %3586 = vdwg.mxu0
    %3587 = vmatpush.bf16.msra.mxu0 %v3470
    %3588 = vmatpush.bf16.msra.mxu0 %v3469
    %3589 = vmatpush.bf16.msra.mxu0 %v3468
    %3590 = vmatpush.bf16.msra.mxu0 %v3467
    %3591 = vmatpush.bf16.msra.mxu0 %v3466
    %3592 = vmatpush.bf16.msra.mxu0 %v3465
    %3593 = vmatpush.bf16.msra.mxu0 %v3464
    %3594 = vmatpush.bf16.msra.mxu0 %v3463
    %3595 = vmatmul.bf16.gmra.mxu0 %v3218
    %v3596 = vpop.f32.mrf.mxu0
    %v3597 = vadd.f32 %v3583, %v3596
    %v3598 = vpop.f32.mrf.mxu0
    %v3599 = vadd.f32 %v3585, %v3598
    %3600 = vdwg.mxu0
    %3601 = vmatpush.bf16.msra.mxu0 %v3478
    %3602 = vmatpush.bf16.msra.mxu0 %v3477
    %3603 = vmatpush.bf16.msra.mxu0 %v3476
    %3604 = vmatpush.bf16.msra.mxu0 %v3475
    %3605 = vmatpush.bf16.msra.mxu0 %v3474
    %3606 = vmatpush.bf16.msra.mxu0 %v3473
    %3607 = vmatpush.bf16.msra.mxu0 %v3472
    %3608 = vmatpush.bf16.msra.mxu0 %v3471
    %3609 = vmatmul.bf16.gmra.mxu0 %v3219
    %v3610 = vpop.f32.mrf.mxu0
    %v3611 = vadd.f32 %v3597, %v3610
    %v3612 = vpop.f32.mrf.mxu0
    %v3613 = vadd.f32 %v3599, %v3612
    %3614 = vdwg.mxu0
    %3615 = vmatpush.bf16.msra.mxu0 %v3486
    %3616 = vmatpush.bf16.msra.mxu0 %v3485
    %3617 = vmatpush.bf16.msra.mxu0 %v3484
    %3618 = vmatpush.bf16.msra.mxu0 %v3483
    %3619 = vmatpush.bf16.msra.mxu0 %v3482
    %3620 = vmatpush.bf16.msra.mxu0 %v3481
    %3621 = vmatpush.bf16.msra.mxu0 %v3480
    %3622 = vmatpush.bf16.msra.mxu0 %v3479
    %3623 = vmatmul.bf16.gmra.mxu0 %v3220
    %v3624 = vpop.f32.mrf.mxu0
    %v3625 = vadd.f32 %v3611, %v3624
    %v3626 = vpop.f32.mrf.mxu0
    %v3627 = vadd.f32 %v3613, %v3626
    %3628 = vdwg.mxu0
    %3629 = vmatpush.bf16.msra.mxu0 %v3494
    %3630 = vmatpush.bf16.msra.mxu0 %v3493
    %3631 = vmatpush.bf16.msra.mxu0 %v3492
    %3632 = vmatpush.bf16.msra.mxu0 %v3491
    %3633 = vmatpush.bf16.msra.mxu0 %v3490
    %3634 = vmatpush.bf16.msra.mxu0 %v3489
    %3635 = vmatpush.bf16.msra.mxu0 %v3488
    %3636 = vmatpush.bf16.msra.mxu0 %v3487
    %3637 = vmatmul.bf16.gmra.mxu0 %v3221
    %v3638 = vpop.f32.mrf.mxu0
    %v3639 = vadd.f32 %v3625, %v3638
    %v3640 = vpop.f32.mrf.mxu0
    %v3641 = vadd.f32 %v3627, %v3640
    %3642 = vdwg.mxu0
    %3643 = vmatpush.bf16.msra.mxu0 %v3502
    %3644 = vmatpush.bf16.msra.mxu0 %v3501
    %3645 = vmatpush.bf16.msra.mxu0 %v3500
    %3646 = vmatpush.bf16.msra.mxu0 %v3499
    %3647 = vmatpush.bf16.msra.mxu0 %v3498
    %3648 = vmatpush.bf16.msra.mxu0 %v3497
    %3649 = vmatpush.bf16.msra.mxu0 %v3496
    %3650 = vmatpush.bf16.msra.mxu0 %v3495
    %3651 = vmatmul.bf16.gmra.mxu0 %v3222
    %v3652 = vpop.f32.mrf.mxu0
    %v3653 = vadd.f32 %v3639, %v3652
    %v3654 = vpop.f32.mrf.mxu0
    %v3655 = vadd.f32 %v3641, %v3654
    %3656 = vdwg.mxu0
    %v3657 = vadd.f32 %v3087, %v3653
    %v3658 = vadd.f32 %v3088, %v3655
    %v3659 = vld [vmem:[#allocation10 + $0x13] sm:$0x1]
    %v3660 = vld [vmem:[#allocation10 + $0x14] sm:$0x1]
    %v3661 = vsel %vm221, %v3658, 0.0
    %v3662 = vadd.f32 %v3657, %v3661
    %v3663 = vrot.slane %v3662, 4
    %v3664 = vadd.f32 %v3662, %v3663
    %v3665 = vrot.slane %v3664, 2
    %v3666 = vadd.f32 %v3664, %v3665
    %v3667 = vrot.slane %v3666, 1
    %v3668 = vadd.f32 %v3666, %v3667
    %v3669 = vpack.c.bf16 %v3668, %v3668
    %v3670 = vunpack.c.l.bf16 %v3669
    %v3671 = vsub.f32 %v3668, %v3670
    %v3672 = vpack.c.bf16 %v3671, %v3671
    %3673 = vmatpush.bf16.msra.mxu0 %v273
    %3674 = vmatpush.bf16.msra.mxu0 %v272
    %3675 = vmatpush.bf16.msra.mxu0 %v271
    %3676 = vmatpush.bf16.msra.mxu0 %v270
    %3677 = vmatpush.bf16.msra.mxu0 %v269
    %3678 = vmatpush.bf16.msra.mxu0 %v268
    %3679 = vmatpush.bf16.msra.mxu0 %v267
    %3680 = vmatpush.bf16.msra.mxu0 %v266
    %3681 = vmatmul.bf16.gmra.mxu0 %v3672
    %v3682 = vpop.f32.mrf.mxu0
    %v3683 = vadd.f32 0.0, %v3682
    %v3684 = vpop.f32.mrf.mxu0
    %3685 = vdwg.mxu0
    %3686 = vmatpush.bf16.msra.mxu0 %v273
    %3687 = vmatpush.bf16.msra.mxu0 %v272
    %3688 = vmatpush.bf16.msra.mxu0 %v271
    %3689 = vmatpush.bf16.msra.mxu0 %v270
    %3690 = vmatpush.bf16.msra.mxu0 %v269
    %3691 = vmatpush.bf16.msra.mxu0 %v268
    %3692 = vmatpush.bf16.msra.mxu0 %v267
    %3693 = vmatpush.bf16.msra.mxu0 %v266
    %3694 = vmatmul.bf16.gmra.mxu0 %v3669
    %v3695 = vpop.f32.mrf.mxu0
    %v3696 = vadd.f32 %v3683, %v3695
    %v3697 = vpop.f32.mrf.mxu0
    %3698 = vdwg.mxu0
    %v3699 = vmul.f32 %v3696, 0.02
    %v3700 = vmul.f32 %v3657, %v3657
    %v3701 = vmul.f32 %v3658, %v3658
    %v3702 = vsel %vm221, %v3701, 0.0
    %v3703 = vadd.f32 %v3700, %v3702
    %v3704 = vrot.slane %v3703, 4
    %v3705 = vadd.f32 %v3703, %v3704
    %v3706 = vrot.slane %v3705, 2
    %v3707 = vadd.f32 %v3705, %v3706
    %v3708 = vrot.slane %v3707, 1
    %v3709 = vadd.f32 %v3707, %v3708
    %v3710 = vpack.c.bf16 %v3709, %v3709
    %v3711 = vunpack.c.l.bf16 %v3710
    %v3712 = vsub.f32 %v3709, %v3711
    %v3713 = vpack.c.bf16 %v3712, %v3712
    %3714 = vmatpush.bf16.msra.mxu0 %v273
    %3715 = vmatpush.bf16.msra.mxu0 %v272
    %3716 = vmatpush.bf16.msra.mxu0 %v271
    %3717 = vmatpush.bf16.msra.mxu0 %v270
    %3718 = vmatpush.bf16.msra.mxu0 %v269
    %3719 = vmatpush.bf16.msra.mxu0 %v268
    %3720 = vmatpush.bf16.msra.mxu0 %v267
    %3721 = vmatpush.bf16.msra.mxu0 %v266
    %3722 = vmatmul.bf16.gmra.mxu0 %v3713
    %v3723 = vpop.f32.mrf.mxu0
    %v3724 = vadd.f32 0.0, %v3723
    %v3725 = vpop.f32.mrf.mxu0
    %3726 = vdwg.mxu0
    %3727 = vmatpush.bf16.msra.mxu0 %v273
    %3728 = vmatpush.bf16.msra.mxu0 %v272
    %3729 = vmatpush.bf16.msra.mxu0 %v271
    %3730 = vmatpush.bf16.msra.mxu0 %v270
    %3731 = vmatpush.bf16.msra.mxu0 %v269
    %3732 = vmatpush.bf16.msra.mxu0 %v268
    %3733 = vmatpush.bf16.msra.mxu0 %v267
    %3734 = vmatpush.bf16.msra.mxu0 %v266
    %3735 = vmatmul.bf16.gmra.mxu0 %v3710
    %v3736 = vpop.f32.mrf.mxu0
    %v3737 = vadd.f32 %v3724, %v3736
    %v3738 = vpop.f32.mrf.mxu0
    %3739 = vdwg.mxu0
    %v3740 = vmul.f32 %v3737, 0.02
    %v3741 = vmul.f32 %v3699, %v3699
    %v3742 = vsub.f32 %v3740, %v3741
    %v3743 = vadd.f32 %v3742, 0.001
    %v3744 = vrsqrt.pop %v3743
    %v3745 = vmul.f32 %v3744, %v3743
    %v3746 = vmul.f32 %v3745, %v3744
    %v3747 = vmul.f32 0.5, %v3746
    %v3748 = vsub.f32 1.5, %v3747
    %v3749 = vmul.f32 %v3744, %v3748
    %vm3750 = vweird.f32 %v3743
    %vm3751 = vweird.f32 %v3744
    %vm3752 = vmor %vm3750, %vm3751
    %v3753 = vsel %vm3752, %v3744, %v3749
    %v3754 = vmul.f32 %v3659, %v3753
    %v3755 = vperm.slane %v3699, 0
    %v3756 = vsub.f32 %v3657, %v3755
    %v3757 = vsub.f32 %v3658, %v3755
    %v3758 = vperm.slane %v3754, 0
    %v3759 = vmul.f32 %v3756, %v3758
    %v3760 = vmul.f32 %v3757, %v3758
    %v3761 = vperm.slane %v3660, 0
    %v3762 = vadd.f32 %v3759, %v3761
    %v3763 = vadd.f32 %v3760, %v3761
    %v3764 = vmax.f32 %v3762, 0.0
    %v3765 = vmax.f32 %v3763, 0.0
    %3766 = vst [vmem:[#allocation3] sm:$0xff] 0.0
    %3767 = vst [vmem:[#allocation3 + $0x8] sm:$0x3f] 0.0
    %3768 = vst [vmem:[#allocation4] sm:$0xff] 0.0
    %3769 = vst [vmem:[#allocation4 + $0x8] sm:$0x3f] 0.0
    %3770 = vst [vmem:[#allocation3 + $0x2] sm:$0xff] %v3764
    %3771 = vst [vmem:[#allocation3 + $0xa] sm:$0x3] %v3765
    %v3772 = vld [vmem:[#allocation3 + $0x2] sm:$0xff]
    %v3773 = vld [vmem:[#allocation3 + $0xa] sm:$0x3]
    %v3774 = vld [vmem:[#allocation3] sm:$0xff]
    %v3775 = vld [vmem:[#allocation3 + $0x8] sm:$0x3]
    %v3776 = vld [vmem:[#allocation3 + $0x4] sm:$0xff]
    %v3777 = vld [vmem:[#allocation3 + $0xc] sm:$0x3]
    %v3778 = vld [vmem:[#allocation8] sm:$0xf]
    %v3779 = vld [vmem:[#allocation8 + $0x4] sm:$0xf]
    %v3780 = vld [vmem:[#allocation8 + $0x8] sm:$0xf]
    %v3781 = vld [vmem:[#allocation8 + $0xc] sm:$0xf]
    %v3782 = vld [vmem:[#allocation8 + $0x10] sm:$0xf]
    %v3783 = vld [vmem:[#allocation8 + $0x14] sm:$0xf]
    %v3784 = vld [vmem:[#allocation8 + $0x18] sm:$0xf]
    %v3785 = vld [vmem:[#allocation8 + $0x1c] sm:$0xf]
    %v3786 = vld [vmem:[#allocation8 + $0x20] sm:$0xf]
    %v3787 = vld [vmem:[#allocation8 + $0x24] sm:$0xf]
    %v3788 = vld [vmem:[#allocation8 + $0x28] sm:$0xf]
    %v3789 = vld [vmem:[#allocation8 + $0x2c] sm:$0xf]
    %v3790 = vld [vmem:[#allocation8 + $0x30] sm:$0xf]
    %v3791 = vld [vmem:[#allocation8 + $0x34] sm:$0xf]
    %v3792 = vld [vmem:[#allocation8 + $0x38] sm:$0xf]
    %v3793 = vld [vmem:[#allocation8 + $0x3c] sm:$0xf]
    %v3794 = vld [vmem:[#allocation8 + $0x40] sm:$0xf]
    %v3795 = vld [vmem:[#allocation8 + $0x44] sm:$0xf]
    %v3796 = vld [vmem:[#allocation8 + $0x48] sm:$0xf]
    %v3797 = vld [vmem:[#allocation8 + $0x4c] sm:$0xf]
    %v3798 = vld [vmem:[#allocation8 + $0x50] sm:$0xf]
    %v3799 = vld [vmem:[#allocation8 + $0x54] sm:$0xf]
    %v3800 = vld [vmem:[#allocation8 + $0x58] sm:$0xf]
    %v3801 = vld [vmem:[#allocation8 + $0x5c] sm:$0xf]
    %v3802 = vld [vmem:[#allocation8 + $0x60] sm:$0xf]
    %v3803 = vld [vmem:[#allocation8 + $0x64] sm:$0xf]
    %v3804 = vld [vmem:[#allocation8 + $0x68] sm:$0xf]
    %v3805 = vld [vmem:[#allocation8 + $0x6c] sm:$0xf]
    %v3806 = vld [vmem:[#allocation8 + $0x70] sm:$0xf]
    %v3807 = vld [vmem:[#allocation8 + $0x74] sm:$0xf]
    %v3808 = vld [vmem:[#allocation8 + $0x78] sm:$0xf]
    %v3809 = vld [vmem:[#allocation8 + $0x7c] sm:$0xf]
    %v3810 = vld [vmem:[#allocation8 + $0x80] sm:$0xf]
    %v3811 = vld [vmem:[#allocation8 + $0x84] sm:$0xf]
    %v3812 = vld [vmem:[#allocation8 + $0x88] sm:$0xf]
    %v3813 = vld [vmem:[#allocation8 + $0x8c] sm:$0xf]
    %v3814 = vld [vmem:[#allocation8 + $0x90] sm:$0xf]
    %v3815 = vld [vmem:[#allocation8 + $0x94] sm:$0xf]
    %v3816 = vld [vmem:[#allocation8 + $0x98] sm:$0xf]
    %v3817 = vld [vmem:[#allocation8 + $0x9c] sm:$0xf]
    %v3818 = vld [vmem:[#allocation8 + $0xa0] sm:$0xf]
    %v3819 = vld [vmem:[#allocation8 + $0xa4] sm:$0xf]
    %v3820 = vld [vmem:[#allocation8 + $0xa8] sm:$0xf]
    %v3821 = vld [vmem:[#allocation8 + $0xac] sm:$0xf]
    %v3822 = vld [vmem:[#allocation8 + $0xb0] sm:$0xf]
    %v3823 = vld [vmem:[#allocation8 + $0xb4] sm:$0xf]
    %v3824 = vld [vmem:[#allocation8 + $0xb8] sm:$0xf]
    %v3825 = vld [vmem:[#allocation8 + $0xbc] sm:$0xf]
    %v3826 = vpack.c.bf16 %v3775, %v3774
    %v3827 = vpack.c.bf16 %v3773, %v3772
    %v3828 = vpack.c.bf16 %v3777, %v3776
    %v3829 = vld [vmem:[#allocation10 + $0x15] sm:$0x1]
    %v3830 = vperm.slane %v3829, 0
    %v3879 = vunpack.c.l.b16 %v3778
    %v3880 = vunpack.c.l.b16 %v3779
    %v3881 = vunpack.c.l.b16 %v3780
    %v3882 = vunpack.c.l.b16 %v3781
    %v3883 = vunpack.c.l.b16 %v3782
    %v3884 = vunpack.c.l.b16 %v3783
    %v3885 = vunpack.c.l.b16 %v3784
    %v3886 = vunpack.c.l.b16 %v3785
    %v3887 = vunpack.c.l.b16 %v3786
    %v3888 = vunpack.c.l.b16 %v3787
    %v3889 = vunpack.c.l.b16 %v3788
    %v3890 = vunpack.c.l.b16 %v3789
    %v3891 = vunpack.c.l.b16 %v3790
    %v3892 = vunpack.c.l.b16 %v3791
    %v3893 = vunpack.c.l.b16 %v3792
    %v3894 = vunpack.c.l.b16 %v3793
    %v3895 = vunpack.c.l.b16 %v3794
    %v3896 = vunpack.c.l.b16 %v3795
    %v3897 = vunpack.c.l.b16 %v3796
    %v3898 = vunpack.c.l.b16 %v3797
    %v3899 = vunpack.c.l.b16 %v3798
    %v3900 = vunpack.c.l.b16 %v3799
    %v3901 = vunpack.c.l.b16 %v3800
    %v3902 = vunpack.c.l.b16 %v3801
    %v3903 = vunpack.c.l.b16 %v3802
    %v3904 = vunpack.c.l.b16 %v3803
    %v3905 = vunpack.c.l.b16 %v3804
    %v3906 = vunpack.c.l.b16 %v3805
    %v3907 = vunpack.c.l.b16 %v3806
    %v3908 = vunpack.c.l.b16 %v3807
    %v3909 = vunpack.c.l.b16 %v3808
    %v3910 = vunpack.c.l.b16 %v3809
    %v3911 = vunpack.c.l.b16 %v3810
    %v3912 = vunpack.c.l.b16 %v3811
    %v3913 = vunpack.c.l.b16 %v3812
    %v3914 = vunpack.c.l.b16 %v3813
    %v3915 = vunpack.c.l.b16 %v3814
    %v3916 = vunpack.c.l.b16 %v3815
    %v3917 = vunpack.c.l.b16 %v3816
    %v3918 = vunpack.c.l.b16 %v3817
    %v3919 = vunpack.c.l.b16 %v3818
    %v3920 = vunpack.c.l.b16 %v3819
    %v3921 = vunpack.c.l.b16 %v3820
    %v3922 = vunpack.c.l.b16 %v3821
    %v3923 = vunpack.c.l.b16 %v3822
    %v3924 = vunpack.c.l.b16 %v3823
    %v3925 = vunpack.c.l.b16 %v3824
    %v3926 = vunpack.c.l.b16 %v3825
    %v3927 = vpack.c.b16 %v3880, %v3879
    %v3928 = vpack.c.b16 %v3882, %v3881
    %v3929 = vpack.c.b16 %v3884, %v3883
    %v3930 = vpack.c.b16 %v3886, %v3885
    %v3931 = vpack.c.b16 %v3888, %v3887
    %v3932 = vpack.c.b16 %v3890, %v3889
    %v3933 = vpack.c.b16 %v3892, %v3891
    %v3934 = vpack.c.b16 %v3894, %v3893
    %v3935 = vpack.c.b16 %v3896, %v3895
    %v3936 = vpack.c.b16 %v3898, %v3897
    %v3937 = vpack.c.b16 %v3900, %v3899
    %v3938 = vpack.c.b16 %v3902, %v3901
    %v3939 = vpack.c.b16 %v3904, %v3903
    %v3940 = vpack.c.b16 %v3906, %v3905
    %v3941 = vpack.c.b16 %v3908, %v3907
    %v3942 = vpack.c.b16 %v3910, %v3909
    %v3943 = vpack.c.b16 %v3912, %v3911
    %v3944 = vpack.c.b16 %v3914, %v3913
    %v3945 = vpack.c.b16 %v3916, %v3915
    %v3946 = vpack.c.b16 %v3918, %v3917
    %v3947 = vpack.c.b16 %v3920, %v3919
    %v3948 = vpack.c.b16 %v3922, %v3921
    %v3949 = vpack.c.b16 %v3924, %v3923
    %v3950 = vpack.c.b16 %v3926, %v3925
    %3975 = vmatpush.bf16.msra.mxu0 %v3934
    %3976 = vmatpush.bf16.msra.mxu0 %v3933
    %3977 = vmatpush.bf16.msra.mxu0 %v3932
    %3978 = vmatpush.bf16.msra.mxu0 %v3931
    %3979 = vmatpush.bf16.msra.mxu0 %v3930
    %3980 = vmatpush.bf16.msra.mxu0 %v3929
    %3981 = vmatpush.bf16.msra.mxu0 %v3928
    %3982 = vmatpush.bf16.msra.mxu0 %v3927
    %3983 = vmatmul.bf16.gmra.mxu0 %v3826
    %v3984 = vpop.f32.mrf.mxu0
    %v3985 = vadd.f32 %v3830, %v3984
    %v3986 = vpop.f32.mrf.mxu0
    %v3987 = vadd.f32 %v3830, %v3986
    %3988 = vdwg.mxu0
    %3989 = vmatpush.bf16.msra.mxu0 %v3942
    %3990 = vmatpush.bf16.msra.mxu0 %v3941
    %3991 = vmatpush.bf16.msra.mxu0 %v3940
    %3992 = vmatpush.bf16.msra.mxu0 %v3939
    %3993 = vmatpush.bf16.msra.mxu0 %v3938
    %3994 = vmatpush.bf16.msra.mxu0 %v3937
    %3995 = vmatpush.bf16.msra.mxu0 %v3936
    %3996 = vmatpush.bf16.msra.mxu0 %v3935
    %3997 = vmatmul.bf16.gmra.mxu0 %v3827
    %v3998 = vpop.f32.mrf.mxu0
    %v3999 = vadd.f32 %v3985, %v3998
    %v4000 = vpop.f32.mrf.mxu0
    %v4001 = vadd.f32 %v3987, %v4000
    %4002 = vdwg.mxu0
    %4003 = vmatpush.bf16.msra.mxu0 %v3950
    %4004 = vmatpush.bf16.msra.mxu0 %v3949
    %4005 = vmatpush.bf16.msra.mxu0 %v3948
    %4006 = vmatpush.bf16.msra.mxu0 %v3947
    %4007 = vmatpush.bf16.msra.mxu0 %v3946
    %4008 = vmatpush.bf16.msra.mxu0 %v3945
    %4009 = vmatpush.bf16.msra.mxu0 %v3944
    %4010 = vmatpush.bf16.msra.mxu0 %v3943
    %4011 = vmatmul.bf16.gmra.mxu0 %v3828
    %v4012 = vpop.f32.mrf.mxu0
    %v4013 = vadd.f32 %v3999, %v4012
    %v4014 = vpop.f32.mrf.mxu0
    %v4015 = vadd.f32 %v4001, %v4014
    %4016 = vdwg.mxu0
    %v4017 = vmax.f32 %v4013, 0.0
    %v4018 = vmax.f32 %v4015, 0.0
    %v4019 = vld [vmem:[#allocation10 + $0x16] sm:$0x1]
    %v4020 = vld [vmem:[#allocation10 + $0x17] sm:$0x1]
    %v4021 = vsel %vm221, %v4018, 0.0
    %v4022 = vadd.f32 %v4017, %v4021
    %v4023 = vrot.slane %v4022, 4
    %v4024 = vadd.f32 %v4022, %v4023
    %v4025 = vrot.slane %v4024, 2
    %v4026 = vadd.f32 %v4024, %v4025
    %v4027 = vrot.slane %v4026, 1
    %v4028 = vadd.f32 %v4026, %v4027
    %v4029 = vpack.c.bf16 %v4028, %v4028
    %v4030 = vunpack.c.l.bf16 %v4029
    %v4031 = vsub.f32 %v4028, %v4030
    %v4032 = vpack.c.bf16 %v4031, %v4031
    %4033 = vmatpush.bf16.msra.mxu0 %v273
    %4034 = vmatpush.bf16.msra.mxu0 %v272
    %4035 = vmatpush.bf16.msra.mxu0 %v271
    %4036 = vmatpush.bf16.msra.mxu0 %v270
    %4037 = vmatpush.bf16.msra.mxu0 %v269
    %4038 = vmatpush.bf16.msra.mxu0 %v268
    %4039 = vmatpush.bf16.msra.mxu0 %v267
    %4040 = vmatpush.bf16.msra.mxu0 %v266
    %4041 = vmatmul.bf16.gmra.mxu0 %v4032
    %v4042 = vpop.f32.mrf.mxu0
    %v4043 = vadd.f32 0.0, %v4042
    %v4044 = vpop.f32.mrf.mxu0
    %4045 = vdwg.mxu0
    %4046 = vmatpush.bf16.msra.mxu0 %v273
    %4047 = vmatpush.bf16.msra.mxu0 %v272
    %4048 = vmatpush.bf16.msra.mxu0 %v271
    %4049 = vmatpush.bf16.msra.mxu0 %v270
    %4050 = vmatpush.bf16.msra.mxu0 %v269
    %4051 = vmatpush.bf16.msra.mxu0 %v268
    %4052 = vmatpush.bf16.msra.mxu0 %v267
    %4053 = vmatpush.bf16.msra.mxu0 %v266
    %4054 = vmatmul.bf16.gmra.mxu0 %v4029
    %v4055 = vpop.f32.mrf.mxu0
    %v4056 = vadd.f32 %v4043, %v4055
    %v4057 = vpop.f32.mrf.mxu0
    %4058 = vdwg.mxu0
    %v4059 = vmul.f32 %v4056, 0.02
    %v4060 = vmul.f32 %v4017, %v4017
    %v4061 = vmul.f32 %v4018, %v4018
    %v4062 = vsel %vm221, %v4061, 0.0
    %v4063 = vadd.f32 %v4060, %v4062
    %v4064 = vrot.slane %v4063, 4
    %v4065 = vadd.f32 %v4063, %v4064
    %v4066 = vrot.slane %v4065, 2
    %v4067 = vadd.f32 %v4065, %v4066
    %v4068 = vrot.slane %v4067, 1
    %v4069 = vadd.f32 %v4067, %v4068
    %v4070 = vpack.c.bf16 %v4069, %v4069
    %v4071 = vunpack.c.l.bf16 %v4070
    %v4072 = vsub.f32 %v4069, %v4071
    %v4073 = vpack.c.bf16 %v4072, %v4072
    %4074 = vmatpush.bf16.msra.mxu0 %v273
    %4075 = vmatpush.bf16.msra.mxu0 %v272
    %4076 = vmatpush.bf16.msra.mxu0 %v271
    %4077 = vmatpush.bf16.msra.mxu0 %v270
    %4078 = vmatpush.bf16.msra.mxu0 %v269
    %4079 = vmatpush.bf16.msra.mxu0 %v268
    %4080 = vmatpush.bf16.msra.mxu0 %v267
    %4081 = vmatpush.bf16.msra.mxu0 %v266
    %4082 = vmatmul.bf16.gmra.mxu0 %v4073
    %v4083 = vpop.f32.mrf.mxu0
    %v4084 = vadd.f32 0.0, %v4083
    %v4085 = vpop.f32.mrf.mxu0
    %4086 = vdwg.mxu0
    %4087 = vmatpush.bf16.msra.mxu0 %v273
    %4088 = vmatpush.bf16.msra.mxu0 %v272
    %4089 = vmatpush.bf16.msra.mxu0 %v271
    %4090 = vmatpush.bf16.msra.mxu0 %v270
    %4091 = vmatpush.bf16.msra.mxu0 %v269
    %4092 = vmatpush.bf16.msra.mxu0 %v268
    %4093 = vmatpush.bf16.msra.mxu0 %v267
    %4094 = vmatpush.bf16.msra.mxu0 %v266
    %4095 = vmatmul.bf16.gmra.mxu0 %v4070
    %v4096 = vpop.f32.mrf.mxu0
    %v4097 = vadd.f32 %v4084, %v4096
    %v4098 = vpop.f32.mrf.mxu0
    %4099 = vdwg.mxu0
    %v4100 = vmul.f32 %v4097, 0.02
    %v4101 = vmul.f32 %v4059, %v4059
    %v4102 = vsub.f32 %v4100, %v4101
    %v4103 = vadd.f32 %v4102, 1e-05
    %v4104 = vrsqrt.pop %v4103
    %v4105 = vmul.f32 %v4104, %v4103
    %v4106 = vmul.f32 %v4105, %v4104
    %v4107 = vmul.f32 0.5, %v4106
    %v4108 = vsub.f32 1.5, %v4107
    %v4109 = vmul.f32 %v4104, %v4108
    %vm4110 = vweird.f32 %v4103
    %vm4111 = vweird.f32 %v4104
    %vm4112 = vmor %vm4110, %vm4111
    %v4113 = vsel %vm4112, %v4104, %v4109
    %v4114 = vmul.f32 %v4019, %v4113
    %v4115 = vperm.slane %v4059, 0
    %v4116 = vsub.f32 %v4017, %v4115
    %v4117 = vsub.f32 %v4018, %v4115
    %v4118 = vperm.slane %v4114, 0
    %v4119 = vmul.f32 %v4116, %v4118
    %v4120 = vmul.f32 %v4117, %v4118
    %v4121 = vperm.slane %v4020, 0
    %v4122 = vadd.f32 %v4119, %v4121
    %v4123 = vadd.f32 %v4120, %v4121
    %v4124 = vmax.f32 %v4122, 0.0
    %v4125 = vmax.f32 %v4123, 0.0
    %4126 = vst [vmem:[#allocation4 + $0x2] sm:$0xff] %v4124
    %4127 = vst [vmem:[#allocation4 + $0xa] sm:$0x3] %v4125
    %v4128 = vld [vmem:[#allocation4] sm:$0xff]
    %v4129 = vld [vmem:[#allocation4 + $0x8] sm:$0x3]
    %v4130 = vld [vmem:[#allocation4 + $0x2] sm:$0xff]
    %v4131 = vld [vmem:[#allocation4 + $0xa] sm:$0x3]
    %v4132 = vld [vmem:[#allocation4 + $0x4] sm:$0xff]
    %v4133 = vld [vmem:[#allocation4 + $0xc] sm:$0x3]
    %s4134 = scalar_lea.vmem [#allocation8], 192
    %v4135 = vld [vmem:[%s4134] sm:$0xf]
    %v4136 = vld [vmem:[%s4134 + $0x4] sm:$0xf]
    %v4137 = vld [vmem:[%s4134 + $0x8] sm:$0xf]
    %v4138 = vld [vmem:[%s4134 + $0xc] sm:$0xf]
    %v4139 = vld [vmem:[%s4134 + $0x10] sm:$0xf]
    %v4140 = vld [vmem:[%s4134 + $0x14] sm:$0xf]
    %v4141 = vld [vmem:[%s4134 + $0x18] sm:$0xf]
    %v4142 = vld [vmem:[%s4134 + $0x1c] sm:$0xf]
    %v4143 = vld [vmem:[%s4134 + $0x20] sm:$0xf]
    %v4144 = vld [vmem:[%s4134 + $0x24] sm:$0xf]
    %v4145 = vld [vmem:[%s4134 + $0x28] sm:$0xf]
    %v4146 = vld [vmem:[%s4134 + $0x2c] sm:$0xf]
    %v4147 = vld [vmem:[%s4134 + $0x30] sm:$0xf]
    %v4148 = vld [vmem:[%s4134 + $0x34] sm:$0xf]
    %v4149 = vld [vmem:[%s4134 + $0x38] sm:$0xf]
    %v4150 = vld [vmem:[%s4134 + $0x3c] sm:$0xf]
    %v4151 = vld [vmem:[%s4134 + $0x40] sm:$0xf]
    %v4152 = vld [vmem:[%s4134 + $0x44] sm:$0xf]
    %v4153 = vld [vmem:[%s4134 + $0x48] sm:$0xf]
    %v4154 = vld [vmem:[%s4134 + $0x4c] sm:$0xf]
    %v4155 = vld [vmem:[%s4134 + $0x50] sm:$0xf]
    %v4156 = vld [vmem:[%s4134 + $0x54] sm:$0xf]
    %v4157 = vld [vmem:[%s4134 + $0x58] sm:$0xf]
    %v4158 = vld [vmem:[%s4134 + $0x5c] sm:$0xf]
    %v4159 = vld [vmem:[%s4134 + $0x60] sm:$0xf]
    %v4160 = vld [vmem:[%s4134 + $0x64] sm:$0xf]
    %v4161 = vld [vmem:[%s4134 + $0x68] sm:$0xf]
    %v4162 = vld [vmem:[%s4134 + $0x6c] sm:$0xf]
    %v4163 = vld [vmem:[%s4134 + $0x70] sm:$0xf]
    %v4164 = vld [vmem:[%s4134 + $0x74] sm:$0xf]
    %v4165 = vld [vmem:[%s4134 + $0x78] sm:$0xf]
    %v4166 = vld [vmem:[%s4134 + $0x7c] sm:$0xf]
    %v4167 = vld [vmem:[%s4134 + $0x80] sm:$0xf]
    %v4168 = vld [vmem:[%s4134 + $0x84] sm:$0xf]
    %v4169 = vld [vmem:[%s4134 + $0x88] sm:$0xf]
    %v4170 = vld [vmem:[%s4134 + $0x8c] sm:$0xf]
    %v4171 = vld [vmem:[%s4134 + $0x90] sm:$0xf]
    %v4172 = vld [vmem:[%s4134 + $0x94] sm:$0xf]
    %v4173 = vld [vmem:[%s4134 + $0x98] sm:$0xf]
    %v4174 = vld [vmem:[%s4134 + $0x9c] sm:$0xf]
    %v4175 = vld [vmem:[%s4134 + $0xa0] sm:$0xf]
    %v4176 = vld [vmem:[%s4134 + $0xa4] sm:$0xf]
    %v4177 = vld [vmem:[%s4134 + $0xa8] sm:$0xf]
    %v4178 = vld [vmem:[%s4134 + $0xac] sm:$0xf]
    %v4179 = vld [vmem:[%s4134 + $0xb0] sm:$0xf]
    %v4180 = vld [vmem:[%s4134 + $0xb4] sm:$0xf]
    %v4181 = vld [vmem:[%s4134 + $0xb8] sm:$0xf]
    %v4182 = vld [vmem:[%s4134 + $0xbc] sm:$0xf]
    %v4183 = vpack.c.bf16 %v4129, %v4128
    %v4184 = vpack.c.bf16 %v4131, %v4130
    %v4185 = vpack.c.bf16 %v4133, %v4132
    %v4186 = vld [vmem:[#allocation10 + $0x18] sm:$0x1]
    %v4187 = vperm.slane %v4186, 0
    %v4236 = vunpack.c.l.b16 %v4135
    %v4237 = vunpack.c.l.b16 %v4136
    %v4238 = vunpack.c.l.b16 %v4137
    %v4239 = vunpack.c.l.b16 %v4138
    %v4240 = vunpack.c.l.b16 %v4139
    %v4241 = vunpack.c.l.b16 %v4140
    %v4242 = vunpack.c.l.b16 %v4141
    %v4243 = vunpack.c.l.b16 %v4142
    %v4244 = vunpack.c.l.b16 %v4143
    %v4245 = vunpack.c.l.b16 %v4144
    %v4246 = vunpack.c.l.b16 %v4145
    %v4247 = vunpack.c.l.b16 %v4146
    %v4248 = vunpack.c.l.b16 %v4147
    %v4249 = vunpack.c.l.b16 %v4148
    %v4250 = vunpack.c.l.b16 %v4149
    %v4251 = vunpack.c.l.b16 %v4150
    %v4252 = vunpack.c.l.b16 %v4151
    %v4253 = vunpack.c.l.b16 %v4152
    %v4254 = vunpack.c.l.b16 %v4153
    %v4255 = vunpack.c.l.b16 %v4154
    %v4256 = vunpack.c.l.b16 %v4155
    %v4257 = vunpack.c.l.b16 %v4156
    %v4258 = vunpack.c.l.b16 %v4157
    %v4259 = vunpack.c.l.b16 %v4158
    %v4260 = vunpack.c.l.b16 %v4159
    %v4261 = vunpack.c.l.b16 %v4160
    %v4262 = vunpack.c.l.b16 %v4161
    %v4263 = vunpack.c.l.b16 %v4162
    %v4264 = vunpack.c.l.b16 %v4163
    %v4265 = vunpack.c.l.b16 %v4164
    %v4266 = vunpack.c.l.b16 %v4165
    %v4267 = vunpack.c.l.b16 %v4166
    %v4268 = vunpack.c.l.b16 %v4167
    %v4269 = vunpack.c.l.b16 %v4168
    %v4270 = vunpack.c.l.b16 %v4169
    %v4271 = vunpack.c.l.b16 %v4170
    %v4272 = vunpack.c.l.b16 %v4171
    %v4273 = vunpack.c.l.b16 %v4172
    %v4274 = vunpack.c.l.b16 %v4173
    %v4275 = vunpack.c.l.b16 %v4174
    %v4276 = vunpack.c.l.b16 %v4175
    %v4277 = vunpack.c.l.b16 %v4176
    %v4278 = vunpack.c.l.b16 %v4177
    %v4279 = vunpack.c.l.b16 %v4178
    %v4280 = vunpack.c.l.b16 %v4179
    %v4281 = vunpack.c.l.b16 %v4180
    %v4282 = vunpack.c.l.b16 %v4181
    %v4283 = vunpack.c.l.b16 %v4182
    %v4284 = vpack.c.b16 %v4237, %v4236
    %v4285 = vpack.c.b16 %v4239, %v4238
    %v4286 = vpack.c.b16 %v4241, %v4240
    %v4287 = vpack.c.b16 %v4243, %v4242
    %v4288 = vpack.c.b16 %v4245, %v4244
    %v4289 = vpack.c.b16 %v4247, %v4246
    %v4290 = vpack.c.b16 %v4249, %v4248
    %v4291 = vpack.c.b16 %v4251, %v4250
    %v4292 = vpack.c.b16 %v4253, %v4252
    %v4293 = vpack.c.b16 %v4255, %v4254
    %v4294 = vpack.c.b16 %v4257, %v4256
    %v4295 = vpack.c.b16 %v4259, %v4258
    %v4296 = vpack.c.b16 %v4261, %v4260
    %v4297 = vpack.c.b16 %v4263, %v4262
    %v4298 = vpack.c.b16 %v4265, %v4264
    %v4299 = vpack.c.b16 %v4267, %v4266
    %v4300 = vpack.c.b16 %v4269, %v4268
    %v4301 = vpack.c.b16 %v4271, %v4270
    %v4302 = vpack.c.b16 %v4273, %v4272
    %v4303 = vpack.c.b16 %v4275, %v4274
    %v4304 = vpack.c.b16 %v4277, %v4276
    %v4305 = vpack.c.b16 %v4279, %v4278
    %v4306 = vpack.c.b16 %v4281, %v4280
    %v4307 = vpack.c.b16 %v4283, %v4282
    %4332 = vmatpush.bf16.msra.mxu0 %v4291
    %4333 = vmatpush.bf16.msra.mxu0 %v4290
    %4334 = vmatpush.bf16.msra.mxu0 %v4289
    %4335 = vmatpush.bf16.msra.mxu0 %v4288
    %4336 = vmatpush.bf16.msra.mxu0 %v4287
    %4337 = vmatpush.bf16.msra.mxu0 %v4286
    %4338 = vmatpush.bf16.msra.mxu0 %v4285
    %4339 = vmatpush.bf16.msra.mxu0 %v4284
    %4340 = vmatmul.bf16.gmra.mxu0 %v4183
    %v4341 = vpop.f32.mrf.mxu0
    %v4342 = vadd.f32 %v4187, %v4341
    %v4343 = vpop.f32.mrf.mxu0
    %v4344 = vadd.f32 %v4187, %v4343
    %4345 = vdwg.mxu0
    %4346 = vmatpush.bf16.msra.mxu0 %v4299
    %4347 = vmatpush.bf16.msra.mxu0 %v4298
    %4348 = vmatpush.bf16.msra.mxu0 %v4297
    %4349 = vmatpush.bf16.msra.mxu0 %v4296
    %4350 = vmatpush.bf16.msra.mxu0 %v4295
    %4351 = vmatpush.bf16.msra.mxu0 %v4294
    %4352 = vmatpush.bf16.msra.mxu0 %v4293
    %4353 = vmatpush.bf16.msra.mxu0 %v4292
    %4354 = vmatmul.bf16.gmra.mxu0 %v4184
    %v4355 = vpop.f32.mrf.mxu0
    %v4356 = vadd.f32 %v4342, %v4355
    %v4357 = vpop.f32.mrf.mxu0
    %v4358 = vadd.f32 %v4344, %v4357
    %4359 = vdwg.mxu0
    %4360 = vmatpush.bf16.msra.mxu0 %v4307
    %4361 = vmatpush.bf16.msra.mxu0 %v4306
    %4362 = vmatpush.bf16.msra.mxu0 %v4305
    %4363 = vmatpush.bf16.msra.mxu0 %v4304
    %4364 = vmatpush.bf16.msra.mxu0 %v4303
    %4365 = vmatpush.bf16.msra.mxu0 %v4302
    %4366 = vmatpush.bf16.msra.mxu0 %v4301
    %4367 = vmatpush.bf16.msra.mxu0 %v4300
    %4368 = vmatmul.bf16.gmra.mxu0 %v4185
    %v4369 = vpop.f32.mrf.mxu0
    %v4370 = vadd.f32 %v4356, %v4369
    %v4371 = vpop.f32.mrf.mxu0
    %v4372 = vadd.f32 %v4358, %v4371
    %4373 = vdwg.mxu0
    %v4374 = vld [vmem:[#allocation10 + $0x19] sm:$0x1]
    %v4375 = vld [vmem:[#allocation10 + $0x1a] sm:$0x1]
    %v4376 = vsel %vm221, %v4372, 0.0
    %v4377 = vadd.f32 %v4370, %v4376
    %v4378 = vrot.slane %v4377, 4
    %v4379 = vadd.f32 %v4377, %v4378
    %v4380 = vrot.slane %v4379, 2
    %v4381 = vadd.f32 %v4379, %v4380
    %v4382 = vrot.slane %v4381, 1
    %v4383 = vadd.f32 %v4381, %v4382
    %v4384 = vpack.c.bf16 %v4383, %v4383
    %v4385 = vunpack.c.l.bf16 %v4384
    %v4386 = vsub.f32 %v4383, %v4385
    %v4387 = vpack.c.bf16 %v4386, %v4386
    %4388 = vmatpush.bf16.msra.mxu0 %v273
    %4389 = vmatpush.bf16.msra.mxu0 %v272
    %4390 = vmatpush.bf16.msra.mxu0 %v271
    %4391 = vmatpush.bf16.msra.mxu0 %v270
    %4392 = vmatpush.bf16.msra.mxu0 %v269
    %4393 = vmatpush.bf16.msra.mxu0 %v268
    %4394 = vmatpush.bf16.msra.mxu0 %v267
    %4395 = vmatpush.bf16.msra.mxu0 %v266
    %4396 = vmatmul.bf16.gmra.mxu0 %v4387
    %v4397 = vpop.f32.mrf.mxu0
    %v4398 = vadd.f32 0.0, %v4397
    %v4399 = vpop.f32.mrf.mxu0
    %4400 = vdwg.mxu0
    %4401 = vmatpush.bf16.msra.mxu0 %v273
    %4402 = vmatpush.bf16.msra.mxu0 %v272
    %4403 = vmatpush.bf16.msra.mxu0 %v271
    %4404 = vmatpush.bf16.msra.mxu0 %v270
    %4405 = vmatpush.bf16.msra.mxu0 %v269
    %4406 = vmatpush.bf16.msra.mxu0 %v268
    %4407 = vmatpush.bf16.msra.mxu0 %v267
    %4408 = vmatpush.bf16.msra.mxu0 %v266
    %4409 = vmatmul.bf16.gmra.mxu0 %v4384
    %v4410 = vpop.f32.mrf.mxu0
    %v4411 = vadd.f32 %v4398, %v4410
    %v4412 = vpop.f32.mrf.mxu0
    %4413 = vdwg.mxu0
    %v4414 = vmul.f32 %v4411, 0.02
    %v4415 = vmul.f32 %v4370, %v4370
    %v4416 = vmul.f32 %v4372, %v4372
    %v4417 = vsel %vm221, %v4416, 0.0
    %v4418 = vadd.f32 %v4415, %v4417
    %v4419 = vrot.slane %v4418, 4
    %v4420 = vadd.f32 %v4418, %v4419
    %v4421 = vrot.slane %v4420, 2
    %v4422 = vadd.f32 %v4420, %v4421
    %v4423 = vrot.slane %v4422, 1
    %v4424 = vadd.f32 %v4422, %v4423
    %v4425 = vpack.c.bf16 %v4424, %v4424
    %v4426 = vunpack.c.l.bf16 %v4425
    %v4427 = vsub.f32 %v4424, %v4426
    %v4428 = vpack.c.bf16 %v4427, %v4427
    %4429 = vmatpush.bf16.msra.mxu0 %v273
    %4430 = vmatpush.bf16.msra.mxu0 %v272
    %4431 = vmatpush.bf16.msra.mxu0 %v271
    %4432 = vmatpush.bf16.msra.mxu0 %v270
    %4433 = vmatpush.bf16.msra.mxu0 %v269
    %4434 = vmatpush.bf16.msra.mxu0 %v268
    %4435 = vmatpush.bf16.msra.mxu0 %v267
    %4436 = vmatpush.bf16.msra.mxu0 %v266
    %4437 = vmatmul.bf16.gmra.mxu0 %v4428
    %v4438 = vpop.f32.mrf.mxu0
    %v4439 = vadd.f32 0.0, %v4438
    %v4440 = vpop.f32.mrf.mxu0
    %4441 = vdwg.mxu0
    %4442 = vmatpush.bf16.msra.mxu0 %v273
    %4443 = vmatpush.bf16.msra.mxu0 %v272
    %4444 = vmatpush.bf16.msra.mxu0 %v271
    %4445 = vmatpush.bf16.msra.mxu0 %v270
    %4446 = vmatpush.bf16.msra.mxu0 %v269
    %4447 = vmatpush.bf16.msra.mxu0 %v268
    %4448 = vmatpush.bf16.msra.mxu0 %v267
    %4449 = vmatpush.bf16.msra.mxu0 %v266
    %4450 = vmatmul.bf16.gmra.mxu0 %v4425
    %v4451 = vpop.f32.mrf.mxu0
    %v4452 = vadd.f32 %v4439, %v4451
    %v4453 = vpop.f32.mrf.mxu0
    %4454 = vdwg.mxu0
    %v4455 = vmul.f32 %v4452, 0.02
    %v4456 = vmul.f32 %v4414, %v4414
    %v4457 = vsub.f32 %v4455, %v4456
    %v4458 = vadd.f32 %v4457, 1e-05
    %v4459 = vrsqrt.pop %v4458
    %v4460 = vmul.f32 %v4459, %v4458
    %v4461 = vmul.f32 %v4460, %v4459
    %v4462 = vmul.f32 0.5, %v4461
    %v4463 = vsub.f32 1.5, %v4462
    %v4464 = vmul.f32 %v4459, %v4463
    %vm4465 = vweird.f32 %v4458
    %vm4466 = vweird.f32 %v4459
    %vm4467 = vmor %vm4465, %vm4466
    %v4468 = vsel %vm4467, %v4459, %v4464
    %v4469 = vmul.f32 %v4374, %v4468
    %v4470 = vperm.slane %v4414, 0
    %v4471 = vsub.f32 %v4370, %v4470
    %v4472 = vsub.f32 %v4372, %v4470
    %v4473 = vperm.slane %v4469, 0
    %v4474 = vmul.f32 %v4471, %v4473
    %v4475 = vmul.f32 %v4472, %v4473
    %v4476 = vperm.slane %v4375, 0
    %v4477 = vadd.f32 %v4474, %v4476
    %v4478 = vadd.f32 %v4475, %v4476
    %v4479 = vadd.f32 %v4477, %v3772
    %v4480 = vadd.f32 %v4478, %v3773
    %v4481 = vmax.f32 %v4479, 0.0
    %v4482 = vmax.f32 %v4480, 0.0
    %4483 = vst [vmem:[#allocation3 + $0x2] sm:$0xff] %v4481
    %4484 = vst [vmem:[#allocation3 + $0xa] sm:$0x3] %v4482
    %v4485 = vld [vmem:[#allocation3 + $0x2] sm:$0xff]
    %v4486 = vld [vmem:[#allocation3 + $0xa] sm:$0x3]
    %v4487 = vld [vmem:[#allocation3] sm:$0xff]
    %v4488 = vld [vmem:[#allocation3 + $0x8] sm:$0x3]
    %v4489 = vld [vmem:[#allocation3 + $0x4] sm:$0xff]
    %v4490 = vld [vmem:[#allocation3 + $0xc] sm:$0x3]
    %s4491 = scalar_lea.vmem [#allocation8], 384
    %v4492 = vld [vmem:[%s4491] sm:$0xf]
    %v4493 = vld [vmem:[%s4491 + $0x4] sm:$0xf]
    %v4494 = vld [vmem:[%s4491 + $0x8] sm:$0xf]
    %v4495 = vld [vmem:[%s4491 + $0xc] sm:$0xf]
    %v4496 = vld [vmem:[%s4491 + $0x10] sm:$0xf]
    %v4497 = vld [vmem:[%s4491 + $0x14] sm:$0xf]
    %v4498 = vld [vmem:[%s4491 + $0x18] sm:$0xf]
    %v4499 = vld [vmem:[%s4491 + $0x1c] sm:$0xf]
    %v4500 = vld [vmem:[%s4491 + $0x20] sm:$0xf]
    %v4501 = vld [vmem:[%s4491 + $0x24] sm:$0xf]
    %v4502 = vld [vmem:[%s4491 + $0x28] sm:$0xf]
    %v4503 = vld [vmem:[%s4491 + $0x2c] sm:$0xf]
    %v4504 = vld [vmem:[%s4491 + $0x30] sm:$0xf]
    %v4505 = vld [vmem:[%s4491 + $0x34] sm:$0xf]
    %v4506 = vld [vmem:[%s4491 + $0x38] sm:$0xf]
    %v4507 = vld [vmem:[%s4491 + $0x3c] sm:$0xf]
    %v4508 = vld [vmem:[%s4491 + $0x40] sm:$0xf]
    %v4509 = vld [vmem:[%s4491 + $0x44] sm:$0xf]
    %v4510 = vld [vmem:[%s4491 + $0x48] sm:$0xf]
    %v4511 = vld [vmem:[%s4491 + $0x4c] sm:$0xf]
    %v4512 = vld [vmem:[%s4491 + $0x50] sm:$0xf]
    %v4513 = vld [vmem:[%s4491 + $0x54] sm:$0xf]
    %v4514 = vld [vmem:[%s4491 + $0x58] sm:$0xf]
    %v4515 = vld [vmem:[%s4491 + $0x5c] sm:$0xf]
    %v4516 = vld [vmem:[%s4491 + $0x60] sm:$0xf]
    %v4517 = vld [vmem:[%s4491 + $0x64] sm:$0xf]
    %v4518 = vld [vmem:[%s4491 + $0x68] sm:$0xf]
    %v4519 = vld [vmem:[%s4491 + $0x6c] sm:$0xf]
    %v4520 = vld [vmem:[%s4491 + $0x70] sm:$0xf]
    %v4521 = vld [vmem:[%s4491 + $0x74] sm:$0xf]
    %v4522 = vld [vmem:[%s4491 + $0x78] sm:$0xf]
    %v4523 = vld [vmem:[%s4491 + $0x7c] sm:$0xf]
    %v4524 = vld [vmem:[%s4491 + $0x80] sm:$0xf]
    %v4525 = vld [vmem:[%s4491 + $0x84] sm:$0xf]
    %v4526 = vld [vmem:[%s4491 + $0x88] sm:$0xf]
    %v4527 = vld [vmem:[%s4491 + $0x8c] sm:$0xf]
    %v4528 = vld [vmem:[%s4491 + $0x90] sm:$0xf]
    %v4529 = vld [vmem:[%s4491 + $0x94] sm:$0xf]
    %v4530 = vld [vmem:[%s4491 + $0x98] sm:$0xf]
    %v4531 = vld [vmem:[%s4491 + $0x9c] sm:$0xf]
    %v4532 = vld [vmem:[%s4491 + $0xa0] sm:$0xf]
    %v4533 = vld [vmem:[%s4491 + $0xa4] sm:$0xf]
    %v4534 = vld [vmem:[%s4491 + $0xa8] sm:$0xf]
    %v4535 = vld [vmem:[%s4491 + $0xac] sm:$0xf]
    %v4536 = vld [vmem:[%s4491 + $0xb0] sm:$0xf]
    %v4537 = vld [vmem:[%s4491 + $0xb4] sm:$0xf]
    %v4538 = vld [vmem:[%s4491 + $0xb8] sm:$0xf]
    %v4539 = vld [vmem:[%s4491 + $0xbc] sm:$0xf]
    %v4540 = vpack.c.bf16 %v4488, %v4487
    %v4541 = vpack.c.bf16 %v4486, %v4485
    %v4542 = vpack.c.bf16 %v4490, %v4489
    %v4543 = vld [vmem:[#allocation10 + $0x1b] sm:$0x1]
    %v4544 = vperm.slane %v4543, 0
    %v4593 = vunpack.c.l.b16 %v4492
    %v4594 = vunpack.c.l.b16 %v4493
    %v4595 = vunpack.c.l.b16 %v4494
    %v4596 = vunpack.c.l.b16 %v4495
    %v4597 = vunpack.c.l.b16 %v4496
    %v4598 = vunpack.c.l.b16 %v4497
    %v4599 = vunpack.c.l.b16 %v4498
    %v4600 = vunpack.c.l.b16 %v4499
    %v4601 = vunpack.c.l.b16 %v4500
    %v4602 = vunpack.c.l.b16 %v4501
    %v4603 = vunpack.c.l.b16 %v4502
    %v4604 = vunpack.c.l.b16 %v4503
    %v4605 = vunpack.c.l.b16 %v4504
    %v4606 = vunpack.c.l.b16 %v4505
    %v4607 = vunpack.c.l.b16 %v4506
    %v4608 = vunpack.c.l.b16 %v4507
    %v4609 = vunpack.c.l.b16 %v4508
    %v4610 = vunpack.c.l.b16 %v4509
    %v4611 = vunpack.c.l.b16 %v4510
    %v4612 = vunpack.c.l.b16 %v4511
    %v4613 = vunpack.c.l.b16 %v4512
    %v4614 = vunpack.c.l.b16 %v4513
    %v4615 = vunpack.c.l.b16 %v4514
    %v4616 = vunpack.c.l.b16 %v4515
    %v4617 = vunpack.c.l.b16 %v4516
    %v4618 = vunpack.c.l.b16 %v4517
    %v4619 = vunpack.c.l.b16 %v4518
    %v4620 = vunpack.c.l.b16 %v4519
    %v4621 = vunpack.c.l.b16 %v4520
    %v4622 = vunpack.c.l.b16 %v4521
    %v4623 = vunpack.c.l.b16 %v4522
    %v4624 = vunpack.c.l.b16 %v4523
    %v4625 = vunpack.c.l.b16 %v4524
    %v4626 = vunpack.c.l.b16 %v4525
    %v4627 = vunpack.c.l.b16 %v4526
    %v4628 = vunpack.c.l.b16 %v4527
    %v4629 = vunpack.c.l.b16 %v4528
    %v4630 = vunpack.c.l.b16 %v4529
    %v4631 = vunpack.c.l.b16 %v4530
    %v4632 = vunpack.c.l.b16 %v4531
    %v4633 = vunpack.c.l.b16 %v4532
    %v4634 = vunpack.c.l.b16 %v4533
    %v4635 = vunpack.c.l.b16 %v4534
    %v4636 = vunpack.c.l.b16 %v4535
    %v4637 = vunpack.c.l.b16 %v4536
    %v4638 = vunpack.c.l.b16 %v4537
    %v4639 = vunpack.c.l.b16 %v4538
    %v4640 = vunpack.c.l.b16 %v4539
    %v4641 = vpack.c.b16 %v4594, %v4593
    %v4642 = vpack.c.b16 %v4596, %v4595
    %v4643 = vpack.c.b16 %v4598, %v4597
    %v4644 = vpack.c.b16 %v4600, %v4599
    %v4645 = vpack.c.b16 %v4602, %v4601
    %v4646 = vpack.c.b16 %v4604, %v4603
    %v4647 = vpack.c.b16 %v4606, %v4605
    %v4648 = vpack.c.b16 %v4608, %v4607
    %v4649 = vpack.c.b16 %v4610, %v4609
    %v4650 = vpack.c.b16 %v4612, %v4611
    %v4651 = vpack.c.b16 %v4614, %v4613
    %v4652 = vpack.c.b16 %v4616, %v4615
    %v4653 = vpack.c.b16 %v4618, %v4617
    %v4654 = vpack.c.b16 %v4620, %v4619
    %v4655 = vpack.c.b16 %v4622, %v4621
    %v4656 = vpack.c.b16 %v4624, %v4623
    %v4657 = vpack.c.b16 %v4626, %v4625
    %v4658 = vpack.c.b16 %v4628, %v4627
    %v4659 = vpack.c.b16 %v4630, %v4629
    %v4660 = vpack.c.b16 %v4632, %v4631
    %v4661 = vpack.c.b16 %v4634, %v4633
    %v4662 = vpack.c.b16 %v4636, %v4635
    %v4663 = vpack.c.b16 %v4638, %v4637
    %v4664 = vpack.c.b16 %v4640, %v4639
    %4689 = vmatpush.bf16.msra.mxu0 %v4648
    %4690 = vmatpush.bf16.msra.mxu0 %v4647
    %4691 = vmatpush.bf16.msra.mxu0 %v4646
    %4692 = vmatpush.bf16.msra.mxu0 %v4645
    %4693 = vmatpush.bf16.msra.mxu0 %v4644
    %4694 = vmatpush.bf16.msra.mxu0 %v4643
    %4695 = vmatpush.bf16.msra.mxu0 %v4642
    %4696 = vmatpush.bf16.msra.mxu0 %v4641
    %4697 = vmatmul.bf16.gmra.mxu0 %v4540
    %v4698 = vpop.f32.mrf.mxu0
    %v4699 = vadd.f32 %v4544, %v4698
    %v4700 = vpop.f32.mrf.mxu0
    %v4701 = vadd.f32 %v4544, %v4700
    %4702 = vdwg.mxu0
    %4703 = vmatpush.bf16.msra.mxu0 %v4656
    %4704 = vmatpush.bf16.msra.mxu0 %v4655
    %4705 = vmatpush.bf16.msra.mxu0 %v4654
    %4706 = vmatpush.bf16.msra.mxu0 %v4653
    %4707 = vmatpush.bf16.msra.mxu0 %v4652
    %4708 = vmatpush.bf16.msra.mxu0 %v4651
    %4709 = vmatpush.bf16.msra.mxu0 %v4650
    %4710 = vmatpush.bf16.msra.mxu0 %v4649
    %4711 = vmatmul.bf16.gmra.mxu0 %v4541
    %v4712 = vpop.f32.mrf.mxu0
    %v4713 = vadd.f32 %v4699, %v4712
    %v4714 = vpop.f32.mrf.mxu0
    %v4715 = vadd.f32 %v4701, %v4714
    %4716 = vdwg.mxu0
    %4717 = vmatpush.bf16.msra.mxu0 %v4664
    %4718 = vmatpush.bf16.msra.mxu0 %v4663
    %4719 = vmatpush.bf16.msra.mxu0 %v4662
    %4720 = vmatpush.bf16.msra.mxu0 %v4661
    %4721 = vmatpush.bf16.msra.mxu0 %v4660
    %4722 = vmatpush.bf16.msra.mxu0 %v4659
    %4723 = vmatpush.bf16.msra.mxu0 %v4658
    %4724 = vmatpush.bf16.msra.mxu0 %v4657
    %4725 = vmatmul.bf16.gmra.mxu0 %v4542
    %v4726 = vpop.f32.mrf.mxu0
    %v4727 = vadd.f32 %v4713, %v4726
    %v4728 = vpop.f32.mrf.mxu0
    %v4729 = vadd.f32 %v4715, %v4728
    %4730 = vdwg.mxu0
    %v4731 = vmax.f32 %v4727, 0.0
    %v4732 = vmax.f32 %v4729, 0.0
    %v4733 = vld [vmem:[#allocation10 + $0x1c] sm:$0x1]
    %v4734 = vld [vmem:[#allocation10 + $0x1d] sm:$0x1]
    %v4735 = vsel %vm221, %v4732, 0.0
    %v4736 = vadd.f32 %v4731, %v4735
    %v4737 = vrot.slane %v4736, 4
    %v4738 = vadd.f32 %v4736, %v4737
    %v4739 = vrot.slane %v4738, 2
    %v4740 = vadd.f32 %v4738, %v4739
    %v4741 = vrot.slane %v4740, 1
    %v4742 = vadd.f32 %v4740, %v4741
    %v4743 = vpack.c.bf16 %v4742, %v4742
    %v4744 = vunpack.c.l.bf16 %v4743
    %v4745 = vsub.f32 %v4742, %v4744
    %v4746 = vpack.c.bf16 %v4745, %v4745
    %4747 = vmatpush.bf16.msra.mxu0 %v273
    %4748 = vmatpush.bf16.msra.mxu0 %v272
    %4749 = vmatpush.bf16.msra.mxu0 %v271
    %4750 = vmatpush.bf16.msra.mxu0 %v270
    %4751 = vmatpush.bf16.msra.mxu0 %v269
    %4752 = vmatpush.bf16.msra.mxu0 %v268
    %4753 = vmatpush.bf16.msra.mxu0 %v267
    %4754 = vmatpush.bf16.msra.mxu0 %v266
    %4755 = vmatmul.bf16.gmra.mxu0 %v4746
    %v4756 = vpop.f32.mrf.mxu0
    %v4757 = vadd.f32 0.0, %v4756
    %v4758 = vpop.f32.mrf.mxu0
    %4759 = vdwg.mxu0
    %4760 = vmatpush.bf16.msra.mxu0 %v273
    %4761 = vmatpush.bf16.msra.mxu0 %v272
    %4762 = vmatpush.bf16.msra.mxu0 %v271
    %4763 = vmatpush.bf16.msra.mxu0 %v270
    %4764 = vmatpush.bf16.msra.mxu0 %v269
    %4765 = vmatpush.bf16.msra.mxu0 %v268
    %4766 = vmatpush.bf16.msra.mxu0 %v267
    %4767 = vmatpush.bf16.msra.mxu0 %v266
    %4768 = vmatmul.bf16.gmra.mxu0 %v4743
    %v4769 = vpop.f32.mrf.mxu0
    %v4770 = vadd.f32 %v4757, %v4769
    %v4771 = vpop.f32.mrf.mxu0
    %4772 = vdwg.mxu0
    %v4773 = vmul.f32 %v4770, 0.02
    %v4774 = vmul.f32 %v4731, %v4731
    %v4775 = vmul.f32 %v4732, %v4732
    %v4776 = vsel %vm221, %v4775, 0.0
    %v4777 = vadd.f32 %v4774, %v4776
    %v4778 = vrot.slane %v4777, 4
    %v4779 = vadd.f32 %v4777, %v4778
    %v4780 = vrot.slane %v4779, 2
    %v4781 = vadd.f32 %v4779, %v4780
    %v4782 = vrot.slane %v4781, 1
    %v4783 = vadd.f32 %v4781, %v4782
    %v4784 = vpack.c.bf16 %v4783, %v4783
    %v4785 = vunpack.c.l.bf16 %v4784
    %v4786 = vsub.f32 %v4783, %v4785
    %v4787 = vpack.c.bf16 %v4786, %v4786
    %4788 = vmatpush.bf16.msra.mxu0 %v273
    %4789 = vmatpush.bf16.msra.mxu0 %v272
    %4790 = vmatpush.bf16.msra.mxu0 %v271
    %4791 = vmatpush.bf16.msra.mxu0 %v270
    %4792 = vmatpush.bf16.msra.mxu0 %v269
    %4793 = vmatpush.bf16.msra.mxu0 %v268
    %4794 = vmatpush.bf16.msra.mxu0 %v267
    %4795 = vmatpush.bf16.msra.mxu0 %v266
    %4796 = vmatmul.bf16.gmra.mxu0 %v4787
    %v4797 = vpop.f32.mrf.mxu0
    %v4798 = vadd.f32 0.0, %v4797
    %v4799 = vpop.f32.mrf.mxu0
    %4800 = vdwg.mxu0
    %4801 = vmatpush.bf16.msra.mxu0 %v273
    %4802 = vmatpush.bf16.msra.mxu0 %v272
    %4803 = vmatpush.bf16.msra.mxu0 %v271
    %4804 = vmatpush.bf16.msra.mxu0 %v270
    %4805 = vmatpush.bf16.msra.mxu0 %v269
    %4806 = vmatpush.bf16.msra.mxu0 %v268
    %4807 = vmatpush.bf16.msra.mxu0 %v267
    %4808 = vmatpush.bf16.msra.mxu0 %v266
    %4809 = vmatmul.bf16.gmra.mxu0 %v4784
    %v4810 = vpop.f32.mrf.mxu0
    %v4811 = vadd.f32 %v4798, %v4810
    %v4812 = vpop.f32.mrf.mxu0
    %4813 = vdwg.mxu0
    %v4814 = vmul.f32 %v4811, 0.02
    %v4815 = vmul.f32 %v4773, %v4773
    %v4816 = vsub.f32 %v4814, %v4815
    %v4817 = vadd.f32 %v4816, 1e-05
    %v4818 = vrsqrt.pop %v4817
    %v4819 = vmul.f32 %v4818, %v4817
    %v4820 = vmul.f32 %v4819, %v4818
    %v4821 = vmul.f32 0.5, %v4820
    %v4822 = vsub.f32 1.5, %v4821
    %v4823 = vmul.f32 %v4818, %v4822
    %vm4824 = vweird.f32 %v4817
    %vm4825 = vweird.f32 %v4818
    %vm4826 = vmor %vm4824, %vm4825
    %v4827 = vsel %vm4826, %v4818, %v4823
    %v4828 = vmul.f32 %v4733, %v4827
    %v4829 = vperm.slane %v4773, 0
    %v4830 = vsub.f32 %v4731, %v4829
    %v4831 = vsub.f32 %v4732, %v4829
    %v4832 = vperm.slane %v4828, 0
    %v4833 = vmul.f32 %v4830, %v4832
    %v4834 = vmul.f32 %v4831, %v4832
    %v4835 = vperm.slane %v4734, 0
    %v4836 = vadd.f32 %v4833, %v4835
    %v4837 = vadd.f32 %v4834, %v4835
    %v4838 = vmax.f32 %v4836, 0.0
    %v4839 = vmax.f32 %v4837, 0.0
    %4840 = vst [vmem:[#allocation4 + $0x2] sm:$0xff] %v4838
    %4841 = vst [vmem:[#allocation4 + $0xa] sm:$0x3] %v4839
    %v4842 = vld [vmem:[#allocation4] sm:$0xff]
    %v4843 = vld [vmem:[#allocation4 + $0x8] sm:$0x3]
    %v4844 = vld [vmem:[#allocation4 + $0x2] sm:$0xff]
    %v4845 = vld [vmem:[#allocation4 + $0xa] sm:$0x3]
    %v4846 = vld [vmem:[#allocation4 + $0x4] sm:$0xff]
    %v4847 = vld [vmem:[#allocation4 + $0xc] sm:$0x3]
    %s4848 = scalar_lea.vmem [#allocation8], 576
    %v4849 = vld [vmem:[%s4848] sm:$0xf]
    %v4850 = vld [vmem:[%s4848 + $0x4] sm:$0xf]
    %v4851 = vld [vmem:[%s4848 + $0x8] sm:$0xf]
    %v4852 = vld [vmem:[%s4848 + $0xc] sm:$0xf]
    %v4853 = vld [vmem:[%s4848 + $0x10] sm:$0xf]
    %v4854 = vld [vmem:[%s4848 + $0x14] sm:$0xf]
    %v4855 = vld [vmem:[%s4848 + $0x18] sm:$0xf]
    %v4856 = vld [vmem:[%s4848 + $0x1c] sm:$0xf]
    %v4857 = vld [vmem:[%s4848 + $0x20] sm:$0xf]
    %v4858 = vld [vmem:[%s4848 + $0x24] sm:$0xf]
    %v4859 = vld [vmem:[%s4848 + $0x28] sm:$0xf]
    %v4860 = vld [vmem:[%s4848 + $0x2c] sm:$0xf]
    %v4861 = vld [vmem:[%s4848 + $0x30] sm:$0xf]
    %v4862 = vld [vmem:[%s4848 + $0x34] sm:$0xf]
    %v4863 = vld [vmem:[%s4848 + $0x38] sm:$0xf]
    %v4864 = vld [vmem:[%s4848 + $0x3c] sm:$0xf]
    %v4865 = vld [vmem:[%s4848 + $0x40] sm:$0xf]
    %v4866 = vld [vmem:[%s4848 + $0x44] sm:$0xf]
    %v4867 = vld [vmem:[%s4848 + $0x48] sm:$0xf]
    %v4868 = vld [vmem:[%s4848 + $0x4c] sm:$0xf]
    %v4869 = vld [vmem:[%s4848 + $0x50] sm:$0xf]
    %v4870 = vld [vmem:[%s4848 + $0x54] sm:$0xf]
    %v4871 = vld [vmem:[%s4848 + $0x58] sm:$0xf]
    %v4872 = vld [vmem:[%s4848 + $0x5c] sm:$0xf]
    %v4873 = vld [vmem:[%s4848 + $0x60] sm:$0xf]
    %v4874 = vld [vmem:[%s4848 + $0x64] sm:$0xf]
    %v4875 = vld [vmem:[%s4848 + $0x68] sm:$0xf]
    %v4876 = vld [vmem:[%s4848 + $0x6c] sm:$0xf]
    %v4877 = vld [vmem:[%s4848 + $0x70] sm:$0xf]
    %v4878 = vld [vmem:[%s4848 + $0x74] sm:$0xf]
    %v4879 = vld [vmem:[%s4848 + $0x78] sm:$0xf]
    %v4880 = vld [vmem:[%s4848 + $0x7c] sm:$0xf]
    %v4881 = vld [vmem:[%s4848 + $0x80] sm:$0xf]
    %v4882 = vld [vmem:[%s4848 + $0x84] sm:$0xf]
    %v4883 = vld [vmem:[%s4848 + $0x88] sm:$0xf]
    %v4884 = vld [vmem:[%s4848 + $0x8c] sm:$0xf]
    %v4885 = vld [vmem:[%s4848 + $0x90] sm:$0xf]
    %v4886 = vld [vmem:[%s4848 + $0x94] sm:$0xf]
    %v4887 = vld [vmem:[%s4848 + $0x98] sm:$0xf]
    %v4888 = vld [vmem:[%s4848 + $0x9c] sm:$0xf]
    %v4889 = vld [vmem:[%s4848 + $0xa0] sm:$0xf]
    %v4890 = vld [vmem:[%s4848 + $0xa4] sm:$0xf]
    %v4891 = vld [vmem:[%s4848 + $0xa8] sm:$0xf]
    %v4892 = vld [vmem:[%s4848 + $0xac] sm:$0xf]
    %v4893 = vld [vmem:[%s4848 + $0xb0] sm:$0xf]
    %v4894 = vld [vmem:[%s4848 + $0xb4] sm:$0xf]
    %v4895 = vld [vmem:[%s4848 + $0xb8] sm:$0xf]
    %v4896 = vld [vmem:[%s4848 + $0xbc] sm:$0xf]
    %v4897 = vpack.c.bf16 %v4843, %v4842
    %v4898 = vpack.c.bf16 %v4845, %v4844
    %v4899 = vpack.c.bf16 %v4847, %v4846
    %v4900 = vld [vmem:[#allocation10 + $0x1e] sm:$0x1]
    %v4901 = vperm.slane %v4900, 0
    %v4950 = vunpack.c.l.b16 %v4849
    %v4951 = vunpack.c.l.b16 %v4850
    %v4952 = vunpack.c.l.b16 %v4851
    %v4953 = vunpack.c.l.b16 %v4852
    %v4954 = vunpack.c.l.b16 %v4853
    %v4955 = vunpack.c.l.b16 %v4854
    %v4956 = vunpack.c.l.b16 %v4855
    %v4957 = vunpack.c.l.b16 %v4856
    %v4958 = vunpack.c.l.b16 %v4857
    %v4959 = vunpack.c.l.b16 %v4858
    %v4960 = vunpack.c.l.b16 %v4859
    %v4961 = vunpack.c.l.b16 %v4860
    %v4962 = vunpack.c.l.b16 %v4861
    %v4963 = vunpack.c.l.b16 %v4862
    %v4964 = vunpack.c.l.b16 %v4863
    %v4965 = vunpack.c.l.b16 %v4864
    %v4966 = vunpack.c.l.b16 %v4865
    %v4967 = vunpack.c.l.b16 %v4866
    %v4968 = vunpack.c.l.b16 %v4867
    %v4969 = vunpack.c.l.b16 %v4868
    %v4970 = vunpack.c.l.b16 %v4869
    %v4971 = vunpack.c.l.b16 %v4870
    %v4972 = vunpack.c.l.b16 %v4871
    %v4973 = vunpack.c.l.b16 %v4872
    %v4974 = vunpack.c.l.b16 %v4873
    %v4975 = vunpack.c.l.b16 %v4874
    %v4976 = vunpack.c.l.b16 %v4875
    %v4977 = vunpack.c.l.b16 %v4876
    %v4978 = vunpack.c.l.b16 %v4877
    %v4979 = vunpack.c.l.b16 %v4878
    %v4980 = vunpack.c.l.b16 %v4879
    %v4981 = vunpack.c.l.b16 %v4880
    %v4982 = vunpack.c.l.b16 %v4881
    %v4983 = vunpack.c.l.b16 %v4882
    %v4984 = vunpack.c.l.b16 %v4883
    %v4985 = vunpack.c.l.b16 %v4884
    %v4986 = vunpack.c.l.b16 %v4885
    %v4987 = vunpack.c.l.b16 %v4886
    %v4988 = vunpack.c.l.b16 %v4887
    %v4989 = vunpack.c.l.b16 %v4888
    %v4990 = vunpack.c.l.b16 %v4889
    %v4991 = vunpack.c.l.b16 %v4890
    %v4992 = vunpack.c.l.b16 %v4891
    %v4993 = vunpack.c.l.b16 %v4892
    %v4994 = vunpack.c.l.b16 %v4893
    %v4995 = vunpack.c.l.b16 %v4894
    %v4996 = vunpack.c.l.b16 %v4895
    %v4997 = vunpack.c.l.b16 %v4896
    %v4998 = vpack.c.b16 %v4951, %v4950
    %v4999 = vpack.c.b16 %v4953, %v4952
    %v5000 = vpack.c.b16 %v4955, %v4954
    %v5001 = vpack.c.b16 %v4957, %v4956
    %v5002 = vpack.c.b16 %v4959, %v4958
    %v5003 = vpack.c.b16 %v4961, %v4960
    %v5004 = vpack.c.b16 %v4963, %v4962
    %v5005 = vpack.c.b16 %v4965, %v4964
    %v5006 = vpack.c.b16 %v4967, %v4966
    %v5007 = vpack.c.b16 %v4969, %v4968
    %v5008 = vpack.c.b16 %v4971, %v4970
    %v5009 = vpack.c.b16 %v4973, %v4972
    %v5010 = vpack.c.b16 %v4975, %v4974
    %v5011 = vpack.c.b16 %v4977, %v4976
    %v5012 = vpack.c.b16 %v4979, %v4978
    %v5013 = vpack.c.b16 %v4981, %v4980
    %v5014 = vpack.c.b16 %v4983, %v4982
    %v5015 = vpack.c.b16 %v4985, %v4984
    %v5016 = vpack.c.b16 %v4987, %v4986
    %v5017 = vpack.c.b16 %v4989, %v4988
    %v5018 = vpack.c.b16 %v4991, %v4990
    %v5019 = vpack.c.b16 %v4993, %v4992
    %v5020 = vpack.c.b16 %v4995, %v4994
    %v5021 = vpack.c.b16 %v4997, %v4996
    %5046 = vmatpush.bf16.msra.mxu0 %v5005
    %5047 = vmatpush.bf16.msra.mxu0 %v5004
    %5048 = vmatpush.bf16.msra.mxu0 %v5003
    %5049 = vmatpush.bf16.msra.mxu0 %v5002
    %5050 = vmatpush.bf16.msra.mxu0 %v5001
    %5051 = vmatpush.bf16.msra.mxu0 %v5000
    %5052 = vmatpush.bf16.msra.mxu0 %v4999
    %5053 = vmatpush.bf16.msra.mxu0 %v4998
    %5054 = vmatmul.bf16.gmra.mxu0 %v4897
    %v5055 = vpop.f32.mrf.mxu0
    %v5056 = vadd.f32 %v4901, %v5055
    %v5057 = vpop.f32.mrf.mxu0
    %v5058 = vadd.f32 %v4901, %v5057
    %5059 = vdwg.mxu0
    %5060 = vmatpush.bf16.msra.mxu0 %v5013
    %5061 = vmatpush.bf16.msra.mxu0 %v5012
    %5062 = vmatpush.bf16.msra.mxu0 %v5011
    %5063 = vmatpush.bf16.msra.mxu0 %v5010
    %5064 = vmatpush.bf16.msra.mxu0 %v5009
    %5065 = vmatpush.bf16.msra.mxu0 %v5008
    %5066 = vmatpush.bf16.msra.mxu0 %v5007
    %5067 = vmatpush.bf16.msra.mxu0 %v5006
    %5068 = vmatmul.bf16.gmra.mxu0 %v4898
    %v5069 = vpop.f32.mrf.mxu0
    %v5070 = vadd.f32 %v5056, %v5069
    %v5071 = vpop.f32.mrf.mxu0
    %v5072 = vadd.f32 %v5058, %v5071
    %5073 = vdwg.mxu0
    %5074 = vmatpush.bf16.msra.mxu0 %v5021
    %5075 = vmatpush.bf16.msra.mxu0 %v5020
    %5076 = vmatpush.bf16.msra.mxu0 %v5019
    %5077 = vmatpush.bf16.msra.mxu0 %v5018
    %5078 = vmatpush.bf16.msra.mxu0 %v5017
    %5079 = vmatpush.bf16.msra.mxu0 %v5016
    %5080 = vmatpush.bf16.msra.mxu0 %v5015
    %5081 = vmatpush.bf16.msra.mxu0 %v5014
    %5082 = vmatmul.bf16.gmra.mxu0 %v4899
    %v5083 = vpop.f32.mrf.mxu0
    %v5084 = vadd.f32 %v5070, %v5083
    %v5085 = vpop.f32.mrf.mxu0
    %v5086 = vadd.f32 %v5072, %v5085
    %5087 = vdwg.mxu0
    %v5088 = vld [vmem:[#allocation10 + $0x1f] sm:$0x1]
    %v5089 = vld [vmem:[#allocation10 + $0x20] sm:$0x1]
    %v5090 = vsel %vm221, %v5086, 0.0
    %v5091 = vadd.f32 %v5084, %v5090
    %v5092 = vrot.slane %v5091, 4
    %v5093 = vadd.f32 %v5091, %v5092
    %v5094 = vrot.slane %v5093, 2
    %v5095 = vadd.f32 %v5093, %v5094
    %v5096 = vrot.slane %v5095, 1
    %v5097 = vadd.f32 %v5095, %v5096
    %v5098 = vpack.c.bf16 %v5097, %v5097
    %v5099 = vunpack.c.l.bf16 %v5098
    %v5100 = vsub.f32 %v5097, %v5099
    %v5101 = vpack.c.bf16 %v5100, %v5100
    %5102 = vmatpush.bf16.msra.mxu0 %v273
    %5103 = vmatpush.bf16.msra.mxu0 %v272
    %5104 = vmatpush.bf16.msra.mxu0 %v271
    %5105 = vmatpush.bf16.msra.mxu0 %v270
    %5106 = vmatpush.bf16.msra.mxu0 %v269
    %5107 = vmatpush.bf16.msra.mxu0 %v268
    %5108 = vmatpush.bf16.msra.mxu0 %v267
    %5109 = vmatpush.bf16.msra.mxu0 %v266
    %5110 = vmatmul.bf16.gmra.mxu0 %v5101
    %v5111 = vpop.f32.mrf.mxu0
    %v5112 = vadd.f32 0.0, %v5111
    %v5113 = vpop.f32.mrf.mxu0
    %5114 = vdwg.mxu0
    %5115 = vmatpush.bf16.msra.mxu0 %v273
    %5116 = vmatpush.bf16.msra.mxu0 %v272
    %5117 = vmatpush.bf16.msra.mxu0 %v271
    %5118 = vmatpush.bf16.msra.mxu0 %v270
    %5119 = vmatpush.bf16.msra.mxu0 %v269
    %5120 = vmatpush.bf16.msra.mxu0 %v268
    %5121 = vmatpush.bf16.msra.mxu0 %v267
    %5122 = vmatpush.bf16.msra.mxu0 %v266
    %5123 = vmatmul.bf16.gmra.mxu0 %v5098
    %v5124 = vpop.f32.mrf.mxu0
    %v5125 = vadd.f32 %v5112, %v5124
    %v5126 = vpop.f32.mrf.mxu0
    %5127 = vdwg.mxu0
    %v5128 = vmul.f32 %v5125, 0.02
    %v5129 = vmul.f32 %v5084, %v5084
    %v5130 = vmul.f32 %v5086, %v5086
    %v5131 = vsel %vm221, %v5130, 0.0
    %v5132 = vadd.f32 %v5129, %v5131
    %v5133 = vrot.slane %v5132, 4
    %v5134 = vadd.f32 %v5132, %v5133
    %v5135 = vrot.slane %v5134, 2
    %v5136 = vadd.f32 %v5134, %v5135
    %v5137 = vrot.slane %v5136, 1
    %v5138 = vadd.f32 %v5136, %v5137
    %v5139 = vpack.c.bf16 %v5138, %v5138
    %v5140 = vunpack.c.l.bf16 %v5139
    %v5141 = vsub.f32 %v5138, %v5140
    %v5142 = vpack.c.bf16 %v5141, %v5141
    %5143 = vmatpush.bf16.msra.mxu0 %v273
    %5144 = vmatpush.bf16.msra.mxu0 %v272
    %5145 = vmatpush.bf16.msra.mxu0 %v271
    %5146 = vmatpush.bf16.msra.mxu0 %v270
    %5147 = vmatpush.bf16.msra.mxu0 %v269
    %5148 = vmatpush.bf16.msra.mxu0 %v268
    %5149 = vmatpush.bf16.msra.mxu0 %v267
    %5150 = vmatpush.bf16.msra.mxu0 %v266
    %5151 = vmatmul.bf16.gmra.mxu0 %v5142
    %v5152 = vpop.f32.mrf.mxu0
    %v5153 = vadd.f32 0.0, %v5152
    %v5154 = vpop.f32.mrf.mxu0
    %5155 = vdwg.mxu0
    %5156 = vmatpush.bf16.msra.mxu0 %v273
    %5157 = vmatpush.bf16.msra.mxu0 %v272
    %5158 = vmatpush.bf16.msra.mxu0 %v271
    %5159 = vmatpush.bf16.msra.mxu0 %v270
    %5160 = vmatpush.bf16.msra.mxu0 %v269
    %5161 = vmatpush.bf16.msra.mxu0 %v268
    %5162 = vmatpush.bf16.msra.mxu0 %v267
    %5163 = vmatpush.bf16.msra.mxu0 %v266
    %5164 = vmatmul.bf16.gmra.mxu0 %v5139
    %v5165 = vpop.f32.mrf.mxu0
    %v5166 = vadd.f32 %v5153, %v5165
    %v5167 = vpop.f32.mrf.mxu0
    %5168 = vdwg.mxu0
    %v5169 = vmul.f32 %v5166, 0.02
    %v5170 = vmul.f32 %v5128, %v5128
    %v5171 = vsub.f32 %v5169, %v5170
    %v5172 = vadd.f32 %v5171, 1e-05
    %v5173 = vrsqrt.pop %v5172
    %v5174 = vmul.f32 %v5173, %v5172
    %v5175 = vmul.f32 %v5174, %v5173
    %v5176 = vmul.f32 0.5, %v5175
    %v5177 = vsub.f32 1.5, %v5176
    %v5178 = vmul.f32 %v5173, %v5177
    %vm5179 = vweird.f32 %v5172
    %vm5180 = vweird.f32 %v5173
    %vm5181 = vmor %vm5179, %vm5180
    %v5182 = vsel %vm5181, %v5173, %v5178
    %v5183 = vmul.f32 %v5088, %v5182
    %v5184 = vperm.slane %v5128, 0
    %v5185 = vsub.f32 %v5084, %v5184
    %v5186 = vsub.f32 %v5086, %v5184
    %v5187 = vperm.slane %v5183, 0
    %v5188 = vmul.f32 %v5185, %v5187
    %v5189 = vmul.f32 %v5186, %v5187
    %v5190 = vperm.slane %v5089, 0
    %v5191 = vadd.f32 %v5188, %v5190
    %v5192 = vadd.f32 %v5189, %v5190
    %v5193 = vadd.f32 %v5191, %v4485
    %v5194 = vadd.f32 %v5192, %v4486
    %v5195 = vmax.f32 %v5193, 0.0
    %v5196 = vmax.f32 %v5194, 0.0
    %5197 = vst [vmem:[#allocation3 + $0x2] sm:$0xff] %v5195
    %5198 = vst [vmem:[#allocation3 + $0xa] sm:$0x3] %v5196
    %v5199 = vld [vmem:[#allocation3 + $0x2] sm:$0x3]
    %v5200 = vld [vmem:[#allocation3 + $0x4] sm:$0x3]
    %v5201 = vadd.f32 %v5199, %v5200
    %v5202 = vld [vmem:[#allocation3 + $0x6] sm:$0x3]
    %v5203 = vadd.f32 %v5201, %v5202
    %v5204 = vld [vmem:[#allocation3 + $0x8] sm:$0x3]
    %v5205 = vadd.f32 %v5203, %v5204
    %v5206 = vld [vmem:[#allocation3 + $0xa] sm:$0x3]
    %v5207 = vadd.f32 %v5205, %v5206
    %v5208 = vld [vmem:[%s6] sm:$0xf]
    %v5209 = vld [vmem:[%s6 + $0x4] sm:$0xf]
    %v5210 = vld [vmem:[%s6 + $0x8] sm:$0xf]
    %v5211 = vld [vmem:[%s6 + $0xc] sm:$0xf]
    %v5212 = vld [vmem:[%s6 + $0x10] sm:$0xf]
    %v5213 = vld [vmem:[%s6 + $0x14] sm:$0xf]
    %v5214 = vld [vmem:[%s6 + $0x18] sm:$0xf]
    %v5215 = vld [vmem:[%s6 + $0x1c] sm:$0xf]
    %v5216 = vld [vmem:[%s6 + $0x20] sm:$0xf]
    %v5217 = vld [vmem:[%s6 + $0x24] sm:$0xf]
    %v5218 = vld [vmem:[%s6 + $0x28] sm:$0xf]
    %v5219 = vld [vmem:[%s6 + $0x2c] sm:$0xf]
    %v5220 = vld [vmem:[%s6 + $0x30] sm:$0xf]
    %v5221 = vld [vmem:[%s6 + $0x34] sm:$0xf]
    %v5222 = vld [vmem:[%s6 + $0x38] sm:$0xf]
    %v5223 = vld [vmem:[%s6 + $0x3c] sm:$0xf]
    %v5224 = vpack.c.bf16 %v5207, %v5207
    %v5225 = vld [vmem:[#allocation10 + $0x21] sm:$0x1]
    %v5226 = vperm.slane %v5225, 0
    %v5243 = vunpack.c.l.b16 %v5208
    %v5244 = vunpack.c.l.b16 %v5209
    %v5245 = vunpack.c.l.b16 %v5210
    %v5246 = vunpack.c.l.b16 %v5211
    %v5247 = vunpack.c.l.b16 %v5212
    %v5248 = vunpack.c.l.b16 %v5213
    %v5249 = vunpack.c.l.b16 %v5214
    %v5250 = vunpack.c.l.b16 %v5215
    %v5251 = vunpack.c.l.b16 %v5216
    %v5252 = vunpack.c.l.b16 %v5217
    %v5253 = vunpack.c.l.b16 %v5218
    %v5254 = vunpack.c.l.b16 %v5219
    %v5255 = vunpack.c.l.b16 %v5220
    %v5256 = vunpack.c.l.b16 %v5221
    %v5257 = vunpack.c.l.b16 %v5222
    %v5258 = vunpack.c.l.b16 %v5223
    %v5259 = vpack.c.b16 %v5244, %v5243
    %v5260 = vpack.c.b16 %v5246, %v5245
    %v5261 = vpack.c.b16 %v5248, %v5247
    %v5262 = vpack.c.b16 %v5250, %v5249
    %v5263 = vpack.c.b16 %v5252, %v5251
    %v5264 = vpack.c.b16 %v5254, %v5253
    %v5265 = vpack.c.b16 %v5256, %v5255
    %v5266 = vpack.c.b16 %v5258, %v5257
    %5275 = vmatpush.bf16.msra.mxu0 %v5266
    %5276 = vmatpush.bf16.msra.mxu0 %v5265
    %5277 = vmatpush.bf16.msra.mxu0 %v5264
    %5278 = vmatpush.bf16.msra.mxu0 %v5263
    %5279 = vmatpush.bf16.msra.mxu0 %v5262
    %5280 = vmatpush.bf16.msra.mxu0 %v5261
    %5281 = vmatpush.bf16.msra.mxu0 %v5260
    %5282 = vmatpush.bf16.msra.mxu0 %v5259
    %5283 = vmatmul.bf16.gmra.mxu0 %v5224
    %v5284 = vpop.f32.mrf.mxu0
    %v5285 = vadd.f32 %v5226, %v5284
    %v5286 = vpop.f32.mrf.mxu0
    %5287 = vdwg.mxu0
    %5288 = vst [vmem:[#allocation13] sm:$0x3] %v5285
    // Predicated region
    $region54: #{ssrn_forward.1} parent=1 // pred_check
      _
    $region55: #{ssrn_forward.1} parent=1 // pred_check_branch
      %5290 = sbr.rel (0) target = $region57
    $region56: #{ssrn_forward.1} parent=1 // pred_region
      %5292 = vsyncadd [#allocation7], 0
      %s5294 = sshll.u32 [#allocation13], 4
      %s5295 = int_to_ptr.vmem [resolvable:$true] %s5294
      %s5296 = sshll.u32 %s9, 4
      %s5297 = int_to_ptr.hbm [resolvable:$true] %s5296
      %5299 = dma.vmem_to_hbm [thread:$0]  %s5295, 32, %s5297, [#allocation7]
    $region57: #{ssrn_forward.1} parent=1 // pred_fallthru
      _
    // Predicated region
    $region58: #{ssrn_forward.1} parent=1 // pred_check
      _
    $region59: #{ssrn_forward.1} parent=1 // pred_check_branch
      %5301 = sbr.rel (0) target = $region61
    $region60: #{ssrn_forward.1} parent=1 // pred_region
      %5303 = dma.done [#allocation7], 32
    $region61: #{ssrn_forward.1} parent=1 // pred_fallthru
      _
    %5304 = vsyncpa [#allocation6], 1
    %5305 = vsyncpa [#allocation9], 1
    %5306 = vsyncpa [#allocation12], 1
    %5307 = vsyncpa [#allocation7], 1

</llo_original>
